<compile_context>
chip_gen: v6e
topology: v6e:2x2x1
jax: 0.10.0
libtpu: 0.0.40
codegen_flags: <defaults>
</compile_context>

<pallas_src>
import numpy as np
import jax
import jax.numpy as jnp
from jax import lax
from jax.experimental import pallas as pl
from jax.experimental.pallas import tpu as pltpu


# ----------------------------------------------------------------------------
# Wrapper-side weight preparation (done once, outside jit)
# ----------------------------------------------------------------------------
def _build_toeplitz(wconv, cin, cout, W, halo_out):
    """Per-dh block-Toeplitz matrices with the 2x W-pool selection folded in.

    wconv: (3, 3, cin, cout).  Returns (TE, TO), each (3, Kin, Kout) with
      Kin  = cin * (W + 2)                (channel-major padded input lanes)
      Kout = cout * (W//2 + 2 or W//2)    (channel-major padded output lanes)
    TE produces the even conv columns, TO the odd ones; max(TE-branch, TO-branch)
    is exactly the 2x max-pool over W.  Halo output lanes are all-zero columns.
    """
    W2 = W // 2
    wp_in = W + 2
    wp_out = W2 + 2 if halo_out else W2
    off = 1 if halo_out else 0
    kin, kout = cin * wp_in, cout * wp_out

    dw, ci, co, w2 = np.meshgrid(np.arange(3), np.arange(cin), np.arange(cout),
                                 np.arange(W2), indexing="ij")
    cols = (co * wp_out + w2 + off).reshape(-1)

    te_list, to_list = [], []
    for dh in range(3):
        vals = wconv[dh][dw, ci, co].reshape(-1)            # (3*cin*cout*W2,)
        for parity, lst in ((0, te_list), (1, to_list)):
            rows = (ci * wp_in + 2 * w2 + parity + dw).reshape(-1)
            t = jnp.zeros((kin, kout), jnp.float32).at[rows, cols].set(vals)
            lst.append(t)
    return jnp.stack(te_list), jnp.stack(to_list)


def _tile_epilogue(bias, scale, shift, cout, W2, halo_out):
    """Tile per-channel (bias, scale, shift) to per-lane vectors; zero halo lanes so
    relu(0+b)*s+t garbage never lands in the next layer's W halo.  Returns (3, Kout)."""
    wp_out = W2 + 2 if halo_out else W2
    mask = np.ones((wp_out,), np.float32)
    if halo_out:
        mask[0] = 0.0
        mask[-1] = 0.0
    m = jnp.asarray(mask)

    def tile(v):
        return (v.reshape(cout, 1) * m).reshape(1, cout * wp_out)

    return jnp.concatenate([tile(bias), tile(scale), tile(shift)], axis=0)


def prepare_params(params, npix):
    """One-time conversion of module parameters into kernel-ready arrays."""
    assert npix % 8 == 0 and npix // 8 == 5, "module requires npix=40 (32*5*5 features)"
    layers = (("conv1", 3, 8, npix),
              ("conv2", 8, 16, npix // 2),
              ("conv3", 16, 32, npix // 4))
    kp = {}
    for idx, (name, cin, cout, W) in enumerate(layers):
        p = params[name]
        wconv = p["w"].reshape(3, 3, cin, cout)
        halo = idx < 2                                      # last layer feeds fc, no halo
        te, to = _build_toeplitz(wconv, cin, cout, W, halo)
        kp[f"te{idx+1}"] = te
        kp[f"to{idx+1}"] = to
        kp[f"ep{idx+1}"] = _tile_epilogue(p["b"], p["scale"], p["shift"], cout, W // 2, halo)
    # fc1 rows are stored in PyTorch NCHW-flatten order (c*25 + h*5 + w); regroup to
    # (h, c*5 + w, out) to match the kernel's feature layout (rows=(b,h), lanes=c*5+w).
    kp["fw1"] = params["fc1_w"].reshape(32, 5, 5, 128).transpose(1, 0, 2, 3).reshape(5, 160, 128)
    kp["fb1"] = params["fc1_b"]
    kp["fw2"] = params["fc2_w"]
    kp["fb2"] = params["fc2_b"]
    # fc3 padded to 128 output lanes for a lane-dense final store; wrapper slices [:, :2].
    kp["fw3"] = jnp.zeros((32, 128), jnp.float32).at[:, :2].set(params["fc3_w"])
    kp["fb3"] = jnp.zeros((1, 128), jnp.float32).at[:, :2].set(params["fc3_b"])
    return kp


# ----------------------------------------------------------------------------
# In-kernel helpers
# ----------------------------------------------------------------------------
def _conv_block(xp_ref, te_ref, to_ref, ep_ref):
    """3x3 conv + bias + ReLU + eval-BN + 2x2 maxpool via folded Toeplitz matmuls.

    xp_ref: (bb, H+2, Kin) padded channel-major slab -> returns (bb, H//2, Kout)."""
    bb, hp2, kin = xp_ref.shape
    h = hp2 - 2
    kout = te_ref.shape[2]

    def conv_branch(t_ref):
        acc = None
        for dh in range(3):                                  # 3 wide matmuls per branch
            lhs = xp_ref[:, dh:dh + h, :].reshape(bb * h, kin)
            part = jnp.dot(lhs, t_ref[dh], preferred_element_type=jnp.float32)
            acc = part if acc is None else acc + part
        return acc

    bias, scale, shift = ep_ref[0:1, :], ep_ref[1:2, :], ep_ref[2:3, :]
    z_even = jnp.maximum(conv_branch(te_ref) + bias, 0.0) * scale + shift
    z_odd = jnp.maximum(conv_branch(to_ref) + bias, 0.0) * scale + shift
    zw = jnp.maximum(z_even, z_odd)                          # W-pool (folded in weights)
    hp = zw.reshape(bb * (h // 2), 2, kout).max(axis=1)      # H-pool (sublane pairs)
    return hp.reshape(bb, h // 2, kout)


def _store_padded(xp_next, val):
    """Write pooled slab into the interior rows of the next padded slab; zero H-halos."""
    bb, h, k = val.shape
    xp_next[:, 1:h + 1, :] = val
    zrow = jnp.zeros((bb, 1, k), xp_next.dtype)
    xp_next[:, 0:1, :] = zrow
    xp_next[:, h + 1:h + 2, :] = zrow


# ----------------------------------------------------------------------------
# Fused forward kernel (one grid step = one batch block)
# ----------------------------------------------------------------------------
def fused_mve_kernel(xp1_ref, te1, to1, ep1, te2, to2, ep2, te3, to3, ep3,
                     fw1, fb1, fw2, fb2, fw3, fb3,
                     feat_ref, est_ref, xp2, xp3):
    # feature extractor: 3x [conv -> ReLU -> BN -> 2x2 pool]
    a1 = _conv_block(xp1_ref, te1, to1, ep1)                 # (bb, H/2, 8*(W/2+2))
    _store_padded(xp2, a1)
    a2 = _conv_block(xp2, te2, to2, ep2)                     # (bb, H/4, 16*(W/4+2))
    _store_padded(xp3, a2)
    feats = _conv_block(xp3, te3, to3, ep3)                  # (bb, 5, 160) lanes=c*5+w
    feat_ref[...] = feats

    # regressor: fc1 -> sigmoid -> fc2 -> sigmoid -> fc3(pad 128) -> ReLU
    bb, hf, _ = feats.shape
    acc = None
    for hh in range(hf):                                     # 5 wide matmuls, K=160
        part = jnp.dot(feats[:, hh, :], fw1[hh], preferred_element_type=jnp.float32)
        acc = part if acc is None else acc + part
    h1 = jax.nn.sigmoid(acc + fb1[...])
    h2 = jax.nn.sigmoid(jnp.dot(h1, fw2[...], preferred_element_type=jnp.float32) + fb2[...])
    est = jnp.dot(h2, fw3[...], preferred_element_type=jnp.float32) + fb3[...]
    est_ref[...] = jnp.maximum(est, 0.0).reshape(bb, 1, est.shape[-1])


# ----------------------------------------------------------------------------
# Pallas wrapper
# ----------------------------------------------------------------------------
def fused_forward(xp1, kp, npix, bb):
    B = xp1.shape[0]
    assert B % bb == 0
    H = npix
    k1in = 3 * (H + 2)
    k1out = 8 * (H // 2 + 2)
    k2out = 16 * (H // 4 + 2)
    k3out = 32 * (H // 8)

    args = (xp1,
            kp["te1"], kp["to1"], kp["ep1"],
            kp["te2"], kp["to2"], kp["ep2"],
            kp["te3"], kp["to3"], kp["ep3"],
            kp["fw1"], kp["fb1"], kp["fw2"], kp["fb2"], kp["fw3"], kp["fb3"])

    def batch_spec(shape):
        zeros = (0,) * (len(shape) - 1)
        return pl.BlockSpec(shape, lambda i: (i,) + zeros)

    def full_spec(shape):
        zeros = (0,) * len(shape)
        return pl.BlockSpec(shape, lambda i: zeros)

    in_specs = [batch_spec((bb, H + 2, k1in))] + [full_spec(a.shape) for a in args[1:]]

    feat, est = pl.pallas_call(
        fused_mve_kernel,
        out_shape=(jax.ShapeDtypeStruct((B, H // 8, k3out), jnp.float32),
                   jax.ShapeDtypeStruct((B, 1, 128), jnp.float32)),
        grid=(B // bb,),
        in_specs=in_specs,
        out_specs=(batch_spec((bb, H // 8, k3out)), batch_spec((bb, 1, 128))),
        scratch_shapes=[
            pltpu.VMEM((bb, H // 2 + 2, k1out), jnp.float32),   # padded slab layer 2
            pltpu.VMEM((bb, H // 4 + 2, k2out), jnp.float32),   # padded slab layer 3
        ],
        compiler_params=pltpu.CompilerParams(
            dimension_semantics=("parallel",),            # v7x: split batch over 2 TCs
            vmem_limit_bytes=16 * 1024 * 1024),
    )(*args)
    return feat, est


def forward(kp, x_nchw, npix, bb=1):
    x = x_nchw.reshape(-1, 3, npix, npix).astype(jnp.float32)
    B = x.shape[0]
    # Build the layer-1 padded channel-major slab in the wrapper (lane = c*(W+2)+w).
    xp = jnp.pad(x, ((0, 0), (0, 0), (1, 1), (1, 1)))
    xp = jnp.transpose(xp, (0, 2, 1, 3)).reshape(B, npix + 2, 3 * (npix + 2))
    feat, est = fused_forward(xp, kp, npix, bb)
    nf = npix // 8
    # kernel features: [b, h, c*5+w]  ->  PyTorch NCHW flatten order c*25 + h*5 + w
    features = feat.reshape(B, nf, 32, nf).transpose(0, 2, 1, 3).reshape(B, 32 * nf * nf)
    estimate = est.reshape(B, -1)[:, :2]
    return estimate, features


# ----------------------------------------------------------------------------
# Parameters (deterministic init mirroring the PyTorch module's shapes; BN eval-mode)
# ----------------------------------------------------------------------------
def init_params(key):
    keys = jax.random.split(key, 12)
    eps = 1e-5

    def conv_params(k_w, k_b, cin, cout):
        fan_in = 9 * cin
        # weight stored as (9*cin, cout): row index = (dh*3+dw)*cin + cin_idx
        w = jax.random.normal(k_w, (9 * cin, cout), jnp.float32) / np.sqrt(fan_in)
        b = jax.random.normal(k_b, (1, cout), jnp.float32) * 0.01
        # BatchNorm2d defaults (eval mode): gamma=1, beta=0, mean=0, var=1
        scale = jnp.full((1, cout), 1.0 / np.sqrt(1.0 + eps), jnp.float32)
        shift = jnp.zeros((1, cout), jnp.float32)
        return dict(w=w, b=b, scale=scale, shift=shift)

    def fc_params(k_w, k_b, fin, fout):
        w = jax.random.normal(k_w, (fin, fout), jnp.float32) / np.sqrt(fin)
        b = jax.random.normal(k_b, (1, fout), jnp.float32) * 0.01
        return w, b

    params = {
        "conv1": conv_params(keys[0], keys[1], 3, 8),
        "conv2": conv_params(keys[2], keys[3], 8, 16),
        "conv3": conv_params(keys[4], keys[5], 16, 32),
    }
    params["fc1_w"], params["fc1_b"] = fc_params(keys[6], keys[7], 32 * 5 * 5, 128)
    params["fc2_w"], params["fc2_b"] = fc_params(keys[8], keys[9], 128, 32)
    params["fc3_w"], params["fc3_b"] = fc_params(keys[10], keys[11], 32, 2)
    return params


# ----------------------------------------------------------------------------
# Pure-JAX reference (silent correctness check)
# ----------------------------------------------------------------------------
def forward_reference(params, x_nchw, npix):
    x = x_nchw.reshape(-1, 3, npix, npix)
    x = jnp.transpose(x, (0, 2, 3, 1)).astype(jnp.float32)
    B = x.shape[0]
    for name, cin in (("conv1", 3), ("conv2", 8), ("conv3", 16)):
        p = params[name]
        cout = p["w"].shape[1]
        w_hwio = p["w"].reshape(3, 3, cin, cout)
        y = lax.conv_general_dilated(x, w_hwio, (1, 1), "SAME",
                                     dimension_numbers=("NHWC", "HWIO", "NHWC"))
        y = y + p["b"].reshape(1, 1, 1, -1)
        y = jnp.maximum(y, 0.0)
        y = y * p["scale"].reshape(1, 1, 1, -1) + p["shift"].reshape(1, 1, 1, -1)
        x = lax.reduce_window(y, -jnp.inf, lax.max, (1, 2, 2, 1), (1, 2, 2, 1), "VALID")
    feats = jnp.transpose(x, (0, 3, 1, 2)).reshape(B, 32 * 5 * 5)
    h = jax.nn.sigmoid(feats @ params["fc1_w"] + params["fc1_b"])
    h = jax.nn.sigmoid(h @ params["fc2_w"] + params["fc2_b"])
    est = jnp.maximum(h @ params["fc3_w"] + params["fc3_b"], 0.0)
    return est, feats


if __name__ == "__main__":
    npix = 40          # 40 -> 20 -> 10 -> 5, giving the 32*5*5 = 800 features
    batch = 2

    key = jax.random.PRNGKey(0)
    k_param, k_x = jax.random.split(key)
    params = init_params(k_param)
    x = jax.random.normal(k_x, (batch, 3, npix, npix), jnp.float32)

    kparams = prepare_params(params, npix)          # one-time weight prep (outside jit)
    fwd = jax.jit(lambda kp, xx: forward(kp, xx, npix, bb=1))
    estimate, features = fwd(kparams, x)
    estimate = jax.block_until_ready(estimate)
    features = jax.block_until_ready(features)

    est_ref, feat_ref = forward_reference(params, x, npix)
    np.testing.assert_allclose(np.asarray(features), np.asarray(feat_ref),
                               rtol=1e-3, atol=1e-3)
    np.testing.assert_allclose(np.asarray(estimate), np.asarray(est_ref),
                               rtol=1e-3, atol=1e-3)

    assert estimate.shape == (batch, 2)
    assert features.shape == (batch, 800)
    print("KERNEL_OK")
</pallas_src>

<mosaic_0001>
module attributes {stable_mosaic.version = 11 : i64} {
  func.func @fused_mve_kernel(%arg0: i32, %arg1: memref<1x42x126xf32, #tpu.memory_space<vmem>>, %arg2: memref<3x126x176xf32, #tpu.memory_space<vmem>>, %arg3: memref<3x126x176xf32, #tpu.memory_space<vmem>>, %arg4: memref<3x176xf32, #tpu.memory_space<vmem>>, %arg5: memref<3x176x192xf32, #tpu.memory_space<vmem>>, %arg6: memref<3x176x192xf32, #tpu.memory_space<vmem>>, %arg7: memref<3x192xf32, #tpu.memory_space<vmem>>, %arg8: memref<3x192x160xf32, #tpu.memory_space<vmem>>, %arg9: memref<3x192x160xf32, #tpu.memory_space<vmem>>, %arg10: memref<3x160xf32, #tpu.memory_space<vmem>>, %arg11: memref<5x160x128xf32, #tpu.memory_space<vmem>>, %arg12: memref<1x128xf32, #tpu.memory_space<vmem>>, %arg13: memref<128x32xf32, #tpu.memory_space<vmem>>, %arg14: memref<1x32xf32, #tpu.memory_space<vmem>>, %arg15: memref<32x128xf32, #tpu.memory_space<vmem>>, %arg16: memref<1x128xf32, #tpu.memory_space<vmem>>, %arg17: memref<1x5x160xf32, #tpu.memory_space<vmem>>, %arg18: memref<1x1x128xf32, #tpu.memory_space<vmem>>, %arg19: memref<1x22x176xf32, #tpu.memory_space<vmem>>, %arg20: memref<1x12x192xf32, #tpu.memory_space<vmem>>) attributes {dimension_semantics = [#tpu.dimension_semantics<parallel>], iteration_bounds = array<i64: 2>, scalar_prefetch = 0 : i64, scratch_operands = 2 : i64, tpu.core_type = #tpu.core_type<tc>, window_params = [{transform_indices = @transform_0, window_bounds = array<i64: 1, 42, 126>}, {pipeline_mode = #tpu.pipeline_mode<synchronous>, transform_indices = @transform_1, window_bounds = array<i64: 3, 126, 176>}, {pipeline_mode = #tpu.pipeline_mode<synchronous>, transform_indices = @transform_2, window_bounds = array<i64: 3, 126, 176>}, {pipeline_mode = #tpu.pipeline_mode<synchronous>, transform_indices = @transform_3, window_bounds = array<i64: 3, 176>}, {pipeline_mode = #tpu.pipeline_mode<synchronous>, transform_indices = @transform_4, window_bounds = array<i64: 3, 176, 192>}, {pipeline_mode = #tpu.pipeline_mode<synchronous>, transform_indices = @transform_5, window_bounds = array<i64: 3, 176, 192>}, {pipeline_mode = #tpu.pipeline_mode<synchronous>, transform_indices = @transform_6, window_bounds = array<i64: 3, 192>}, {pipeline_mode = #tpu.pipeline_mode<synchronous>, transform_indices = @transform_7, window_bounds = array<i64: 3, 192, 160>}, {pipeline_mode = #tpu.pipeline_mode<synchronous>, transform_indices = @transform_8, window_bounds = array<i64: 3, 192, 160>}, {pipeline_mode = #tpu.pipeline_mode<synchronous>, transform_indices = @transform_9, window_bounds = array<i64: 3, 160>}, {pipeline_mode = #tpu.pipeline_mode<synchronous>, transform_indices = @transform_10, window_bounds = array<i64: 5, 160, 128>}, {pipeline_mode = #tpu.pipeline_mode<synchronous>, transform_indices = @transform_11, window_bounds = array<i64: 1, 128>}, {pipeline_mode = #tpu.pipeline_mode<synchronous>, transform_indices = @transform_12, window_bounds = array<i64: 128, 32>}, {pipeline_mode = #tpu.pipeline_mode<synchronous>, transform_indices = @transform_13, window_bounds = array<i64: 1, 32>}, {pipeline_mode = #tpu.pipeline_mode<synchronous>, transform_indices = @transform_14, window_bounds = array<i64: 32, 128>}, {pipeline_mode = #tpu.pipeline_mode<synchronous>, transform_indices = @transform_15, window_bounds = array<i64: 1, 128>}, {transform_indices = @transform_16, window_bounds = array<i64: 1, 5, 160>}, {transform_indices = @transform_17, window_bounds = array<i64: 1, 1, 128>}]} {
    %c0 = arith.constant 0 : index
    %c0_0 = arith.constant 0 : index
    %0 = vector.load %arg4[%c0, %c0_0] : memref<3x176xf32, #tpu.memory_space<vmem>>, vector<1x176xf32>
    %c1 = arith.constant 1 : index
    %c0_1 = arith.constant 0 : index
    %1 = vector.load %arg4[%c1, %c0_1] : memref<3x176xf32, #tpu.memory_space<vmem>>, vector<1x176xf32>
    %c2 = arith.constant 2 : index
    %c0_2 = arith.constant 0 : index
    %2 = vector.load %arg4[%c2, %c0_2] : memref<3x176xf32, #tpu.memory_space<vmem>>, vector<1x176xf32>
    %c0_3 = arith.constant 0 : index
    %c0_4 = arith.constant 0 : index
    %c0_5 = arith.constant 0 : index
    %3 = vector.load %arg1[%c0_3, %c0_4, %c0_5] : memref<1x42x126xf32, #tpu.memory_space<vmem>>, vector<1x40x126xf32>
    %4 = vector.shape_cast %3 : vector<1x40x126xf32> to vector<40x126xf32>
    %c0_6 = arith.constant 0 : index
    %c0_7 = arith.constant 0 : index
    %c0_8 = arith.constant 0 : index
    %5 = vector.load %arg2[%c0_6, %c0_7, %c0_8] : memref<3x126x176xf32, #tpu.memory_space<vmem>>, vector<1x126x176xf32>
    %6 = vector.shape_cast %5 : vector<1x126x176xf32> to vector<126x176xf32>
    %cst = arith.constant dense<0.000000e+00> : vector<40x176xf32>
    %7 = tpu.matmul %4, %6, %cst {dimension_numbers = #tpu.dot_dimension_numbers<[1], [0], [0], [1], [0, 0, 1, 1], [], []>} : vector<40x126xf32>, vector<126x176xf32>, vector<40x176xf32> -> vector<40x176xf32>
    %c0_9 = arith.constant 0 : index
    %c1_10 = arith.constant 1 : index
    %c0_11 = arith.constant 0 : index
    %8 = vector.load %arg1[%c0_9, %c1_10, %c0_11] : memref<1x42x126xf32, #tpu.memory_space<vmem>>, vector<1x40x126xf32>
    %9 = vector.shape_cast %8 : vector<1x40x126xf32> to vector<40x126xf32>
    %c1_12 = arith.constant 1 : index
    %c0_13 = arith.constant 0 : index
    %c0_14 = arith.constant 0 : index
    %10 = vector.load %arg2[%c1_12, %c0_13, %c0_14] : memref<3x126x176xf32, #tpu.memory_space<vmem>>, vector<1x126x176xf32>
    %11 = vector.shape_cast %10 : vector<1x126x176xf32> to vector<126x176xf32>
    %cst_15 = arith.constant dense<0.000000e+00> : vector<40x176xf32>
    %12 = tpu.matmul %9, %11, %cst_15 {dimension_numbers = #tpu.dot_dimension_numbers<[1], [0], [0], [1], [0, 0, 1, 1], [], []>} : vector<40x126xf32>, vector<126x176xf32>, vector<40x176xf32> -> vector<40x176xf32>
    %13 = arith.addf %7, %12 : vector<40x176xf32>
    %c0_16 = arith.constant 0 : index
    %c2_17 = arith.constant 2 : index
    %c0_18 = arith.constant 0 : index
    %14 = vector.load %arg1[%c0_16, %c2_17, %c0_18] : memref<1x42x126xf32, #tpu.memory_space<vmem>>, vector<1x40x126xf32>
    %15 = vector.shape_cast %14 : vector<1x40x126xf32> to vector<40x126xf32>
    %c2_19 = arith.constant 2 : index
    %c0_20 = arith.constant 0 : index
    %c0_21 = arith.constant 0 : index
    %16 = vector.load %arg2[%c2_19, %c0_20, %c0_21] : memref<3x126x176xf32, #tpu.memory_space<vmem>>, vector<1x126x176xf32>
    %17 = vector.shape_cast %16 : vector<1x126x176xf32> to vector<126x176xf32>
    %cst_22 = arith.constant dense<0.000000e+00> : vector<40x176xf32>
    %18 = tpu.matmul %15, %17, %cst_22 {dimension_numbers = #tpu.dot_dimension_numbers<[1], [0], [0], [1], [0, 0, 1, 1], [], []>} : vector<40x126xf32>, vector<126x176xf32>, vector<40x176xf32> -> vector<40x176xf32>
    %19 = arith.addf %13, %18 : vector<40x176xf32>
    %20 = vector.broadcast %0 : vector<1x176xf32> to vector<40x176xf32>
    %21 = arith.addf %19, %20 : vector<40x176xf32>
    %cst_23 = arith.constant 0.000000e+00 : f32
    %22 = vector.broadcast %cst_23 : f32 to vector<40x176xf32>
    %23 = arith.maximumf %21, %22 : vector<40x176xf32>
    %24 = vector.broadcast %1 : vector<1x176xf32> to vector<40x176xf32>
    %25 = arith.mulf %23, %24 : vector<40x176xf32>
    %26 = vector.broadcast %2 : vector<1x176xf32> to vector<40x176xf32>
    %27 = arith.addf %25, %26 : vector<40x176xf32>
    %c0_24 = arith.constant 0 : index
    %c0_25 = arith.constant 0 : index
    %c0_26 = arith.constant 0 : index
    %28 = vector.load %arg1[%c0_24, %c0_25, %c0_26] : memref<1x42x126xf32, #tpu.memory_space<vmem>>, vector<1x40x126xf32>
    %29 = vector.shape_cast %28 : vector<1x40x126xf32> to vector<40x126xf32>
    %c0_27 = arith.constant 0 : index
    %c0_28 = arith.constant 0 : index
    %c0_29 = arith.constant 0 : index
    %30 = vector.load %arg3[%c0_27, %c0_28, %c0_29] : memref<3x126x176xf32, #tpu.memory_space<vmem>>, vector<1x126x176xf32>
    %31 = vector.shape_cast %30 : vector<1x126x176xf32> to vector<126x176xf32>
    %cst_30 = arith.constant dense<0.000000e+00> : vector<40x176xf32>
    %32 = tpu.matmul %29, %31, %cst_30 {dimension_numbers = #tpu.dot_dimension_numbers<[1], [0], [0], [1], [0, 0, 1, 1], [], []>} : vector<40x126xf32>, vector<126x176xf32>, vector<40x176xf32> -> vector<40x176xf32>
    %c0_31 = arith.constant 0 : index
    %c1_32 = arith.constant 1 : index
    %c0_33 = arith.constant 0 : index
    %33 = vector.load %arg1[%c0_31, %c1_32, %c0_33] : memref<1x42x126xf32, #tpu.memory_space<vmem>>, vector<1x40x126xf32>
    %34 = vector.shape_cast %33 : vector<1x40x126xf32> to vector<40x126xf32>
    %c1_34 = arith.constant 1 : index
    %c0_35 = arith.constant 0 : index
    %c0_36 = arith.constant 0 : index
    %35 = vector.load %arg3[%c1_34, %c0_35, %c0_36] : memref<3x126x176xf32, #tpu.memory_space<vmem>>, vector<1x126x176xf32>
    %36 = vector.shape_cast %35 : vector<1x126x176xf32> to vector<126x176xf32>
    %cst_37 = arith.constant dense<0.000000e+00> : vector<40x176xf32>
    %37 = tpu.matmul %34, %36, %cst_37 {dimension_numbers = #tpu.dot_dimension_numbers<[1], [0], [0], [1], [0, 0, 1, 1], [], []>} : vector<40x126xf32>, vector<126x176xf32>, vector<40x176xf32> -> vector<40x176xf32>
    %38 = arith.addf %32, %37 : vector<40x176xf32>
    %c0_38 = arith.constant 0 : index
    %c2_39 = arith.constant 2 : index
    %c0_40 = arith.constant 0 : index
    %39 = vector.load %arg1[%c0_38, %c2_39, %c0_40] : memref<1x42x126xf32, #tpu.memory_space<vmem>>, vector<1x40x126xf32>
    %40 = vector.shape_cast %39 : vector<1x40x126xf32> to vector<40x126xf32>
    %c2_41 = arith.constant 2 : index
    %c0_42 = arith.constant 0 : index
    %c0_43 = arith.constant 0 : index
    %41 = vector.load %arg3[%c2_41, %c0_42, %c0_43] : memref<3x126x176xf32, #tpu.memory_space<vmem>>, vector<1x126x176xf32>
    %42 = vector.shape_cast %41 : vector<1x126x176xf32> to vector<126x176xf32>
    %cst_44 = arith.constant dense<0.000000e+00> : vector<40x176xf32>
    %43 = tpu.matmul %40, %42, %cst_44 {dimension_numbers = #tpu.dot_dimension_numbers<[1], [0], [0], [1], [0, 0, 1, 1], [], []>} : vector<40x126xf32>, vector<126x176xf32>, vector<40x176xf32> -> vector<40x176xf32>
    %44 = arith.addf %38, %43 : vector<40x176xf32>
    %45 = vector.broadcast %0 : vector<1x176xf32> to vector<40x176xf32>
    %46 = arith.addf %44, %45 : vector<40x176xf32>
    %cst_45 = arith.constant 0.000000e+00 : f32
    %47 = vector.broadcast %cst_45 : f32 to vector<40x176xf32>
    %48 = arith.maximumf %46, %47 : vector<40x176xf32>
    %49 = vector.broadcast %1 : vector<1x176xf32> to vector<40x176xf32>
    %50 = arith.mulf %48, %49 : vector<40x176xf32>
    %51 = vector.broadcast %2 : vector<1x176xf32> to vector<40x176xf32>
    %52 = arith.addf %50, %51 : vector<40x176xf32>
    %53 = arith.maximumf %27, %52 : vector<40x176xf32>
    %54 = vector.shape_cast %53 : vector<40x176xf32> to vector<20x2x176xf32>
    %cst_46 = arith.constant dense<0xFF800000> : vector<20x176xf32>
    %55 = vector.multi_reduction <maximumf>, %54, %cst_46 [1] : vector<20x2x176xf32> to vector<20x176xf32>
    %56 = vector.shape_cast %55 : vector<20x176xf32> to vector<1x20x176xf32>
    %c0_47 = arith.constant 0 : index
    %c1_48 = arith.constant 1 : index
    %c0_49 = arith.constant 0 : index
    %57 = vector.load %arg19[%c0_47, %c1_48, %c0_49] : memref<1x22x176xf32, #tpu.memory_space<vmem>>, vector<1x20x176xf32>
    tpu.vector_store %arg19[%c0_47, %c1_48, %c0_49], %56 {strides = array<i32>} : memref<1x22x176xf32, #tpu.memory_space<vmem>>, vector<1x20x176xf32>,
    %cst_50 = arith.constant 0.000000e+00 : f32
    %58 = vector.broadcast %cst_50 : f32 to vector<1x1x176xf32>
    %c0_51 = arith.constant 0 : index
    %c0_52 = arith.constant 0 : index
    %c0_53 = arith.constant 0 : index
    %59 = vector.load %arg19[%c0_51, %c0_52, %c0_53] : memref<1x22x176xf32, #tpu.memory_space<vmem>>, vector<1x1x176xf32>
    tpu.vector_store %arg19[%c0_51, %c0_52, %c0_53], %58 {strides = array<i32>} : memref<1x22x176xf32, #tpu.memory_space<vmem>>, vector<1x1x176xf32>,
    %c0_54 = arith.constant 0 : index
    %c21 = arith.constant 21 : index
    %c0_55 = arith.constant 0 : index
    %60 = vector.load %arg19[%c0_54, %c21, %c0_55] : memref<1x22x176xf32, #tpu.memory_space<vmem>>, vector<1x1x176xf32>
    tpu.vector_store %arg19[%c0_54, %c21, %c0_55], %58 {strides = array<i32>} : memref<1x22x176xf32, #tpu.memory_space<vmem>>, vector<1x1x176xf32>,
    %c0_56 = arith.constant 0 : index
    %c0_57 = arith.constant 0 : index
    %61 = vector.load %arg7[%c0_56, %c0_57] : memref<3x192xf32, #tpu.memory_space<vmem>>, vector<1x192xf32>
    %c1_58 = arith.constant 1 : index
    %c0_59 = arith.constant 0 : index
    %62 = vector.load %arg7[%c1_58, %c0_59] : memref<3x192xf32, #tpu.memory_space<vmem>>, vector<1x192xf32>
    %c2_60 = arith.constant 2 : index
    %c0_61 = arith.constant 0 : index
    %63 = vector.load %arg7[%c2_60, %c0_61] : memref<3x192xf32, #tpu.memory_space<vmem>>, vector<1x192xf32>
    %c0_62 = arith.constant 0 : index
    %c0_63 = arith.constant 0 : index
    %c0_64 = arith.constant 0 : index
    %64 = vector.load %arg19[%c0_62, %c0_63, %c0_64] : memref<1x22x176xf32, #tpu.memory_space<vmem>>, vector<1x20x176xf32>
    %65 = vector.shape_cast %64 : vector<1x20x176xf32> to vector<20x176xf32>
    %c0_65 = arith.constant 0 : index
    %c0_66 = arith.constant 0 : index
    %c0_67 = arith.constant 0 : index
    %66 = vector.load %arg5[%c0_65, %c0_66, %c0_67] : memref<3x176x192xf32, #tpu.memory_space<vmem>>, vector<1x176x192xf32>
    %67 = vector.shape_cast %66 : vector<1x176x192xf32> to vector<176x192xf32>
    %cst_68 = arith.constant dense<0.000000e+00> : vector<20x192xf32>
    %68 = tpu.matmul %65, %67, %cst_68 {dimension_numbers = #tpu.dot_dimension_numbers<[1], [0], [0], [1], [0, 0, 1, 1], [], []>} : vector<20x176xf32>, vector<176x192xf32>, vector<20x192xf32> -> vector<20x192xf32>
    %c0_69 = arith.constant 0 : index
    %c1_70 = arith.constant 1 : index
    %c0_71 = arith.constant 0 : index
    %69 = vector.load %arg19[%c0_69, %c1_70, %c0_71] : memref<1x22x176xf32, #tpu.memory_space<vmem>>, vector<1x20x176xf32>
    %70 = vector.shape_cast %69 : vector<1x20x176xf32> to vector<20x176xf32>
    %c1_72 = arith.constant 1 : index
    %c0_73 = arith.constant 0 : index
    %c0_74 = arith.constant 0 : index
    %71 = vector.load %arg5[%c1_72, %c0_73, %c0_74] : memref<3x176x192xf32, #tpu.memory_space<vmem>>, vector<1x176x192xf32>
    %72 = vector.shape_cast %71 : vector<1x176x192xf32> to vector<176x192xf32>
    %cst_75 = arith.constant dense<0.000000e+00> : vector<20x192xf32>
    %73 = tpu.matmul %70, %72, %cst_75 {dimension_numbers = #tpu.dot_dimension_numbers<[1], [0], [0], [1], [0, 0, 1, 1], [], []>} : vector<20x176xf32>, vector<176x192xf32>, vector<20x192xf32> -> vector<20x192xf32>
    %74 = arith.addf %68, %73 : vector<20x192xf32>
    %c0_76 = arith.constant 0 : index
    %c2_77 = arith.constant 2 : index
    %c0_78 = arith.constant 0 : index
    %75 = vector.load %arg19[%c0_76, %c2_77, %c0_78] : memref<1x22x176xf32, #tpu.memory_space<vmem>>, vector<1x20x176xf32>
    %76 = vector.shape_cast %75 : vector<1x20x176xf32> to vector<20x176xf32>
    %c2_79 = arith.constant 2 : index
    %c0_80 = arith.constant 0 : index
    %c0_81 = arith.constant 0 : index
    %77 = vector.load %arg5[%c2_79, %c0_80, %c0_81] : memref<3x176x192xf32, #tpu.memory_space<vmem>>, vector<1x176x192xf32>
    %78 = vector.shape_cast %77 : vector<1x176x192xf32> to vector<176x192xf32>
    %cst_82 = arith.constant dense<0.000000e+00> : vector<20x192xf32>
    %79 = tpu.matmul %76, %78, %cst_82 {dimension_numbers = #tpu.dot_dimension_numbers<[1], [0], [0], [1], [0, 0, 1, 1], [], []>} : vector<20x176xf32>, vector<176x192xf32>, vector<20x192xf32> -> vector<20x192xf32>
    %80 = arith.addf %74, %79 : vector<20x192xf32>
    %81 = vector.broadcast %61 : vector<1x192xf32> to vector<20x192xf32>
    %82 = arith.addf %80, %81 : vector<20x192xf32>
    %cst_83 = arith.constant 0.000000e+00 : f32
    %83 = vector.broadcast %cst_83 : f32 to vector<20x192xf32>
    %84 = arith.maximumf %82, %83 : vector<20x192xf32>
    %85 = vector.broadcast %62 : vector<1x192xf32> to vector<20x192xf32>
    %86 = arith.mulf %84, %85 : vector<20x192xf32>
    %87 = vector.broadcast %63 : vector<1x192xf32> to vector<20x192xf32>
    %88 = arith.addf %86, %87 : vector<20x192xf32>
    %c0_84 = arith.constant 0 : index
    %c0_85 = arith.constant 0 : index
    %c0_86 = arith.constant 0 : index
    %89 = vector.load %arg19[%c0_84, %c0_85, %c0_86] : memref<1x22x176xf32, #tpu.memory_space<vmem>>, vector<1x20x176xf32>
    %90 = vector.shape_cast %89 : vector<1x20x176xf32> to vector<20x176xf32>
    %c0_87 = arith.constant 0 : index
    %c0_88 = arith.constant 0 : index
    %c0_89 = arith.constant 0 : index
    %91 = vector.load %arg6[%c0_87, %c0_88, %c0_89] : memref<3x176x192xf32, #tpu.memory_space<vmem>>, vector<1x176x192xf32>
    %92 = vector.shape_cast %91 : vector<1x176x192xf32> to vector<176x192xf32>
    %cst_90 = arith.constant dense<0.000000e+00> : vector<20x192xf32>
    %93 = tpu.matmul %90, %92, %cst_90 {dimension_numbers = #tpu.dot_dimension_numbers<[1], [0], [0], [1], [0, 0, 1, 1], [], []>} : vector<20x176xf32>, vector<176x192xf32>, vector<20x192xf32> -> vector<20x192xf32>
    %c0_91 = arith.constant 0 : index
    %c1_92 = arith.constant 1 : index
    %c0_93 = arith.constant 0 : index
    %94 = vector.load %arg19[%c0_91, %c1_92, %c0_93] : memref<1x22x176xf32, #tpu.memory_space<vmem>>, vector<1x20x176xf32>
    %95 = vector.shape_cast %94 : vector<1x20x176xf32> to vector<20x176xf32>
    %c1_94 = arith.constant 1 : index
    %c0_95 = arith.constant 0 : index
    %c0_96 = arith.constant 0 : index
    %96 = vector.load %arg6[%c1_94, %c0_95, %c0_96] : memref<3x176x192xf32, #tpu.memory_space<vmem>>, vector<1x176x192xf32>
    %97 = vector.shape_cast %96 : vector<1x176x192xf32> to vector<176x192xf32>
    %cst_97 = arith.constant dense<0.000000e+00> : vector<20x192xf32>
    %98 = tpu.matmul %95, %97, %cst_97 {dimension_numbers = #tpu.dot_dimension_numbers<[1], [0], [0], [1], [0, 0, 1, 1], [], []>} : vector<20x176xf32>, vector<176x192xf32>, vector<20x192xf32> -> vector<20x192xf32>
    %99 = arith.addf %93, %98 : vector<20x192xf32>
    %c0_98 = arith.constant 0 : index
    %c2_99 = arith.constant 2 : index
    %c0_100 = arith.constant 0 : index
    %100 = vector.load %arg19[%c0_98, %c2_99, %c0_100] : memref<1x22x176xf32, #tpu.memory_space<vmem>>, vector<1x20x176xf32>
    %101 = vector.shape_cast %100 : vector<1x20x176xf32> to vector<20x176xf32>
    %c2_101 = arith.constant 2 : index
    %c0_102 = arith.constant 0 : index
    %c0_103 = arith.constant 0 : index
    %102 = vector.load %arg6[%c2_101, %c0_102, %c0_103] : memref<3x176x192xf32, #tpu.memory_space<vmem>>, vector<1x176x192xf32>
    %103 = vector.shape_cast %102 : vector<1x176x192xf32> to vector<176x192xf32>
    %cst_104 = arith.constant dense<0.000000e+00> : vector<20x192xf32>
    %104 = tpu.matmul %101, %103, %cst_104 {dimension_numbers = #tpu.dot_dimension_numbers<[1], [0], [0], [1], [0, 0, 1, 1], [], []>} : vector<20x176xf32>, vector<176x192xf32>, vector<20x192xf32> -> vector<20x192xf32>
    %105 = arith.addf %99, %104 : vector<20x192xf32>
    %106 = vector.broadcast %61 : vector<1x192xf32> to vector<20x192xf32>
    %107 = arith.addf %105, %106 : vector<20x192xf32>
    %cst_105 = arith.constant 0.000000e+00 : f32
    %108 = vector.broadcast %cst_105 : f32 to vector<20x192xf32>
    %109 = arith.maximumf %107, %108 : vector<20x192xf32>
    %110 = vector.broadcast %62 : vector<1x192xf32> to vector<20x192xf32>
    %111 = arith.mulf %109, %110 : vector<20x192xf32>
    %112 = vector.broadcast %63 : vector<1x192xf32> to vector<20x192xf32>
    %113 = arith.addf %111, %112 : vector<20x192xf32>
    %114 = arith.maximumf %88, %113 : vector<20x192xf32>
    %115 = vector.shape_cast %114 : vector<20x192xf32> to vector<10x2x192xf32>
    %cst_106 = arith.constant dense<0xFF800000> : vector<10x192xf32>
    %116 = vector.multi_reduction <maximumf>, %115, %cst_106 [1] : vector<10x2x192xf32> to vector<10x192xf32>
    %117 = vector.shape_cast %116 : vector<10x192xf32> to vector<1x10x192xf32>
    %c0_107 = arith.constant 0 : index
    %c1_108 = arith.constant 1 : index
    %c0_109 = arith.constant 0 : index
    %118 = vector.load %arg20[%c0_107, %c1_108, %c0_109] : memref<1x12x192xf32, #tpu.memory_space<vmem>>, vector<1x10x192xf32>
    tpu.vector_store %arg20[%c0_107, %c1_108, %c0_109], %117 {strides = array<i32>} : memref<1x12x192xf32, #tpu.memory_space<vmem>>, vector<1x10x192xf32>,
    %cst_110 = arith.constant 0.000000e+00 : f32
    %119 = vector.broadcast %cst_110 : f32 to vector<1x1x192xf32>
    %c0_111 = arith.constant 0 : index
    %c0_112 = arith.constant 0 : index
    %c0_113 = arith.constant 0 : index
    %120 = vector.load %arg20[%c0_111, %c0_112, %c0_113] : memref<1x12x192xf32, #tpu.memory_space<vmem>>, vector<1x1x192xf32>
    tpu.vector_store %arg20[%c0_111, %c0_112, %c0_113], %119 {strides = array<i32>} : memref<1x12x192xf32, #tpu.memory_space<vmem>>, vector<1x1x192xf32>,
    %c0_114 = arith.constant 0 : index
    %c11 = arith.constant 11 : index
    %c0_115 = arith.constant 0 : index
    %121 = vector.load %arg20[%c0_114, %c11, %c0_115] : memref<1x12x192xf32, #tpu.memory_space<vmem>>, vector<1x1x192xf32>
    tpu.vector_store %arg20[%c0_114, %c11, %c0_115], %119 {strides = array<i32>} : memref<1x12x192xf32, #tpu.memory_space<vmem>>, vector<1x1x192xf32>,
    %c0_116 = arith.constant 0 : index
    %c0_117 = arith.constant 0 : index
    %122 = vector.load %arg10[%c0_116, %c0_117] : memref<3x160xf32, #tpu.memory_space<vmem>>, vector<1x160xf32>
    %c1_118 = arith.constant 1 : index
    %c0_119 = arith.constant 0 : index
    %123 = vector.load %arg10[%c1_118, %c0_119] : memref<3x160xf32, #tpu.memory_space<vmem>>, vector<1x160xf32>
    %c2_120 = arith.constant 2 : index
    %c0_121 = arith.constant 0 : index
    %124 = vector.load %arg10[%c2_120, %c0_121] : memref<3x160xf32, #tpu.memory_space<vmem>>, vector<1x160xf32>
    %c0_122 = arith.constant 0 : index
    %c0_123 = arith.constant 0 : index
    %c0_124 = arith.constant 0 : index
    %125 = vector.load %arg20[%c0_122, %c0_123, %c0_124] : memref<1x12x192xf32, #tpu.memory_space<vmem>>, vector<1x10x192xf32>
    %126 = vector.shape_cast %125 : vector<1x10x192xf32> to vector<10x192xf32>
    %c0_125 = arith.constant 0 : index
    %c0_126 = arith.constant 0 : index
    %c0_127 = arith.constant 0 : index
    %127 = vector.load %arg8[%c0_125, %c0_126, %c0_127] : memref<3x192x160xf32, #tpu.memory_space<vmem>>, vector<1x192x160xf32>
    %128 = vector.shape_cast %127 : vector<1x192x160xf32> to vector<192x160xf32>
    %cst_128 = arith.constant dense<0.000000e+00> : vector<10x160xf32>
    %129 = tpu.matmul %126, %128, %cst_128 {dimension_numbers = #tpu.dot_dimension_numbers<[1], [0], [0], [1], [0, 0, 1, 1], [], []>} : vector<10x192xf32>, vector<192x160xf32>, vector<10x160xf32> -> vector<10x160xf32>
    %c0_129 = arith.constant 0 : index
    %c1_130 = arith.constant 1 : index
    %c0_131 = arith.constant 0 : index
    %130 = vector.load %arg20[%c0_129, %c1_130, %c0_131] : memref<1x12x192xf32, #tpu.memory_space<vmem>>, vector<1x10x192xf32>
    %131 = vector.shape_cast %130 : vector<1x10x192xf32> to vector<10x192xf32>
    %c1_132 = arith.constant 1 : index
    %c0_133 = arith.constant 0 : index
    %c0_134 = arith.constant 0 : index
    %132 = vector.load %arg8[%c1_132, %c0_133, %c0_134] : memref<3x192x160xf32, #tpu.memory_space<vmem>>, vector<1x192x160xf32>
    %133 = vector.shape_cast %132 : vector<1x192x160xf32> to vector<192x160xf32>
    %cst_135 = arith.constant dense<0.000000e+00> : vector<10x160xf32>
    %134 = tpu.matmul %131, %133, %cst_135 {dimension_numbers = #tpu.dot_dimension_numbers<[1], [0], [0], [1], [0, 0, 1, 1], [], []>} : vector<10x192xf32>, vector<192x160xf32>, vector<10x160xf32> -> vector<10x160xf32>
    %135 = arith.addf %129, %134 : vector<10x160xf32>
    %c0_136 = arith.constant 0 : index
    %c2_137 = arith.constant 2 : index
    %c0_138 = arith.constant 0 : index
    %136 = vector.load %arg20[%c0_136, %c2_137, %c0_138] : memref<1x12x192xf32, #tpu.memory_space<vmem>>, vector<1x10x192xf32>
    %137 = vector.shape_cast %136 : vector<1x10x192xf32> to vector<10x192xf32>
    %c2_139 = arith.constant 2 : index
    %c0_140 = arith.constant 0 : index
    %c0_141 = arith.constant 0 : index
    %138 = vector.load %arg8[%c2_139, %c0_140, %c0_141] : memref<3x192x160xf32, #tpu.memory_space<vmem>>, vector<1x192x160xf32>
    %139 = vector.shape_cast %138 : vector<1x192x160xf32> to vector<192x160xf32>
    %cst_142 = arith.constant dense<0.000000e+00> : vector<10x160xf32>
    %140 = tpu.matmul %137, %139, %cst_142 {dimension_numbers = #tpu.dot_dimension_numbers<[1], [0], [0], [1], [0, 0, 1, 1], [], []>} : vector<10x192xf32>, vector<192x160xf32>, vector<10x160xf32> -> vector<10x160xf32>
    %141 = arith.addf %135, %140 : vector<10x160xf32>
    %142 = vector.broadcast %122 : vector<1x160xf32> to vector<10x160xf32>
    %143 = arith.addf %141, %142 : vector<10x160xf32>
    %cst_143 = arith.constant 0.000000e+00 : f32
    %144 = vector.broadcast %cst_143 : f32 to vector<10x160xf32>
    %145 = arith.maximumf %143, %144 : vector<10x160xf32>
    %146 = vector.broadcast %123 : vector<1x160xf32> to vector<10x160xf32>
    %147 = arith.mulf %145, %146 : vector<10x160xf32>
    %148 = vector.broadcast %124 : vector<1x160xf32> to vector<10x160xf32>
    %149 = arith.addf %147, %148 : vector<10x160xf32>
    %c0_144 = arith.constant 0 : index
    %c0_145 = arith.constant 0 : index
    %c0_146 = arith.constant 0 : index
    %150 = vector.load %arg20[%c0_144, %c0_145, %c0_146] : memref<1x12x192xf32, #tpu.memory_space<vmem>>, vector<1x10x192xf32>
    %151 = vector.shape_cast %150 : vector<1x10x192xf32> to vector<10x192xf32>
    %c0_147 = arith.constant 0 : index
    %c0_148 = arith.constant 0 : index
    %c0_149 = arith.constant 0 : index
    %152 = vector.load %arg9[%c0_147, %c0_148, %c0_149] : memref<3x192x160xf32, #tpu.memory_space<vmem>>, vector<1x192x160xf32>
    %153 = vector.shape_cast %152 : vector<1x192x160xf32> to vector<192x160xf32>
    %cst_150 = arith.constant dense<0.000000e+00> : vector<10x160xf32>
    %154 = tpu.matmul %151, %153, %cst_150 {dimension_numbers = #tpu.dot_dimension_numbers<[1], [0], [0], [1], [0, 0, 1, 1], [], []>} : vector<10x192xf32>, vector<192x160xf32>, vector<10x160xf32> -> vector<10x160xf32>
    %c0_151 = arith.constant 0 : index
    %c1_152 = arith.constant 1 : index
    %c0_153 = arith.constant 0 : index
    %155 = vector.load %arg20[%c0_151, %c1_152, %c0_153] : memref<1x12x192xf32, #tpu.memory_space<vmem>>, vector<1x10x192xf32>
    %156 = vector.shape_cast %155 : vector<1x10x192xf32> to vector<10x192xf32>
    %c1_154 = arith.constant 1 : index
    %c0_155 = arith.constant 0 : index
    %c0_156 = arith.constant 0 : index
    %157 = vector.load %arg9[%c1_154, %c0_155, %c0_156] : memref<3x192x160xf32, #tpu.memory_space<vmem>>, vector<1x192x160xf32>
    %158 = vector.shape_cast %157 : vector<1x192x160xf32> to vector<192x160xf32>
    %cst_157 = arith.constant dense<0.000000e+00> : vector<10x160xf32>
    %159 = tpu.matmul %156, %158, %cst_157 {dimension_numbers = #tpu.dot_dimension_numbers<[1], [0], [0], [1], [0, 0, 1, 1], [], []>} : vector<10x192xf32>, vector<192x160xf32>, vector<10x160xf32> -> vector<10x160xf32>
    %160 = arith.addf %154, %159 : vector<10x160xf32>
    %c0_158 = arith.constant 0 : index
    %c2_159 = arith.constant 2 : index
    %c0_160 = arith.constant 0 : index
    %161 = vector.load %arg20[%c0_158, %c2_159, %c0_160] : memref<1x12x192xf32, #tpu.memory_space<vmem>>, vector<1x10x192xf32>
    %162 = vector.shape_cast %161 : vector<1x10x192xf32> to vector<10x192xf32>
    %c2_161 = arith.constant 2 : index
    %c0_162 = arith.constant 0 : index
    %c0_163 = arith.constant 0 : index
    %163 = vector.load %arg9[%c2_161, %c0_162, %c0_163] : memref<3x192x160xf32, #tpu.memory_space<vmem>>, vector<1x192x160xf32>
    %164 = vector.shape_cast %163 : vector<1x192x160xf32> to vector<192x160xf32>
    %cst_164 = arith.constant dense<0.000000e+00> : vector<10x160xf32>
    %165 = tpu.matmul %162, %164, %cst_164 {dimension_numbers = #tpu.dot_dimension_numbers<[1], [0], [0], [1], [0, 0, 1, 1], [], []>} : vector<10x192xf32>, vector<192x160xf32>, vector<10x160xf32> -> vector<10x160xf32>
    %166 = arith.addf %160, %165 : vector<10x160xf32>
    %167 = vector.broadcast %122 : vector<1x160xf32> to vector<10x160xf32>
    %168 = arith.addf %166, %167 : vector<10x160xf32>
    %cst_165 = arith.constant 0.000000e+00 : f32
    %169 = vector.broadcast %cst_165 : f32 to vector<10x160xf32>
    %170 = arith.maximumf %168, %169 : vector<10x160xf32>
    %171 = vector.broadcast %123 : vector<1x160xf32> to vector<10x160xf32>
    %172 = arith.mulf %170, %171 : vector<10x160xf32>
    %173 = vector.broadcast %124 : vector<1x160xf32> to vector<10x160xf32>
    %174 = arith.addf %172, %173 : vector<10x160xf32>
    %175 = arith.maximumf %149, %174 : vector<10x160xf32>
    %176 = vector.shape_cast %175 : vector<10x160xf32> to vector<5x2x160xf32>
    %cst_166 = arith.constant dense<0xFF800000> : vector<5x160xf32>
    %177 = vector.multi_reduction <maximumf>, %176, %cst_166 [1] : vector<5x2x160xf32> to vector<5x160xf32>
    %178 = vector.shape_cast %177 : vector<5x160xf32> to vector<1x5x160xf32>
    %c0_167 = arith.constant 0 : index
    %c0_168 = arith.constant 0 : index
    %c0_169 = arith.constant 0 : index
    %179 = vector.load %arg17[%c0_167, %c0_168, %c0_169] : memref<1x5x160xf32, #tpu.memory_space<vmem>>, vector<1x5x160xf32>
    tpu.vector_store %arg17[%c0_167, %c0_168, %c0_169], %178 {strides = array<i32>} : memref<1x5x160xf32, #tpu.memory_space<vmem>>, vector<1x5x160xf32>,
    %180 = vector.extract_strided_slice %178 {offsets = [0, 0, 0], sizes = [1, 1, 160], strides = [1, 1, 1]} : vector<1x5x160xf32> to vector<1x1x160xf32>
    %181 = vector.shape_cast %180 : vector<1x1x160xf32> to vector<1x160xf32>
    %c0_170 = arith.constant 0 : index
    %c0_171 = arith.constant 0 : index
    %c0_172 = arith.constant 0 : index
    %182 = vector.load %arg11[%c0_170, %c0_171, %c0_172] : memref<5x160x128xf32, #tpu.memory_space<vmem>>, vector<1x160x128xf32>
    %183 = vector.shape_cast %182 : vector<1x160x128xf32> to vector<160x128xf32>
    %cst_173 = arith.constant dense<0.000000e+00> : vector<1x128xf32>
    %184 = tpu.matmul %181, %183, %cst_173 {dimension_numbers = #tpu.dot_dimension_numbers<[1], [0], [0], [1], [0, 0, 1, 1], [], []>} : vector<1x160xf32>, vector<160x128xf32>, vector<1x128xf32> -> vector<1x128xf32>
    %185 = vector.extract_strided_slice %178 {offsets = [0, 1, 0], sizes = [1, 1, 160], strides = [1, 1, 1]} : vector<1x5x160xf32> to vector<1x1x160xf32>
    %186 = vector.shape_cast %185 : vector<1x1x160xf32> to vector<1x160xf32>
    %c1_174 = arith.constant 1 : index
    %c0_175 = arith.constant 0 : index
    %c0_176 = arith.constant 0 : index
    %187 = vector.load %arg11[%c1_174, %c0_175, %c0_176] : memref<5x160x128xf32, #tpu.memory_space<vmem>>, vector<1x160x128xf32>
    %188 = vector.shape_cast %187 : vector<1x160x128xf32> to vector<160x128xf32>
    %cst_177 = arith.constant dense<0.000000e+00> : vector<1x128xf32>
    %189 = tpu.matmul %186, %188, %cst_177 {dimension_numbers = #tpu.dot_dimension_numbers<[1], [0], [0], [1], [0, 0, 1, 1], [], []>} : vector<1x160xf32>, vector<160x128xf32>, vector<1x128xf32> -> vector<1x128xf32>
    %190 = arith.addf %184, %189 : vector<1x128xf32>
    %191 = vector.extract_strided_slice %178 {offsets = [0, 2, 0], sizes = [1, 1, 160], strides = [1, 1, 1]} : vector<1x5x160xf32> to vector<1x1x160xf32>
    %192 = vector.shape_cast %191 : vector<1x1x160xf32> to vector<1x160xf32>
    %c2_178 = arith.constant 2 : index
    %c0_179 = arith.constant 0 : index
    %c0_180 = arith.constant 0 : index
    %193 = vector.load %arg11[%c2_178, %c0_179, %c0_180] : memref<5x160x128xf32, #tpu.memory_space<vmem>>, vector<1x160x128xf32>
    %194 = vector.shape_cast %193 : vector<1x160x128xf32> to vector<160x128xf32>
    %cst_181 = arith.constant dense<0.000000e+00> : vector<1x128xf32>
    %195 = tpu.matmul %192, %194, %cst_181 {dimension_numbers = #tpu.dot_dimension_numbers<[1], [0], [0], [1], [0, 0, 1, 1], [], []>} : vector<1x160xf32>, vector<160x128xf32>, vector<1x128xf32> -> vector<1x128xf32>
    %196 = arith.addf %190, %195 : vector<1x128xf32>
    %197 = vector.extract_strided_slice %178 {offsets = [0, 3, 0], sizes = [1, 1, 160], strides = [1, 1, 1]} : vector<1x5x160xf32> to vector<1x1x160xf32>
    %198 = vector.shape_cast %197 : vector<1x1x160xf32> to vector<1x160xf32>
    %c3 = arith.constant 3 : index
    %c0_182 = arith.constant 0 : index
    %c0_183 = arith.constant 0 : index
    %199 = vector.load %arg11[%c3, %c0_182, %c0_183] : memref<5x160x128xf32, #tpu.memory_space<vmem>>, vector<1x160x128xf32>
    %200 = vector.shape_cast %199 : vector<1x160x128xf32> to vector<160x128xf32>
    %cst_184 = arith.constant dense<0.000000e+00> : vector<1x128xf32>
    %201 = tpu.matmul %198, %200, %cst_184 {dimension_numbers = #tpu.dot_dimension_numbers<[1], [0], [0], [1], [0, 0, 1, 1], [], []>} : vector<1x160xf32>, vector<160x128xf32>, vector<1x128xf32> -> vector<1x128xf32>
    %202 = arith.addf %196, %201 : vector<1x128xf32>
    %203 = vector.extract_strided_slice %178 {offsets = [0, 4, 0], sizes = [1, 1, 160], strides = [1, 1, 1]} : vector<1x5x160xf32> to vector<1x1x160xf32>
    %204 = vector.shape_cast %203 : vector<1x1x160xf32> to vector<1x160xf32>
    %c4 = arith.constant 4 : index
    %c0_185 = arith.constant 0 : index
    %c0_186 = arith.constant 0 : index
    %205 = vector.load %arg11[%c4, %c0_185, %c0_186] : memref<5x160x128xf32, #tpu.memory_space<vmem>>, vector<1x160x128xf32>
    %206 = vector.shape_cast %205 : vector<1x160x128xf32> to vector<160x128xf32>
    %cst_187 = arith.constant dense<0.000000e+00> : vector<1x128xf32>
    %207 = tpu.matmul %204, %206, %cst_187 {dimension_numbers = #tpu.dot_dimension_numbers<[1], [0], [0], [1], [0, 0, 1, 1], [], []>} : vector<1x160xf32>, vector<160x128xf32>, vector<1x128xf32> -> vector<1x128xf32>
    %208 = arith.addf %202, %207 : vector<1x128xf32>
    %c0_188 = arith.constant 0 : index
    %c0_189 = arith.constant 0 : index
    %209 = vector.load %arg12[%c0_188, %c0_189] : memref<1x128xf32, #tpu.memory_space<vmem>>, vector<1x128xf32>
    %210 = arith.addf %208, %209 : vector<1x128xf32>
    %211 = arith.negf %210 : vector<1x128xf32>
    %212 = math.exp %211 : vector<1x128xf32>
    %cst_190 = arith.constant 1.000000e+00 : f32
    %213 = vector.broadcast %cst_190 : f32 to vector<1x128xf32>
    %214 = arith.addf %213, %212 : vector<1x128xf32>
    %215 = arith.divf %213, %214 : vector<1x128xf32>
    %c0_191 = arith.constant 0 : index
    %c0_192 = arith.constant 0 : index
    %216 = vector.load %arg13[%c0_191, %c0_192] : memref<128x32xf32, #tpu.memory_space<vmem>>, vector<128x32xf32>
    %cst_193 = arith.constant dense<0.000000e+00> : vector<1x32xf32>
    %217 = tpu.matmul %215, %216, %cst_193 {dimension_numbers = #tpu.dot_dimension_numbers<[1], [0], [0], [1], [0, 0, 1, 1], [], []>} : vector<1x128xf32>, vector<128x32xf32>, vector<1x32xf32> -> vector<1x32xf32>
    %c0_194 = arith.constant 0 : index
    %c0_195 = arith.constant 0 : index
    %218 = vector.load %arg14[%c0_194, %c0_195] : memref<1x32xf32, #tpu.memory_space<vmem>>, vector<1x32xf32>
    %219 = arith.addf %217, %218 : vector<1x32xf32>
    %220 = arith.negf %219 : vector<1x32xf32>
    %221 = math.exp %220 : vector<1x32xf32>
    %cst_196 = arith.constant 1.000000e+00 : f32
    %222 = vector.broadcast %cst_196 : f32 to vector<1x32xf32>
    %223 = arith.addf %222, %221 : vector<1x32xf32>
    %224 = arith.divf %222, %223 : vector<1x32xf32>
    %c0_197 = arith.constant 0 : index
    %c0_198 = arith.constant 0 : index
    %225 = vector.load %arg15[%c0_197, %c0_198] : memref<32x128xf32, #tpu.memory_space<vmem>>, vector<32x128xf32>
    %cst_199 = arith.constant dense<0.000000e+00> : vector<1x128xf32>
    %226 = tpu.matmul %224, %225, %cst_199 {dimension_numbers = #tpu.dot_dimension_numbers<[1], [0], [0], [1], [0, 0, 1, 1], [], []>} : vector<1x32xf32>, vector<32x128xf32>, vector<1x128xf32> -> vector<1x128xf32>
    %c0_200 = arith.constant 0 : index
    %c0_201 = arith.constant 0 : index
    %227 = vector.load %arg16[%c0_200, %c0_201] : memref<1x128xf32, #tpu.memory_space<vmem>>, vector<1x128xf32>
    %228 = arith.addf %226, %227 : vector<1x128xf32>
    %cst_202 = arith.constant 0.000000e+00 : f32
    %229 = vector.broadcast %cst_202 : f32 to vector<1x128xf32>
    %230 = arith.maximumf %228, %229 : vector<1x128xf32>
    %231 = vector.shape_cast %230 : vector<1x128xf32> to vector<1x1x128xf32>
    %c0_203 = arith.constant 0 : index
    %c0_204 = arith.constant 0 : index
    %c0_205 = arith.constant 0 : index
    %232 = vector.load %arg18[%c0_203, %c0_204, %c0_205] : memref<1x1x128xf32, #tpu.memory_space<vmem>>, vector<1x1x128xf32>
    tpu.vector_store %arg18[%c0_203, %c0_204, %c0_205], %231 {strides = array<i32>} : memref<1x1x128xf32, #tpu.memory_space<vmem>>, vector<1x1x128xf32>,
    return
  }
  func.func @transform_0(%arg0: i32) -> (i32, i32, i32) {
    %c0_i32 = arith.constant 0 : i32
    %c0_i32_0 = arith.constant 0 : i32
    %c0_i32_1 = arith.constant 0 : i32
    return %arg0, %c0_i32, %c0_i32_0 : i32, i32, i32
  }
  func.func @transform_1(%arg0: i32) -> (i32, i32, i32) {
    %c0_i32 = arith.constant 0 : i32
    %c0_i32_0 = arith.constant 0 : i32
    %c0_i32_1 = arith.constant 0 : i32
    %c0_i32_2 = arith.constant 0 : i32
    return %c0_i32, %c0_i32_0, %c0_i32_1 : i32, i32, i32
  }
  func.func @transform_2(%arg0: i32) -> (i32, i32, i32) {
    %c0_i32 = arith.constant 0 : i32
    %c0_i32_0 = arith.constant 0 : i32
    %c0_i32_1 = arith.constant 0 : i32
    %c0_i32_2 = arith.constant 0 : i32
    return %c0_i32, %c0_i32_0, %c0_i32_1 : i32, i32, i32
  }
  func.func @transform_3(%arg0: i32) -> (i32, i32) {
    %c0_i32 = arith.constant 0 : i32
    %c0_i32_0 = arith.constant 0 : i32
    %c0_i32_1 = arith.constant 0 : i32
    return %c0_i32, %c0_i32_0 : i32, i32
  }
  func.func @transform_4(%arg0: i32) -> (i32, i32, i32) {
    %c0_i32 = arith.constant 0 : i32
    %c0_i32_0 = arith.constant 0 : i32
    %c0_i32_1 = arith.constant 0 : i32
    %c0_i32_2 = arith.constant 0 : i32
    return %c0_i32, %c0_i32_0, %c0_i32_1 : i32, i32, i32
  }
  func.func @transform_5(%arg0: i32) -> (i32, i32, i32) {
    %c0_i32 = arith.constant 0 : i32
    %c0_i32_0 = arith.constant 0 : i32
    %c0_i32_1 = arith.constant 0 : i32
    %c0_i32_2 = arith.constant 0 : i32
    return %c0_i32, %c0_i32_0, %c0_i32_1 : i32, i32, i32
  }
  func.func @transform_6(%arg0: i32) -> (i32, i32) {
    %c0_i32 = arith.constant 0 : i32
    %c0_i32_0 = arith.constant 0 : i32
    %c0_i32_1 = arith.constant 0 : i32
    return %c0_i32, %c0_i32_0 : i32, i32
  }
  func.func @transform_7(%arg0: i32) -> (i32, i32, i32) {
    %c0_i32 = arith.constant 0 : i32
    %c0_i32_0 = arith.constant 0 : i32
    %c0_i32_1 = arith.constant 0 : i32
    %c0_i32_2 = arith.constant 0 : i32
    return %c0_i32, %c0_i32_0, %c0_i32_1 : i32, i32, i32
  }
  func.func @transform_8(%arg0: i32) -> (i32, i32, i32) {
    %c0_i32 = arith.constant 0 : i32
    %c0_i32_0 = arith.constant 0 : i32
    %c0_i32_1 = arith.constant 0 : i32
    %c0_i32_2 = arith.constant 0 : i32
    return %c0_i32, %c0_i32_0, %c0_i32_1 : i32, i32, i32
  }
  func.func @transform_9(%arg0: i32) -> (i32, i32) {
    %c0_i32 = arith.constant 0 : i32
    %c0_i32_0 = arith.constant 0 : i32
    %c0_i32_1 = arith.constant 0 : i32
    return %c0_i32, %c0_i32_0 : i32, i32
  }
  func.func @transform_10(%arg0: i32) -> (i32, i32, i32) {
    %c0_i32 = arith.constant 0 : i32
    %c0_i32_0 = arith.constant 0 : i32
    %c0_i32_1 = arith.constant 0 : i32
    %c0_i32_2 = arith.constant 0 : i32
    return %c0_i32, %c0_i32_0, %c0_i32_1 : i32, i32, i32
  }
  func.func @transform_11(%arg0: i32) -> (i32, i32) {
    %c0_i32 = arith.constant 0 : i32
    %c0_i32_0 = arith.constant 0 : i32
    %c0_i32_1 = arith.constant 0 : i32
    return %c0_i32, %c0_i32_0 : i32, i32
  }
  func.func @transform_12(%arg0: i32) -> (i32, i32) {
    %c0_i32 = arith.constant 0 : i32
    %c0_i32_0 = arith.constant 0 : i32
    %c0_i32_1 = arith.constant 0 : i32
    return %c0_i32, %c0_i32_0 : i32, i32
  }
  func.func @transform_13(%arg0: i32) -> (i32, i32) {
    %c0_i32 = arith.constant 0 : i32
    %c0_i32_0 = arith.constant 0 : i32
    %c0_i32_1 = arith.constant 0 : i32
    return %c0_i32, %c0_i32_0 : i32, i32
  }
  func.func @transform_14(%arg0: i32) -> (i32, i32) {
    %c0_i32 = arith.constant 0 : i32
    %c0_i32_0 = arith.constant 0 : i32
    %c0_i32_1 = arith.constant 0 : i32
    return %c0_i32, %c0_i32_0 : i32, i32
  }
  func.func @transform_15(%arg0: i32) -> (i32, i32) {
    %c0_i32 = arith.constant 0 : i32
    %c0_i32_0 = arith.constant 0 : i32
    %c0_i32_1 = arith.constant 0 : i32
    return %c0_i32, %c0_i32_0 : i32, i32
  }
  func.func @transform_16(%arg0: i32) -> (i32, i32, i32) {
    %c0_i32 = arith.constant 0 : i32
    %c0_i32_0 = arith.constant 0 : i32
    %c0_i32_1 = arith.constant 0 : i32
    return %arg0, %c0_i32, %c0_i32_0 : i32, i32, i32
  }
  func.func @transform_17(%arg0: i32) -> (i32, i32, i32) {
    %c0_i32 = arith.constant 0 : i32
    %c0_i32_0 = arith.constant 0 : i32
    %c0_i32_1 = arith.constant 0 : i32
    return %arg0, %c0_i32, %c0_i32_0 : i32, i32, i32
  }
}

</mosaic_0001>

<llo_original>
// kernel: _lambda_.1
$region0: #{_lambda_.1}
  #allocation0 [shape = 'u32[]', space=smem, size = 0x4, offset = 0x4, fixed_abs, tag = 'smem constant byte address 0x4 - core index']
  #allocation1 [shape = 'u32[144,128]{1,0:T(1,128)}', space=vmem, size = 0x12000, scoped, tag = 'internal scratch']
  #allocation2 [shape = 'f32[1,22,176]{2,1,0:T(8,128)}', space=vmem, size = 0x6000, scoped, tag = 'scratch operand']
  #allocation3 [shape = 'f32[1,12,192]{2,1,0:T(8,128)}', space=vmem, size = 0x4000, scoped, tag = 'scratch operand']
  %s0 = inlined_call_operand.vmem [shape: f32[2,42,126], index: 0, kind: input, shape index: {}]
  %s1 = inlined_call_operand.vmem [shape: f32[3,126,176], index: 1, kind: input, shape index: {}]
  %s2 = inlined_call_operand.vmem [shape: f32[3,126,176], index: 2, kind: input, shape index: {}]
  %s3 = inlined_call_operand.vmem [shape: f32[3,176], index: 3, kind: input, shape index: {}]
  %s4 = inlined_call_operand.vmem [shape: f32[3,176,192], index: 4, kind: input, shape index: {}]
  %s5 = inlined_call_operand.vmem [shape: f32[3,176,192], index: 5, kind: input, shape index: {}]
  %s6 = inlined_call_operand.vmem [shape: f32[3,192], index: 6, kind: input, shape index: {}]
  %s7 = inlined_call_operand.vmem [shape: f32[3,192,160], index: 7, kind: input, shape index: {}]
  %s8 = inlined_call_operand.vmem [shape: f32[3,192,160], index: 8, kind: input, shape index: {}]
  %s9 = inlined_call_operand.vmem [shape: f32[3,160], index: 9, kind: input, shape index: {}]
  %s10 = inlined_call_operand.vmem [shape: f32[5,160,128], index: 10, kind: input, shape index: {}]
  %s11 = inlined_call_operand.vmem [shape: f32[1,128], index: 11, kind: input, shape index: {}]
  %s12 = inlined_call_operand.vmem [shape: f32[128,32], index: 12, kind: input, shape index: {}]
  %s13 = inlined_call_operand.vmem [shape: f32[1,32], index: 13, kind: input, shape index: {}]
  %s14 = inlined_call_operand.vmem [shape: f32[32,128], index: 14, kind: input, shape index: {}]
  %s15 = inlined_call_operand.vmem [shape: f32[1,128], index: 15, kind: input, shape index: {}]
  %s16 = inlined_call_operand.vmem [shape: f32[2,5,160], index: 16, kind: output, shape index: {0}]
  %s17 = inlined_call_operand.hbm [shape: f32[2,1,128], index: 17, kind: output, shape index: {1}]
  %18 = xla_tuple %s16, %s17
  %s19 = sld [smem:[#allocation0]]
  $region105: #{_lambda_.1} parent=0
    _
  %s21 = ssub.s32 1, %s19
  %s22 = scalar_select 0, %s21, %s19
  $region1: #{_lambda_.1} parent=0
    #allocation4 [shape = 'u8[1024]{0}', space=vmem, size = 0x400, scoped, tag = 'output window, operand 1']
    #allocation5 [shape = 's32[2]{0}', space=sflag, size = 0x8, scoped, tag = 'scoped memory for _lambda_.1']
    %23 = vsyncpa [#allocation5], 0
    %s24 = scalar_lea.sflag [#allocation5], 1
    %25 = vsyncpa %s24, 0
    loop: start=0, step=1, limit=4
    $region2: #{_lambda_.1} parent=1 // loop_pre_header
      _
    $region3: #{_lambda_.1} parent=1 // loop_header
      %s27 = sphi 0, %s31
      %p28 = scmp.ge.s32.totalorder %s27, 4
      %s37 = sphi 0, %s39
      %s40 = sphi 0, %s37
      %s41 = sphi 0, %s40
      %s57 = sphi 0, %s41
      %s61 = sphi 0, %s61
      %s63 = sphi 0, %s61
      %s64 = sphi 0, %s63
      %s78 = sphi 0, %s64
      %s82 = sphi 0, %s82
      %s84 = sphi 0, %s82
      %s85 = sphi 0, %s84
      %s99 = sphi 0, %s85
      %s103 = sphi 0, %s103
      %s105 = sphi 0, %s103
      %s106 = sphi 0, %s105
      %s120 = sphi 0, %s106
      %s124 = sphi 0, %s124
      %s126 = sphi 0, %s124
      %s127 = sphi 0, %s126
      %s141 = sphi 0, %s127
      %s145 = sphi 0, %s145
      %s147 = sphi 0, %s145
      %s148 = sphi 0, %s147
      %s162 = sphi 0, %s148
      %s166 = sphi 0, %s166
      %s168 = sphi 0, %s166
      %s169 = sphi 0, %s168
      %s183 = sphi 0, %s169
      %s187 = sphi 0, %s187
      %s189 = sphi 0, %s187
      %s190 = sphi 0, %s189
      %s204 = sphi 0, %s190
      %s208 = sphi 0, %s208
      %s210 = sphi 0, %s208
      %s211 = sphi 0, %s210
      %s225 = sphi 0, %s211
      %s229 = sphi 0, %s229
      %s231 = sphi 0, %s229
      %s232 = sphi 0, %s231
      %s246 = sphi 0, %s232
      %s250 = sphi 0, %s250
      %s252 = sphi 0, %s250
      %s253 = sphi 0, %s252
      %s267 = sphi 0, %s253
      %s271 = sphi 0, %s271
      %s273 = sphi 0, %s271
      %s274 = sphi 0, %s273
      %s288 = sphi 0, %s274
      %s292 = sphi 0, %s292
      %s294 = sphi 0, %s292
      %s295 = sphi 0, %s294
      %s309 = sphi 0, %s295
      %s313 = sphi 0, %s313
      %s315 = sphi 0, %s313
      %s316 = sphi 0, %s315
      %s330 = sphi 0, %s316
      %s334 = sphi 0, %s334
      %s336 = sphi 0, %s334
      %s337 = sphi 0, %s336
      %s351 = sphi 0, %s337
      %s355 = sphi 0, %s355
      %s357 = sphi 0, %s355
      %s358 = sphi 0, %s357
      %s372 = sphi 0, %s358
      %s378 = sphi 0, %s380
      %s381 = sphi 0, %s378
      %s382 = sphi 0, %s381
      %s398 = sphi 0, %s382
      %s404 = sphi 0, %s406
      %s407 = sphi 0, %s404
      %s408 = sphi 0, %s407
      %s424 = sphi 0, %s408
    $region4: #{_lambda_.1} parent=1 // loop_header_branch
      %30 = sbr.rel (%p28) target = $region8
    $region5: #{_lambda_.1} parent=1 // loop_body
      %s32 = ssub.s32 %s27, 1
      %s33 = ssub.s32 %s27, 2
      %s34 = sadd.s32 %s27, 1
      %s35 = ssub.s32 %s27, %s34
      %p36 = scmp.eq.s32.totalorder %s35, 0
      %s38 = sadd.s32 %s37, 1
      %s39 = scalar_select %p36, %s37, %s38
      %p42 = pneg %p36
      %p43 = scmp.eq.s32.totalorder %s27, 1
      %p44 = por %p42, %p43
      %p45 = scmp.ne.s32.totalorder %s37, %s40
      %p46 = scmp.eq.s32.totalorder %s27, 0
      %p47 = por %p45, %p46
      %p48 = scmp.ne.s32.totalorder %s37, %s40
      %p49 = scmp.eq.s32.totalorder %s32, 1
      %p50 = por %p48, %p49
      %p51 = scmp.ne.s32.totalorder %s40, %s41
      %p52 = scmp.eq.s32.totalorder %s32, 0
      %p53 = por %p51, %p52
      %p54 = scmp.ne.s32.totalorder %s40, %s41
      %p55 = scmp.eq.s32.totalorder %s33, 1
      %p56 = por %p54, %p55
      %p58 = scmp.ne.s32.totalorder %s41, %s57
      %p59 = scmp.eq.s32.totalorder %s33, 0
      %p60 = por %p58, %p59
      %s62 = sadd.s32 %s61, 1
      %p65 = scmp.eq.s32.totalorder %s27, 1
      %p66 = scmp.ne.s32.totalorder %s61, %s63
      %p67 = scmp.eq.s32.totalorder %s27, 0
      %p68 = por %p66, %p67
      %p69 = scmp.ne.s32.totalorder %s61, %s63
      %p70 = scmp.eq.s32.totalorder %s32, 1
      %p71 = por %p69, %p70
      %p72 = scmp.ne.s32.totalorder %s63, %s64
      %p73 = scmp.eq.s32.totalorder %s32, 0
      %p74 = por %p72, %p73
      %p75 = scmp.ne.s32.totalorder %s63, %s64
      %p76 = scmp.eq.s32.totalorder %s33, 1
      %p77 = por %p75, %p76
      %p79 = scmp.ne.s32.totalorder %s64, %s78
      %p80 = scmp.eq.s32.totalorder %s33, 0
      %p81 = por %p79, %p80
      %s83 = sadd.s32 %s82, 1
      %p86 = scmp.eq.s32.totalorder %s27, 1
      %p87 = scmp.ne.s32.totalorder %s82, %s84
      %p88 = scmp.eq.s32.totalorder %s27, 0
      %p89 = por %p87, %p88
      %p90 = scmp.ne.s32.totalorder %s82, %s84
      %p91 = scmp.eq.s32.totalorder %s32, 1
      %p92 = por %p90, %p91
      %p93 = scmp.ne.s32.totalorder %s84, %s85
      %p94 = scmp.eq.s32.totalorder %s32, 0
      %p95 = por %p93, %p94
      %p96 = scmp.ne.s32.totalorder %s84, %s85
      %p97 = scmp.eq.s32.totalorder %s33, 1
      %p98 = por %p96, %p97
      %p100 = scmp.ne.s32.totalorder %s85, %s99
      %p101 = scmp.eq.s32.totalorder %s33, 0
      %p102 = por %p100, %p101
      %s104 = sadd.s32 %s103, 1
      %p107 = scmp.eq.s32.totalorder %s27, 1
      %p108 = scmp.ne.s32.totalorder %s103, %s105
      %p109 = scmp.eq.s32.totalorder %s27, 0
      %p110 = por %p108, %p109
      %p111 = scmp.ne.s32.totalorder %s103, %s105
      %p112 = scmp.eq.s32.totalorder %s32, 1
      %p113 = por %p111, %p112
      %p114 = scmp.ne.s32.totalorder %s105, %s106
      %p115 = scmp.eq.s32.totalorder %s32, 0
      %p116 = por %p114, %p115
      %p117 = scmp.ne.s32.totalorder %s105, %s106
      %p118 = scmp.eq.s32.totalorder %s33, 1
      %p119 = por %p117, %p118
      %p121 = scmp.ne.s32.totalorder %s106, %s120
      %p122 = scmp.eq.s32.totalorder %s33, 0
      %p123 = por %p121, %p122
      %s125 = sadd.s32 %s124, 1
      %p128 = scmp.eq.s32.totalorder %s27, 1
      %p129 = scmp.ne.s32.totalorder %s124, %s126
      %p130 = scmp.eq.s32.totalorder %s27, 0
      %p131 = por %p129, %p130
      %p132 = scmp.ne.s32.totalorder %s124, %s126
      %p133 = scmp.eq.s32.totalorder %s32, 1
      %p134 = por %p132, %p133
      %p135 = scmp.ne.s32.totalorder %s126, %s127
      %p136 = scmp.eq.s32.totalorder %s32, 0
      %p137 = por %p135, %p136
      %p138 = scmp.ne.s32.totalorder %s126, %s127
      %p139 = scmp.eq.s32.totalorder %s33, 1
      %p140 = por %p138, %p139
      %p142 = scmp.ne.s32.totalorder %s127, %s141
      %p143 = scmp.eq.s32.totalorder %s33, 0
      %p144 = por %p142, %p143
      %s146 = sadd.s32 %s145, 1
      %p149 = scmp.eq.s32.totalorder %s27, 1
      %p150 = scmp.ne.s32.totalorder %s145, %s147
      %p151 = scmp.eq.s32.totalorder %s27, 0
      %p152 = por %p150, %p151
      %p153 = scmp.ne.s32.totalorder %s145, %s147
      %p154 = scmp.eq.s32.totalorder %s32, 1
      %p155 = por %p153, %p154
      %p156 = scmp.ne.s32.totalorder %s147, %s148
      %p157 = scmp.eq.s32.totalorder %s32, 0
      %p158 = por %p156, %p157
      %p159 = scmp.ne.s32.totalorder %s147, %s148
      %p160 = scmp.eq.s32.totalorder %s33, 1
      %p161 = por %p159, %p160
      %p163 = scmp.ne.s32.totalorder %s148, %s162
      %p164 = scmp.eq.s32.totalorder %s33, 0
      %p165 = por %p163, %p164
      %s167 = sadd.s32 %s166, 1
      %p170 = scmp.eq.s32.totalorder %s27, 1
      %p171 = scmp.ne.s32.totalorder %s166, %s168
      %p172 = scmp.eq.s32.totalorder %s27, 0
      %p173 = por %p171, %p172
      %p174 = scmp.ne.s32.totalorder %s166, %s168
      %p175 = scmp.eq.s32.totalorder %s32, 1
      %p176 = por %p174, %p175
      %p177 = scmp.ne.s32.totalorder %s168, %s169
      %p178 = scmp.eq.s32.totalorder %s32, 0
      %p179 = por %p177, %p178
      %p180 = scmp.ne.s32.totalorder %s168, %s169
      %p181 = scmp.eq.s32.totalorder %s33, 1
      %p182 = por %p180, %p181
      %p184 = scmp.ne.s32.totalorder %s169, %s183
      %p185 = scmp.eq.s32.totalorder %s33, 0
      %p186 = por %p184, %p185
      %s188 = sadd.s32 %s187, 1
      %p191 = scmp.eq.s32.totalorder %s27, 1
      %p192 = scmp.ne.s32.totalorder %s187, %s189
      %p193 = scmp.eq.s32.totalorder %s27, 0
      %p194 = por %p192, %p193
      %p195 = scmp.ne.s32.totalorder %s187, %s189
      %p196 = scmp.eq.s32.totalorder %s32, 1
      %p197 = por %p195, %p196
      %p198 = scmp.ne.s32.totalorder %s189, %s190
      %p199 = scmp.eq.s32.totalorder %s32, 0
      %p200 = por %p198, %p199
      %p201 = scmp.ne.s32.totalorder %s189, %s190
      %p202 = scmp.eq.s32.totalorder %s33, 1
      %p203 = por %p201, %p202
      %p205 = scmp.ne.s32.totalorder %s190, %s204
      %p206 = scmp.eq.s32.totalorder %s33, 0
      %p207 = por %p205, %p206
      %s209 = sadd.s32 %s208, 1
      %p212 = scmp.eq.s32.totalorder %s27, 1
      %p213 = scmp.ne.s32.totalorder %s208, %s210
      %p214 = scmp.eq.s32.totalorder %s27, 0
      %p215 = por %p213, %p214
      %p216 = scmp.ne.s32.totalorder %s208, %s210
      %p217 = scmp.eq.s32.totalorder %s32, 1
      %p218 = por %p216, %p217
      %p219 = scmp.ne.s32.totalorder %s210, %s211
      %p220 = scmp.eq.s32.totalorder %s32, 0
      %p221 = por %p219, %p220
      %p222 = scmp.ne.s32.totalorder %s210, %s211
      %p223 = scmp.eq.s32.totalorder %s33, 1
      %p224 = por %p222, %p223
      %p226 = scmp.ne.s32.totalorder %s211, %s225
      %p227 = scmp.eq.s32.totalorder %s33, 0
      %p228 = por %p226, %p227
      %s230 = sadd.s32 %s229, 1
      %p233 = scmp.eq.s32.totalorder %s27, 1
      %p234 = scmp.ne.s32.totalorder %s229, %s231
      %p235 = scmp.eq.s32.totalorder %s27, 0
      %p236 = por %p234, %p235
      %p237 = scmp.ne.s32.totalorder %s229, %s231
      %p238 = scmp.eq.s32.totalorder %s32, 1
      %p239 = por %p237, %p238
      %p240 = scmp.ne.s32.totalorder %s231, %s232
      %p241 = scmp.eq.s32.totalorder %s32, 0
      %p242 = por %p240, %p241
      %p243 = scmp.ne.s32.totalorder %s231, %s232
      %p244 = scmp.eq.s32.totalorder %s33, 1
      %p245 = por %p243, %p244
      %p247 = scmp.ne.s32.totalorder %s232, %s246
      %p248 = scmp.eq.s32.totalorder %s33, 0
      %p249 = por %p247, %p248
      %s251 = sadd.s32 %s250, 1
      %p254 = scmp.eq.s32.totalorder %s27, 1
      %p255 = scmp.ne.s32.totalorder %s250, %s252
      %p256 = scmp.eq.s32.totalorder %s27, 0
      %p257 = por %p255, %p256
      %p258 = scmp.ne.s32.totalorder %s250, %s252
      %p259 = scmp.eq.s32.totalorder %s32, 1
      %p260 = por %p258, %p259
      %p261 = scmp.ne.s32.totalorder %s252, %s253
      %p262 = scmp.eq.s32.totalorder %s32, 0
      %p263 = por %p261, %p262
      %p264 = scmp.ne.s32.totalorder %s252, %s253
      %p265 = scmp.eq.s32.totalorder %s33, 1
      %p266 = por %p264, %p265
      %p268 = scmp.ne.s32.totalorder %s253, %s267
      %p269 = scmp.eq.s32.totalorder %s33, 0
      %p270 = por %p268, %p269
      %s272 = sadd.s32 %s271, 1
      %p275 = scmp.eq.s32.totalorder %s27, 1
      %p276 = scmp.ne.s32.totalorder %s271, %s273
      %p277 = scmp.eq.s32.totalorder %s27, 0
      %p278 = por %p276, %p277
      %p279 = scmp.ne.s32.totalorder %s271, %s273
      %p280 = scmp.eq.s32.totalorder %s32, 1
      %p281 = por %p279, %p280
      %p282 = scmp.ne.s32.totalorder %s273, %s274
      %p283 = scmp.eq.s32.totalorder %s32, 0
      %p284 = por %p282, %p283
      %p285 = scmp.ne.s32.totalorder %s273, %s274
      %p286 = scmp.eq.s32.totalorder %s33, 1
      %p287 = por %p285, %p286
      %p289 = scmp.ne.s32.totalorder %s274, %s288
      %p290 = scmp.eq.s32.totalorder %s33, 0
      %p291 = por %p289, %p290
      %s293 = sadd.s32 %s292, 1
      %p296 = scmp.eq.s32.totalorder %s27, 1
      %p297 = scmp.ne.s32.totalorder %s292, %s294
      %p298 = scmp.eq.s32.totalorder %s27, 0
      %p299 = por %p297, %p298
      %p300 = scmp.ne.s32.totalorder %s292, %s294
      %p301 = scmp.eq.s32.totalorder %s32, 1
      %p302 = por %p300, %p301
      %p303 = scmp.ne.s32.totalorder %s294, %s295
      %p304 = scmp.eq.s32.totalorder %s32, 0
      %p305 = por %p303, %p304
      %p306 = scmp.ne.s32.totalorder %s294, %s295
      %p307 = scmp.eq.s32.totalorder %s33, 1
      %p308 = por %p306, %p307
      %p310 = scmp.ne.s32.totalorder %s295, %s309
      %p311 = scmp.eq.s32.totalorder %s33, 0
      %p312 = por %p310, %p311
      %s314 = sadd.s32 %s313, 1
      %p317 = scmp.eq.s32.totalorder %s27, 1
      %p318 = scmp.ne.s32.totalorder %s313, %s315
      %p319 = scmp.eq.s32.totalorder %s27, 0
      %p320 = por %p318, %p319
      %p321 = scmp.ne.s32.totalorder %s313, %s315
      %p322 = scmp.eq.s32.totalorder %s32, 1
      %p323 = por %p321, %p322
      %p324 = scmp.ne.s32.totalorder %s315, %s316
      %p325 = scmp.eq.s32.totalorder %s32, 0
      %p326 = por %p324, %p325
      %p327 = scmp.ne.s32.totalorder %s315, %s316
      %p328 = scmp.eq.s32.totalorder %s33, 1
      %p329 = por %p327, %p328
      %p331 = scmp.ne.s32.totalorder %s316, %s330
      %p332 = scmp.eq.s32.totalorder %s33, 0
      %p333 = por %p331, %p332
      %s335 = sadd.s32 %s334, 1
      %p338 = scmp.eq.s32.totalorder %s27, 1
      %p339 = scmp.ne.s32.totalorder %s334, %s336
      %p340 = scmp.eq.s32.totalorder %s27, 0
      %p341 = por %p339, %p340
      %p342 = scmp.ne.s32.totalorder %s334, %s336
      %p343 = scmp.eq.s32.totalorder %s32, 1
      %p344 = por %p342, %p343
      %p345 = scmp.ne.s32.totalorder %s336, %s337
      %p346 = scmp.eq.s32.totalorder %s32, 0
      %p347 = por %p345, %p346
      %p348 = scmp.ne.s32.totalorder %s336, %s337
      %p349 = scmp.eq.s32.totalorder %s33, 1
      %p350 = por %p348, %p349
      %p352 = scmp.ne.s32.totalorder %s337, %s351
      %p353 = scmp.eq.s32.totalorder %s33, 0
      %p354 = por %p352, %p353
      %s356 = sadd.s32 %s355, 1
      %p359 = scmp.eq.s32.totalorder %s27, 1
      %p360 = scmp.ne.s32.totalorder %s355, %s357
      %p361 = scmp.eq.s32.totalorder %s27, 0
      %p362 = por %p360, %p361
      %p363 = scmp.ne.s32.totalorder %s355, %s357
      %p364 = scmp.eq.s32.totalorder %s32, 1
      %p365 = por %p363, %p364
      %p366 = scmp.ne.s32.totalorder %s357, %s358
      %p367 = scmp.eq.s32.totalorder %s32, 0
      %p368 = por %p366, %p367
      %p369 = scmp.ne.s32.totalorder %s357, %s358
      %p370 = scmp.eq.s32.totalorder %s33, 1
      %p371 = por %p369, %p370
      %p373 = scmp.ne.s32.totalorder %s358, %s372
      %p374 = scmp.eq.s32.totalorder %s33, 0
      %p375 = por %p373, %p374
      %s376 = ssub.s32 %s27, %s34
      %p377 = scmp.eq.s32.totalorder %s376, 0
      %s379 = sadd.s32 %s378, 1
      %s380 = scalar_select %p377, %s378, %s379
      %p383 = pneg %p377
      %p384 = scmp.eq.s32.totalorder %s27, 1
      %p385 = por %p383, %p384
      %p386 = scmp.ne.s32.totalorder %s378, %s381
      %p387 = scmp.eq.s32.totalorder %s27, 0
      %p388 = por %p386, %p387
      %p389 = scmp.ne.s32.totalorder %s378, %s381
      %p390 = scmp.eq.s32.totalorder %s32, 1
      %p391 = por %p389, %p390
      %p392 = scmp.ne.s32.totalorder %s381, %s382
      %p393 = scmp.eq.s32.totalorder %s32, 0
      %p394 = por %p392, %p393
      %p395 = scmp.ne.s32.totalorder %s381, %s382
      %p396 = scmp.eq.s32.totalorder %s33, 1
      %p397 = por %p395, %p396
      %p399 = scmp.ne.s32.totalorder %s382, %s398
      %p400 = scmp.eq.s32.totalorder %s33, 0
      %p401 = por %p399, %p400
      %s402 = ssub.s32 %s27, %s34
      %p403 = scmp.eq.s32.totalorder %s402, 0
      %s405 = sadd.s32 %s404, 1
      %s406 = scalar_select %p403, %s404, %s405
      %p409 = pneg %p403
      %p410 = scmp.eq.s32.totalorder %s27, 1
      %p411 = por %p409, %p410
      %p412 = scmp.ne.s32.totalorder %s404, %s407
      %p413 = scmp.eq.s32.totalorder %s27, 0
      %p414 = por %p412, %p413
      %p415 = scmp.ne.s32.totalorder %s404, %s407
      %p416 = scmp.eq.s32.totalorder %s32, 1
      %p417 = por %p415, %p416
      %p418 = scmp.ne.s32.totalorder %s407, %s408
      %p419 = scmp.eq.s32.totalorder %s32, 0
      %p420 = por %p418, %p419
      %p421 = scmp.ne.s32.totalorder %s407, %s408
      %p422 = scmp.eq.s32.totalorder %s33, 1
      %p423 = por %p421, %p422
      %p425 = scmp.ne.s32.totalorder %s408, %s424
      %p426 = scmp.eq.s32.totalorder %s33, 0
      %p427 = por %p425, %p426
      %p428 = scmp.le.s32.totalorder 1, %s27
      %p429 = scmp.lt.s32.totalorder %s27, 3
      %p430 = pnand %p428, %p429
      %p431 = pneg %p430
      // Predicated region
      $region9: #{_lambda_.1} parent=5 // pred_check
        _
      $region10: #{_lambda_.1} parent=5 // pred_check_branch
        %433 = sbr.rel (%p430) target = $region12
      $region11: #{_lambda_.1} parent=5 // pred_region
        %s434 = ssub.s32 %s27, 1
        // Predicated region
        $region13: #{_lambda_.1} parent=11 // pred_check
          %p435 = pneg %p74
        $region14: #{_lambda_.1} parent=11 // pred_check_branch
          %437 = sbr.rel (%p435) target = $region16
        $region15: #{_lambda_.1} parent=11 // pred_region
          _
        $region16: #{_lambda_.1} parent=11 // pred_fallthru
          _
        // Predicated region
        $region17: #{_lambda_.1} parent=11 // pred_check
          %p438 = pneg %p95
        $region18: #{_lambda_.1} parent=11 // pred_check_branch
          %440 = sbr.rel (%p438) target = $region20
        $region19: #{_lambda_.1} parent=11 // pred_region
          _
        $region20: #{_lambda_.1} parent=11 // pred_fallthru
          _
        // Predicated region
        $region21: #{_lambda_.1} parent=11 // pred_check
          %p441 = pneg %p116
        $region22: #{_lambda_.1} parent=11 // pred_check_branch
          %443 = sbr.rel (%p441) target = $region24
        $region23: #{_lambda_.1} parent=11 // pred_region
          _
        $region24: #{_lambda_.1} parent=11 // pred_fallthru
          _
        // Predicated region
        $region25: #{_lambda_.1} parent=11 // pred_check
          %p444 = pneg %p137
        $region26: #{_lambda_.1} parent=11 // pred_check_branch
          %446 = sbr.rel (%p444) target = $region28
        $region27: #{_lambda_.1} parent=11 // pred_region
          _
        $region28: #{_lambda_.1} parent=11 // pred_fallthru
          _
        // Predicated region
        $region29: #{_lambda_.1} parent=11 // pred_check
          %p447 = pneg %p158
        $region30: #{_lambda_.1} parent=11 // pred_check_branch
          %449 = sbr.rel (%p447) target = $region32
        $region31: #{_lambda_.1} parent=11 // pred_region
          _
        $region32: #{_lambda_.1} parent=11 // pred_fallthru
          _
        // Predicated region
        $region33: #{_lambda_.1} parent=11 // pred_check
          %p450 = pneg %p179
        $region34: #{_lambda_.1} parent=11 // pred_check_branch
          %452 = sbr.rel (%p450) target = $region36
        $region35: #{_lambda_.1} parent=11 // pred_region
          _
        $region36: #{_lambda_.1} parent=11 // pred_fallthru
          _
        // Predicated region
        $region37: #{_lambda_.1} parent=11 // pred_check
          %p453 = pneg %p200
        $region38: #{_lambda_.1} parent=11 // pred_check_branch
          %455 = sbr.rel (%p453) target = $region40
        $region39: #{_lambda_.1} parent=11 // pred_region
          _
        $region40: #{_lambda_.1} parent=11 // pred_fallthru
          _
        // Predicated region
        $region41: #{_lambda_.1} parent=11 // pred_check
          %p456 = pneg %p221
        $region42: #{_lambda_.1} parent=11 // pred_check_branch
          %458 = sbr.rel (%p456) target = $region44
        $region43: #{_lambda_.1} parent=11 // pred_region
          _
        $region44: #{_lambda_.1} parent=11 // pred_fallthru
          _
        // Predicated region
        $region45: #{_lambda_.1} parent=11 // pred_check
          %p459 = pneg %p242
        $region46: #{_lambda_.1} parent=11 // pred_check_branch
          %461 = sbr.rel (%p459) target = $region48
        $region47: #{_lambda_.1} parent=11 // pred_region
          _
        $region48: #{_lambda_.1} parent=11 // pred_fallthru
          _
        // Predicated region
        $region49: #{_lambda_.1} parent=11 // pred_check
          %p462 = pneg %p263
        $region50: #{_lambda_.1} parent=11 // pred_check_branch
          %464 = sbr.rel (%p462) target = $region52
        $region51: #{_lambda_.1} parent=11 // pred_region
          _
        $region52: #{_lambda_.1} parent=11 // pred_fallthru
          _
        // Predicated region
        $region53: #{_lambda_.1} parent=11 // pred_check
          %p465 = pneg %p284
        $region54: #{_lambda_.1} parent=11 // pred_check_branch
          %467 = sbr.rel (%p465) target = $region56
        $region55: #{_lambda_.1} parent=11 // pred_region
          _
        $region56: #{_lambda_.1} parent=11 // pred_fallthru
          _
        // Predicated region
        $region57: #{_lambda_.1} parent=11 // pred_check
          %p468 = pneg %p305
        $region58: #{_lambda_.1} parent=11 // pred_check_branch
          %470 = sbr.rel (%p468) target = $region60
        $region59: #{_lambda_.1} parent=11 // pred_region
          _
        $region60: #{_lambda_.1} parent=11 // pred_fallthru
          _
        // Predicated region
        $region61: #{_lambda_.1} parent=11 // pred_check
          %p471 = pneg %p326
        $region62: #{_lambda_.1} parent=11 // pred_check_branch
          %473 = sbr.rel (%p471) target = $region64
        $region63: #{_lambda_.1} parent=11 // pred_region
          _
        $region64: #{_lambda_.1} parent=11 // pred_fallthru
          _
        // Predicated region
        $region65: #{_lambda_.1} parent=11 // pred_check
          %p474 = pneg %p347
        $region66: #{_lambda_.1} parent=11 // pred_check_branch
          %476 = sbr.rel (%p474) target = $region68
        $region67: #{_lambda_.1} parent=11 // pred_region
          _
        $region68: #{_lambda_.1} parent=11 // pred_fallthru
          _
        // Predicated region
        $region69: #{_lambda_.1} parent=11 // pred_check
          %p477 = pneg %p368
        $region70: #{_lambda_.1} parent=11 // pred_check_branch
          %479 = sbr.rel (%p477) target = $region72
        $region71: #{_lambda_.1} parent=11 // pred_region
          _
        $region72: #{_lambda_.1} parent=11 // pred_fallthru
          _
      $region12: #{_lambda_.1} parent=5 // pred_fallthru
        _
      %p480 = scmp.lt.s32.totalorder %s27, 2
      // Predicated region
      $region73: #{_lambda_.1} parent=5 // pred_check
        %p481 = pneg %p480
      $region74: #{_lambda_.1} parent=5 // pred_check_branch
        %483 = sbr.rel (%p481) target = $region76
      $region75: #{_lambda_.1} parent=5 // pred_region
        // Predicated region
        $region77: #{_lambda_.1} parent=75 // pred_check
          %p484 = pneg %p47
        $region78: #{_lambda_.1} parent=75 // pred_check_branch
          %486 = sbr.rel (%p484) target = $region80
        $region79: #{_lambda_.1} parent=75 // pred_region
          %p487 = scmp.lt.s32.totalorder %s27, 1
          %s488 = scalar_select %p487, %s27, 1
          %s489 = smul.addr %s488, 6
          %s490 = smul.addr %s489, 8
          %s491 = scalar_lea.vmem %s0, %s490
        $region80: #{_lambda_.1} parent=75 // pred_fallthru
          _
      $region76: #{_lambda_.1} parent=5 // pred_fallthru
        _
      %p492 = scmp.le.s32.totalorder 1, %s27
      %p493 = scmp.lt.s32.totalorder %s27, 3
      %p494 = pnand %p492, %p493
      %p495 = pneg %p494
      // Predicated region
      $region81: #{_lambda_.1} parent=5 // pred_check
        _
      $region82: #{_lambda_.1} parent=5 // pred_check_branch
        %497 = sbr.rel (%p494) target = $region84
      $region83: #{_lambda_.1} parent=5 // pred_region
        %s498 = ssub.s32 %s27, 1
        %p499 = scmp.lt.s32.totalorder %s32, 1
        %s500 = scalar_select %p499, %s32, 1
        %s501 = smul.addr %s500, 6
        %s502 = smul.addr %s501, 8
        %s503 = scalar_lea.vmem %s0, %s502
        %p504 = pneg %p53
        %p505 = pneg %p50
        %p506 = pneg %p74
        %p507 = pneg %p71
        %p508 = pneg %p95
        %p509 = pneg %p92
        %p510 = pneg %p116
        %p511 = pneg %p113
        %p512 = pneg %p137
        %p513 = pneg %p134
        %p514 = pneg %p158
        %p515 = pneg %p155
        %p516 = pneg %p179
        %p517 = pneg %p176
        %p518 = pneg %p200
        %p519 = pneg %p197
        %p520 = pneg %p221
        %p521 = pneg %p218
        %p522 = pneg %p242
        %p523 = pneg %p239
        %p524 = pneg %p263
        %p525 = pneg %p260
        %p526 = pneg %p284
        %p527 = pneg %p281
        %p528 = pneg %p305
        %p529 = pneg %p302
        %p530 = pneg %p326
        %p531 = pneg %p323
        %p532 = pneg %p347
        %p533 = pneg %p344
        %p534 = pneg %p368
        %p535 = pneg %p365
        %p536 = pneg %p394
        %p537 = pneg %p391
        %p538 = scmp.lt.s32.totalorder %s32, 1
        %s539 = scalar_select %p538, %s32, 1
        %s540 = smul.addr %s539, 2
        %s541 = smul.addr %s540, 8
        %s542 = scalar_lea.vmem %s16, %s541
        %p543 = pneg %p420
        %p544 = pneg %p417
        %s545 = sand.u32 %s407, 1
        %s546 = scalar_lea.sflag [#allocation5], %s545
        %s547 = sand.u32 %s407, 1
        %s548 = scalar_lea.vmem [#allocation4], %s547
        %p549 = scmp.lt.s32.totalorder %s32, 1
        %s550 = scalar_select %p549, %s32, 1
        %s551 = smul.addr %s550, 6
        %s552 = smul.addr %s551, 8
        %s553 = scalar_lea.vmem %s0, %s552
        %p554 = scmp.lt.s32.totalorder %s32, 1
        %s555 = scalar_select %p554, %s32, 1
        %s556 = smul.addr %s555, 2
        %s557 = smul.addr %s556, 8
        %s558 = scalar_lea.vmem %s16, %s557
        %v559 = vld [vmem:[%s3] ss:$4 sm:$0x3]
        %s560 = scalar_lea.vmem %s3, 1
        %v561 = vld [vmem:[%s560] ss:$4 sm:$0x3]
        %s562 = scalar_lea.vmem %s3, 2
        %v563 = vld [vmem:[%s562] ss:$4 sm:$0x3]
        %v564 = vld [vmem:[%s553] sm:$0xff]
        %v565 = vld [vmem:[%s553 + $0x8] sm:$0xff]
        %v566 = vld [vmem:[%s553 + $0x10] sm:$0xff]
        %v567 = vld [vmem:[%s553 + $0x18] sm:$0xff]
        %v568 = vld [vmem:[%s553 + $0x20] sm:$0xff]
        %v569 = vld [vmem:[%s1] sm:$0xff]
        %v570 = vld [vmem:[%s1 + $0x8] sm:$0xff]
        %v571 = vld [vmem:[%s1 + $0x10] sm:$0xff]
        %v572 = vld [vmem:[%s1 + $0x18] sm:$0xff]
        %v573 = vld [vmem:[%s1 + $0x20] sm:$0xff]
        %v574 = vld [vmem:[%s1 + $0x28] sm:$0xff]
        %v575 = vld [vmem:[%s1 + $0x30] sm:$0xff]
        %v576 = vld [vmem:[%s1 + $0x38] sm:$0xff]
        %v577 = vld [vmem:[%s1 + $0x40] sm:$0xff]
        %v578 = vld [vmem:[%s1 + $0x48] sm:$0xff]
        %v579 = vld [vmem:[%s1 + $0x50] sm:$0xff]
        %v580 = vld [vmem:[%s1 + $0x58] sm:$0xff]
        %v581 = vld [vmem:[%s1 + $0x60] sm:$0xff]
        %v582 = vld [vmem:[%s1 + $0x68] sm:$0xff]
        %v583 = vld [vmem:[%s1 + $0x70] sm:$0xff]
        %v584 = vld [vmem:[%s1 + $0x78] sm:$0xff]
        %v585 = vld [vmem:[%s1 + $0x80] sm:$0xff]
        %v586 = vld [vmem:[%s1 + $0x88] sm:$0xff]
        %v587 = vld [vmem:[%s1 + $0x90] sm:$0xff]
        %v588 = vld [vmem:[%s1 + $0x98] sm:$0xff]
        %v589 = vld [vmem:[%s1 + $0xa0] sm:$0xff]
        %v590 = vld [vmem:[%s1 + $0xa8] sm:$0xff]
        %v591 = vld [vmem:[%s1 + $0xb0] sm:$0xff]
        %v592 = vld [vmem:[%s1 + $0xb8] sm:$0xff]
        %v593 = vld [vmem:[%s1 + $0xc0] sm:$0xff]
        %v594 = vld [vmem:[%s1 + $0xc8] sm:$0xff]
        %v595 = vld [vmem:[%s1 + $0xd0] sm:$0xff]
        %v596 = vld [vmem:[%s1 + $0xd8] sm:$0xff]
        %v597 = vld [vmem:[%s1 + $0xe0] sm:$0xff]
        %v598 = vld [vmem:[%s1 + $0xe8] sm:$0xff]
        %v599 = vld [vmem:[%s1 + $0xf0] sm:$0x3f]
        %v600 = vld [vmem:[%s1 + $0xf8] sm:$0x3f]
        %v601 = vld [vmem:[%s553 + $0x1] sm:$0xff]
        %v602 = vld [vmem:[%s553 + $0x9] sm:$0xff]
        %v603 = vld [vmem:[%s553 + $0x11] sm:$0xff]
        %v604 = vld [vmem:[%s553 + $0x19] sm:$0xff]
        %v605 = vld [vmem:[%s553 + $0x21] sm:$0xff]
        %s606 = scalar_lea.vmem %s1, 256
        %v607 = vld [vmem:[%s606] sm:$0xff]
        %v608 = vld [vmem:[%s606 + $0x8] sm:$0xff]
        %v609 = vld [vmem:[%s606 + $0x10] sm:$0xff]
        %v610 = vld [vmem:[%s606 + $0x18] sm:$0xff]
        %v611 = vld [vmem:[%s606 + $0x20] sm:$0xff]
        %v612 = vld [vmem:[%s606 + $0x28] sm:$0xff]
        %v613 = vld [vmem:[%s606 + $0x30] sm:$0xff]
        %v614 = vld [vmem:[%s606 + $0x38] sm:$0xff]
        %v615 = vld [vmem:[%s606 + $0x40] sm:$0xff]
        %v616 = vld [vmem:[%s606 + $0x48] sm:$0xff]
        %v617 = vld [vmem:[%s606 + $0x50] sm:$0xff]
        %v618 = vld [vmem:[%s606 + $0x58] sm:$0xff]
        %v619 = vld [vmem:[%s606 + $0x60] sm:$0xff]
        %v620 = vld [vmem:[%s606 + $0x68] sm:$0xff]
        %v621 = vld [vmem:[%s606 + $0x70] sm:$0xff]
        %v622 = vld [vmem:[%s606 + $0x78] sm:$0xff]
        %v623 = vld [vmem:[%s606 + $0x80] sm:$0xff]
        %v624 = vld [vmem:[%s606 + $0x88] sm:$0xff]
        %v625 = vld [vmem:[%s606 + $0x90] sm:$0xff]
        %v626 = vld [vmem:[%s606 + $0x98] sm:$0xff]
        %v627 = vld [vmem:[%s606 + $0xa0] sm:$0xff]
        %v628 = vld [vmem:[%s606 + $0xa8] sm:$0xff]
        %v629 = vld [vmem:[%s606 + $0xb0] sm:$0xff]
        %v630 = vld [vmem:[%s606 + $0xb8] sm:$0xff]
        %v631 = vld [vmem:[%s606 + $0xc0] sm:$0xff]
        %v632 = vld [vmem:[%s606 + $0xc8] sm:$0xff]
        %v633 = vld [vmem:[%s606 + $0xd0] sm:$0xff]
        %v634 = vld [vmem:[%s606 + $0xd8] sm:$0xff]
        %v635 = vld [vmem:[%s606 + $0xe0] sm:$0xff]
        %v636 = vld [vmem:[%s606 + $0xe8] sm:$0xff]
        %v637 = vld [vmem:[%s606 + $0xf0] sm:$0x3f]
        %v638 = vld [vmem:[%s606 + $0xf8] sm:$0x3f]
        %vm639 = vcmask 1031168
        %v641 = vsel %vm639, %v601, 0
        %v644 = vsel %vm639, %v602, 0
        %v647 = vsel %vm639, %v603, 0
        %v650 = vsel %vm639, %v604, 0
        %v653 = vsel %vm639, %v605, 0
        %vm655 = vcmask 1045504
        %v657 = vsel %vm655, %v637, 0
        %v660 = vsel %vm655, %v638, 0
        %662 = vmatprep.subr.mxu0 %v660
        %663 = vmatpush1.msra.mxu0 %v657
        %664 = vmatprep.subr.mxu0 %v636
        %665 = vmatpush1.msra.mxu0 %v635
        %666 = vmatprep.subr.mxu0 %v634
        %667 = vmatpush1.msra.mxu0 %v633
        %668 = vmatprep.subr.mxu0 %v632
        %669 = vmatpush1.msra.mxu0 %v631
        %670 = vmatprep.subr.mxu0 %v630
        %671 = vmatpush1.msra.mxu0 %v629
        %672 = vmatprep.subr.mxu0 %v628
        %673 = vmatpush1.msra.mxu0 %v627
        %674 = vmatprep.subr.mxu0 %v626
        %675 = vmatpush1.msra.mxu0 %v625
        %676 = vmatprep.subr.mxu0 %v624
        %677 = vmatpush1.msra.mxu0 %v623
        %678 = vmatprep.subr.mxu0 %v622
        %679 = vmatpush1.msra.mxu0 %v621
        %680 = vmatprep.subr.mxu0 %v620
        %681 = vmatpush1.msra.mxu0 %v619
        %682 = vmatprep.subr.mxu0 %v618
        %683 = vmatpush1.msra.mxu0 %v617
        %684 = vmatprep.subr.mxu0 %v616
        %685 = vmatpush1.msra.mxu0 %v615
        %686 = vmatprep.subr.mxu0 %v614
        %687 = vmatpush1.msra.mxu0 %v613
        %688 = vmatprep.subr.mxu0 %v612
        %689 = vmatpush1.msra.mxu0 %v611
        %690 = vmatprep.subr.mxu0 %v610
        %691 = vmatpush1.msra.mxu0 %v609
        %692 = vmatprep.subr.mxu0 %v608
        %693 = vmatpush1.msra.mxu0 %v607
        %694 = vmatprep.subr.mxu0 0.0
        %695 = vmatpush2.msra.mxu0 0.0
        %696 = vmatprep.subr.mxu0 0.0
        %697 = vmatpush2.msra.mxu0 0.0
        %698 = vmatprep.subr.mxu0 0.0
        %699 = vmatpush2.msra.mxu0 0.0
        %700 = vmatprep.subr.mxu0 0.0
        %701 = vmatpush2.msra.mxu0 0.0
        %702 = vmatprep.subr.mxu0 0.0
        %703 = vmatpush2.msra.mxu0 0.0
        %704 = vmatprep.subr.mxu0 0.0
        %705 = vmatpush2.msra.mxu0 0.0
        %706 = vmatprep.subr.mxu0 0.0
        %707 = vmatpush2.msra.mxu0 0.0
        %708 = vmatprep.subr.mxu0 0.0
        %709 = vmatpush2.msra.mxu0 0.0
        %710 = vmatprep.subr.mxu0 0.0
        %711 = vmatpush2.msra.mxu0 0.0
        %712 = vmatprep.subr.mxu0 0.0
        %713 = vmatpush2.msra.mxu0 0.0
        %714 = vmatprep.subr.mxu0 0.0
        %715 = vmatpush2.msra.mxu0 0.0
        %716 = vmatprep.subr.mxu0 0.0
        %717 = vmatpush2.msra.mxu0 0.0
        %718 = vmatprep.subr.mxu0 0.0
        %719 = vmatpush2.msra.mxu0 0.0
        %720 = vmatprep.subr.mxu0 0.0
        %721 = vmatpush2.msra.mxu0 0.0
        %722 = vmatprep.subr.mxu0 0.0
        %723 = vmatpush2.msra.mxu0 0.0
        %724 = vmatprep.subr.mxu0 0.0
        %725 = vmatpush2.msra.mxu0 0.0
        %726 = vmatprep.mubr.f32.mxu0 0.0
        %727 = vmatmul.mubr.f32.gmra.mxu0 %v641
        %v728 = vpop.f32.mrf.mxu0
        %v729 = vadd.f32 0.0, %v728
        %v730 = vpop.f32.mrf.mxu0
        %v731 = vadd.f32 0.0, %v730
        %732 = vmatprep.mubr.f32.mxu0 0.0
        %733 = vmatmul.mubr.f32.gmra.mxu0 %v644
        %v734 = vpop.f32.mrf.mxu0
        %v735 = vadd.f32 0.0, %v734
        %v736 = vpop.f32.mrf.mxu0
        %v737 = vadd.f32 0.0, %v736
        %738 = vmatprep.mubr.f32.mxu0 0.0
        %739 = vmatmul.mubr.f32.gmra.mxu0 %v647
        %v740 = vpop.f32.mrf.mxu0
        %v741 = vadd.f32 0.0, %v740
        %v742 = vpop.f32.mrf.mxu0
        %v743 = vadd.f32 0.0, %v742
        %744 = vmatprep.mubr.f32.mxu0 0.0
        %745 = vmatmul.mubr.f32.gmra.mxu0 %v650
        %v746 = vpop.f32.mrf.mxu0
        %v747 = vadd.f32 0.0, %v746
        %v748 = vpop.f32.mrf.mxu0
        %v749 = vadd.f32 0.0, %v748
        %750 = vmatprep.mubr.f32.mxu0 0.0
        %751 = vmatmul.mubr.f32.gmra.mxu0 %v653
        %v752 = vpop.f32.mrf.mxu0
        %v753 = vadd.f32 0.0, %v752
        %v754 = vpop.f32.mrf.mxu0
        %v755 = vadd.f32 0.0, %v754
        %756 = vdwg.mxu0
        %v758 = vsel %vm639, %v564, 0
        %v761 = vsel %vm639, %v565, 0
        %v764 = vsel %vm639, %v566, 0
        %v767 = vsel %vm639, %v567, 0
        %v770 = vsel %vm639, %v568, 0
        %v773 = vsel %vm655, %v599, 0
        %v776 = vsel %vm655, %v600, 0
        %778 = vmatprep.subr.mxu0 %v776
        %779 = vmatpush1.msra.mxu0 %v773
        %780 = vmatprep.subr.mxu0 %v598
        %781 = vmatpush1.msra.mxu0 %v597
        %782 = vmatprep.subr.mxu0 %v596
        %783 = vmatpush1.msra.mxu0 %v595
        %784 = vmatprep.subr.mxu0 %v594
        %785 = vmatpush1.msra.mxu0 %v593
        %786 = vmatprep.subr.mxu0 %v592
        %787 = vmatpush1.msra.mxu0 %v591
        %788 = vmatprep.subr.mxu0 %v590
        %789 = vmatpush1.msra.mxu0 %v589
        %790 = vmatprep.subr.mxu0 %v588
        %791 = vmatpush1.msra.mxu0 %v587
        %792 = vmatprep.subr.mxu0 %v586
        %793 = vmatpush1.msra.mxu0 %v585
        %794 = vmatprep.subr.mxu0 %v584
        %795 = vmatpush1.msra.mxu0 %v583
        %796 = vmatprep.subr.mxu0 %v582
        %797 = vmatpush1.msra.mxu0 %v581
        %798 = vmatprep.subr.mxu0 %v580
        %799 = vmatpush1.msra.mxu0 %v579
        %800 = vmatprep.subr.mxu0 %v578
        %801 = vmatpush1.msra.mxu0 %v577
        %802 = vmatprep.subr.mxu0 %v576
        %803 = vmatpush1.msra.mxu0 %v575
        %804 = vmatprep.subr.mxu0 %v574
        %805 = vmatpush1.msra.mxu0 %v573
        %806 = vmatprep.subr.mxu0 %v572
        %807 = vmatpush1.msra.mxu0 %v571
        %808 = vmatprep.subr.mxu0 %v570
        %809 = vmatpush1.msra.mxu0 %v569
        %810 = vmatprep.subr.mxu0 0.0
        %811 = vmatpush2.msra.mxu0 0.0
        %812 = vmatprep.subr.mxu0 0.0
        %813 = vmatpush2.msra.mxu0 0.0
        %814 = vmatprep.subr.mxu0 0.0
        %815 = vmatpush2.msra.mxu0 0.0
        %816 = vmatprep.subr.mxu0 0.0
        %817 = vmatpush2.msra.mxu0 0.0
        %818 = vmatprep.subr.mxu0 0.0
        %819 = vmatpush2.msra.mxu0 0.0
        %820 = vmatprep.subr.mxu0 0.0
        %821 = vmatpush2.msra.mxu0 0.0
        %822 = vmatprep.subr.mxu0 0.0
        %823 = vmatpush2.msra.mxu0 0.0
        %824 = vmatprep.subr.mxu0 0.0
        %825 = vmatpush2.msra.mxu0 0.0
        %826 = vmatprep.subr.mxu0 0.0
        %827 = vmatpush2.msra.mxu0 0.0
        %828 = vmatprep.subr.mxu0 0.0
        %829 = vmatpush2.msra.mxu0 0.0
        %830 = vmatprep.subr.mxu0 0.0
        %831 = vmatpush2.msra.mxu0 0.0
        %832 = vmatprep.subr.mxu0 0.0
        %833 = vmatpush2.msra.mxu0 0.0
        %834 = vmatprep.subr.mxu0 0.0
        %835 = vmatpush2.msra.mxu0 0.0
        %836 = vmatprep.subr.mxu0 0.0
        %837 = vmatpush2.msra.mxu0 0.0
        %838 = vmatprep.subr.mxu0 0.0
        %839 = vmatpush2.msra.mxu0 0.0
        %840 = vmatprep.subr.mxu0 0.0
        %841 = vmatpush2.msra.mxu0 0.0
        %842 = vmatprep.mubr.f32.mxu0 0.0
        %843 = vmatmul.mubr.f32.gmra.mxu0 %v758
        %v844 = vpop.f32.mrf.mxu0
        %v845 = vadd.f32 %v729, %v844
        %v846 = vpop.f32.mrf.mxu0
        %v847 = vadd.f32 %v731, %v846
        %848 = vmatprep.mubr.f32.mxu0 0.0
        %849 = vmatmul.mubr.f32.gmra.mxu0 %v761
        %v850 = vpop.f32.mrf.mxu0
        %v851 = vadd.f32 %v735, %v850
        %v852 = vpop.f32.mrf.mxu0
        %v853 = vadd.f32 %v737, %v852
        %854 = vmatprep.mubr.f32.mxu0 0.0
        %855 = vmatmul.mubr.f32.gmra.mxu0 %v764
        %v856 = vpop.f32.mrf.mxu0
        %v857 = vadd.f32 %v741, %v856
        %v858 = vpop.f32.mrf.mxu0
        %v859 = vadd.f32 %v743, %v858
        %860 = vmatprep.mubr.f32.mxu0 0.0
        %861 = vmatmul.mubr.f32.gmra.mxu0 %v767
        %v862 = vpop.f32.mrf.mxu0
        %v863 = vadd.f32 %v747, %v862
        %v864 = vpop.f32.mrf.mxu0
        %v865 = vadd.f32 %v749, %v864
        %866 = vmatprep.mubr.f32.mxu0 0.0
        %867 = vmatmul.mubr.f32.gmra.mxu0 %v770
        %v868 = vpop.f32.mrf.mxu0
        %v869 = vadd.f32 %v753, %v868
        %v870 = vpop.f32.mrf.mxu0
        %v871 = vadd.f32 %v755, %v870
        %872 = vdwg.mxu0
        %v873 = vld [vmem:[%s553 + $0x2] sm:$0xff]
        %v874 = vld [vmem:[%s553 + $0xa] sm:$0xff]
        %v875 = vld [vmem:[%s553 + $0x12] sm:$0xff]
        %v876 = vld [vmem:[%s553 + $0x1a] sm:$0xff]
        %v877 = vld [vmem:[%s553 + $0x22] sm:$0xff]
        %s878 = scalar_lea.vmem %s1, 512
        %v879 = vld [vmem:[%s878] sm:$0xff]
        %v880 = vld [vmem:[%s878 + $0x8] sm:$0xff]
        %v881 = vld [vmem:[%s878 + $0x10] sm:$0xff]
        %v882 = vld [vmem:[%s878 + $0x18] sm:$0xff]
        %v883 = vld [vmem:[%s878 + $0x20] sm:$0xff]
        %v884 = vld [vmem:[%s878 + $0x28] sm:$0xff]
        %v885 = vld [vmem:[%s878 + $0x30] sm:$0xff]
        %v886 = vld [vmem:[%s878 + $0x38] sm:$0xff]
        %v887 = vld [vmem:[%s878 + $0x40] sm:$0xff]
        %v888 = vld [vmem:[%s878 + $0x48] sm:$0xff]
        %v889 = vld [vmem:[%s878 + $0x50] sm:$0xff]
        %v890 = vld [vmem:[%s878 + $0x58] sm:$0xff]
        %v891 = vld [vmem:[%s878 + $0x60] sm:$0xff]
        %v892 = vld [vmem:[%s878 + $0x68] sm:$0xff]
        %v893 = vld [vmem:[%s878 + $0x70] sm:$0xff]
        %v894 = vld [vmem:[%s878 + $0x78] sm:$0xff]
        %v895 = vld [vmem:[%s878 + $0x80] sm:$0xff]
        %v896 = vld [vmem:[%s878 + $0x88] sm:$0xff]
        %v897 = vld [vmem:[%s878 + $0x90] sm:$0xff]
        %v898 = vld [vmem:[%s878 + $0x98] sm:$0xff]
        %v899 = vld [vmem:[%s878 + $0xa0] sm:$0xff]
        %v900 = vld [vmem:[%s878 + $0xa8] sm:$0xff]
        %v901 = vld [vmem:[%s878 + $0xb0] sm:$0xff]
        %v902 = vld [vmem:[%s878 + $0xb8] sm:$0xff]
        %v903 = vld [vmem:[%s878 + $0xc0] sm:$0xff]
        %v904 = vld [vmem:[%s878 + $0xc8] sm:$0xff]
        %v905 = vld [vmem:[%s878 + $0xd0] sm:$0xff]
        %v906 = vld [vmem:[%s878 + $0xd8] sm:$0xff]
        %v907 = vld [vmem:[%s878 + $0xe0] sm:$0xff]
        %v908 = vld [vmem:[%s878 + $0xe8] sm:$0xff]
        %v909 = vld [vmem:[%s878 + $0xf0] sm:$0x3f]
        %v910 = vld [vmem:[%s878 + $0xf8] sm:$0x3f]
        %v912 = vsel %vm639, %v873, 0
        %v915 = vsel %vm639, %v874, 0
        %v918 = vsel %vm639, %v875, 0
        %v921 = vsel %vm639, %v876, 0
        %v924 = vsel %vm639, %v877, 0
        %v927 = vsel %vm655, %v909, 0
        %v930 = vsel %vm655, %v910, 0
        %932 = vmatprep.subr.mxu0 %v930
        %933 = vmatpush1.msra.mxu0 %v927
        %934 = vmatprep.subr.mxu0 %v908
        %935 = vmatpush1.msra.mxu0 %v907
        %936 = vmatprep.subr.mxu0 %v906
        %937 = vmatpush1.msra.mxu0 %v905
        %938 = vmatprep.subr.mxu0 %v904
        %939 = vmatpush1.msra.mxu0 %v903
        %940 = vmatprep.subr.mxu0 %v902
        %941 = vmatpush1.msra.mxu0 %v901
        %942 = vmatprep.subr.mxu0 %v900
        %943 = vmatpush1.msra.mxu0 %v899
        %944 = vmatprep.subr.mxu0 %v898
        %945 = vmatpush1.msra.mxu0 %v897
        %946 = vmatprep.subr.mxu0 %v896
        %947 = vmatpush1.msra.mxu0 %v895
        %948 = vmatprep.subr.mxu0 %v894
        %949 = vmatpush1.msra.mxu0 %v893
        %950 = vmatprep.subr.mxu0 %v892
        %951 = vmatpush1.msra.mxu0 %v891
        %952 = vmatprep.subr.mxu0 %v890
        %953 = vmatpush1.msra.mxu0 %v889
        %954 = vmatprep.subr.mxu0 %v888
        %955 = vmatpush1.msra.mxu0 %v887
        %956 = vmatprep.subr.mxu0 %v886
        %957 = vmatpush1.msra.mxu0 %v885
        %958 = vmatprep.subr.mxu0 %v884
        %959 = vmatpush1.msra.mxu0 %v883
        %960 = vmatprep.subr.mxu0 %v882
        %961 = vmatpush1.msra.mxu0 %v881
        %962 = vmatprep.subr.mxu0 %v880
        %963 = vmatpush1.msra.mxu0 %v879
        %964 = vmatprep.subr.mxu0 0.0
        %965 = vmatpush2.msra.mxu0 0.0
        %966 = vmatprep.subr.mxu0 0.0
        %967 = vmatpush2.msra.mxu0 0.0
        %968 = vmatprep.subr.mxu0 0.0
        %969 = vmatpush2.msra.mxu0 0.0
        %970 = vmatprep.subr.mxu0 0.0
        %971 = vmatpush2.msra.mxu0 0.0
        %972 = vmatprep.subr.mxu0 0.0
        %973 = vmatpush2.msra.mxu0 0.0
        %974 = vmatprep.subr.mxu0 0.0
        %975 = vmatpush2.msra.mxu0 0.0
        %976 = vmatprep.subr.mxu0 0.0
        %977 = vmatpush2.msra.mxu0 0.0
        %978 = vmatprep.subr.mxu0 0.0
        %979 = vmatpush2.msra.mxu0 0.0
        %980 = vmatprep.subr.mxu0 0.0
        %981 = vmatpush2.msra.mxu0 0.0
        %982 = vmatprep.subr.mxu0 0.0
        %983 = vmatpush2.msra.mxu0 0.0
        %984 = vmatprep.subr.mxu0 0.0
        %985 = vmatpush2.msra.mxu0 0.0
        %986 = vmatprep.subr.mxu0 0.0
        %987 = vmatpush2.msra.mxu0 0.0
        %988 = vmatprep.subr.mxu0 0.0
        %989 = vmatpush2.msra.mxu0 0.0
        %990 = vmatprep.subr.mxu0 0.0
        %991 = vmatpush2.msra.mxu0 0.0
        %992 = vmatprep.subr.mxu0 0.0
        %993 = vmatpush2.msra.mxu0 0.0
        %994 = vmatprep.subr.mxu0 0.0
        %995 = vmatpush2.msra.mxu0 0.0
        %996 = vmatprep.mubr.f32.mxu0 0.0
        %997 = vmatmul.mubr.f32.gmra.mxu0 %v912
        %v998 = vpop.f32.mrf.mxu0
        %v999 = vadd.f32 0.0, %v998
        %v1000 = vpop.f32.mrf.mxu0
        %v1001 = vadd.f32 0.0, %v1000
        %1002 = vmatprep.mubr.f32.mxu0 0.0
        %1003 = vmatmul.mubr.f32.gmra.mxu0 %v915
        %v1004 = vpop.f32.mrf.mxu0
        %v1005 = vadd.f32 0.0, %v1004
        %v1006 = vpop.f32.mrf.mxu0
        %v1007 = vadd.f32 0.0, %v1006
        %1008 = vmatprep.mubr.f32.mxu0 0.0
        %1009 = vmatmul.mubr.f32.gmra.mxu0 %v918
        %v1010 = vpop.f32.mrf.mxu0
        %v1011 = vadd.f32 0.0, %v1010
        %v1012 = vpop.f32.mrf.mxu0
        %v1013 = vadd.f32 0.0, %v1012
        %1014 = vmatprep.mubr.f32.mxu0 0.0
        %1015 = vmatmul.mubr.f32.gmra.mxu0 %v921
        %v1016 = vpop.f32.mrf.mxu0
        %v1017 = vadd.f32 0.0, %v1016
        %v1018 = vpop.f32.mrf.mxu0
        %v1019 = vadd.f32 0.0, %v1018
        %1020 = vmatprep.mubr.f32.mxu0 0.0
        %1021 = vmatmul.mubr.f32.gmra.mxu0 %v924
        %v1022 = vpop.f32.mrf.mxu0
        %v1023 = vadd.f32 0.0, %v1022
        %v1024 = vpop.f32.mrf.mxu0
        %v1025 = vadd.f32 0.0, %v1024
        %1026 = vdwg.mxu0
        %v1027 = vadd.f32 %v845, %v999
        %v1028 = vadd.f32 %v847, %v1001
        %v1029 = vadd.f32 %v851, %v1005
        %v1030 = vadd.f32 %v853, %v1007
        %v1031 = vadd.f32 %v857, %v1011
        %v1032 = vadd.f32 %v859, %v1013
        %v1033 = vadd.f32 %v863, %v1017
        %v1034 = vadd.f32 %v865, %v1019
        %v1035 = vadd.f32 %v869, %v1023
        %v1036 = vadd.f32 %v871, %v1025
        %v1038 = vlaneseq
        %v1039 = vshrl.u32 %v1038, 7
        %v1040 = vsub.s32 0, %v1039
        %v1041 = vrot.slane %v559, %v1040
        %v1042 = vlaneseq
        %v1043 = vshrl.u32 %v1042, 7
        %v1044 = vsub.s32 1, %v1043
        %v1045 = vrot.slane %v559, %v1044
        %v1048 = vadd.f32 %v1027, %v1041
        %v1049 = vadd.f32 %v1028, %v1045
        %v1050 = vadd.f32 %v1029, %v1041
        %v1051 = vadd.f32 %v1030, %v1045
        %v1052 = vadd.f32 %v1031, %v1041
        %v1053 = vadd.f32 %v1032, %v1045
        %v1054 = vadd.f32 %v1033, %v1041
        %v1055 = vadd.f32 %v1034, %v1045
        %v1056 = vadd.f32 %v1035, %v1041
        %v1057 = vadd.f32 %v1036, %v1045
        %v1058 = vmax.f32 %v1048, 0.0
        %v1059 = vmax.f32 %v1049, 0.0
        %v1060 = vmax.f32 %v1050, 0.0
        %v1061 = vmax.f32 %v1051, 0.0
        %v1062 = vmax.f32 %v1052, 0.0
        %v1063 = vmax.f32 %v1053, 0.0
        %v1064 = vmax.f32 %v1054, 0.0
        %v1065 = vmax.f32 %v1055, 0.0
        %v1066 = vmax.f32 %v1056, 0.0
        %v1067 = vmax.f32 %v1057, 0.0
        %v1069 = vlaneseq
        %v1070 = vshrl.u32 %v1069, 7
        %v1071 = vsub.s32 0, %v1070
        %v1072 = vrot.slane %v561, %v1071
        %v1073 = vlaneseq
        %v1074 = vshrl.u32 %v1073, 7
        %v1075 = vsub.s32 1, %v1074
        %v1076 = vrot.slane %v561, %v1075
        %v1079 = vmul.f32 %v1058, %v1072
        %v1080 = vmul.f32 %v1059, %v1076
        %v1081 = vmul.f32 %v1060, %v1072
        %v1082 = vmul.f32 %v1061, %v1076
        %v1083 = vmul.f32 %v1062, %v1072
        %v1084 = vmul.f32 %v1063, %v1076
        %v1085 = vmul.f32 %v1064, %v1072
        %v1086 = vmul.f32 %v1065, %v1076
        %v1087 = vmul.f32 %v1066, %v1072
        %v1088 = vmul.f32 %v1067, %v1076
        %v1090 = vlaneseq
        %v1091 = vshrl.u32 %v1090, 7
        %v1092 = vsub.s32 0, %v1091
        %v1093 = vrot.slane %v563, %v1092
        %v1094 = vlaneseq
        %v1095 = vshrl.u32 %v1094, 7
        %v1096 = vsub.s32 1, %v1095
        %v1097 = vrot.slane %v563, %v1096
        %v1100 = vadd.f32 %v1079, %v1093
        %v1101 = vadd.f32 %v1080, %v1097
        %v1102 = vadd.f32 %v1081, %v1093
        %v1103 = vadd.f32 %v1082, %v1097
        %v1104 = vadd.f32 %v1083, %v1093
        %v1105 = vadd.f32 %v1084, %v1097
        %v1106 = vadd.f32 %v1085, %v1093
        %v1107 = vadd.f32 %v1086, %v1097
        %v1108 = vadd.f32 %v1087, %v1093
        %v1109 = vadd.f32 %v1088, %v1097
        %v1110 = vld [vmem:[%s2] sm:$0xff]
        %v1111 = vld [vmem:[%s2 + $0x8] sm:$0xff]
        %v1112 = vld [vmem:[%s2 + $0x10] sm:$0xff]
        %v1113 = vld [vmem:[%s2 + $0x18] sm:$0xff]
        %v1114 = vld [vmem:[%s2 + $0x20] sm:$0xff]
        %v1115 = vld [vmem:[%s2 + $0x28] sm:$0xff]
        %v1116 = vld [vmem:[%s2 + $0x30] sm:$0xff]
        %v1117 = vld [vmem:[%s2 + $0x38] sm:$0xff]
        %v1118 = vld [vmem:[%s2 + $0x40] sm:$0xff]
        %v1119 = vld [vmem:[%s2 + $0x48] sm:$0xff]
        %v1120 = vld [vmem:[%s2 + $0x50] sm:$0xff]
        %v1121 = vld [vmem:[%s2 + $0x58] sm:$0xff]
        %v1122 = vld [vmem:[%s2 + $0x60] sm:$0xff]
        %v1123 = vld [vmem:[%s2 + $0x68] sm:$0xff]
        %v1124 = vld [vmem:[%s2 + $0x70] sm:$0xff]
        %v1125 = vld [vmem:[%s2 + $0x78] sm:$0xff]
        %v1126 = vld [vmem:[%s2 + $0x80] sm:$0xff]
        %v1127 = vld [vmem:[%s2 + $0x88] sm:$0xff]
        %v1128 = vld [vmem:[%s2 + $0x90] sm:$0xff]
        %v1129 = vld [vmem:[%s2 + $0x98] sm:$0xff]
        %v1130 = vld [vmem:[%s2 + $0xa0] sm:$0xff]
        %v1131 = vld [vmem:[%s2 + $0xa8] sm:$0xff]
        %v1132 = vld [vmem:[%s2 + $0xb0] sm:$0xff]
        %v1133 = vld [vmem:[%s2 + $0xb8] sm:$0xff]
        %v1134 = vld [vmem:[%s2 + $0xc0] sm:$0xff]
        %v1135 = vld [vmem:[%s2 + $0xc8] sm:$0xff]
        %v1136 = vld [vmem:[%s2 + $0xd0] sm:$0xff]
        %v1137 = vld [vmem:[%s2 + $0xd8] sm:$0xff]
        %v1138 = vld [vmem:[%s2 + $0xe0] sm:$0xff]
        %v1139 = vld [vmem:[%s2 + $0xe8] sm:$0xff]
        %v1140 = vld [vmem:[%s2 + $0xf0] sm:$0x3f]
        %v1141 = vld [vmem:[%s2 + $0xf8] sm:$0x3f]
        %s1142 = scalar_lea.vmem %s2, 256
        %v1143 = vld [vmem:[%s1142] sm:$0xff]
        %v1144 = vld [vmem:[%s1142 + $0x8] sm:$0xff]
        %v1145 = vld [vmem:[%s1142 + $0x10] sm:$0xff]
        %v1146 = vld [vmem:[%s1142 + $0x18] sm:$0xff]
        %v1147 = vld [vmem:[%s1142 + $0x20] sm:$0xff]
        %v1148 = vld [vmem:[%s1142 + $0x28] sm:$0xff]
        %v1149 = vld [vmem:[%s1142 + $0x30] sm:$0xff]
        %v1150 = vld [vmem:[%s1142 + $0x38] sm:$0xff]
        %v1151 = vld [vmem:[%s1142 + $0x40] sm:$0xff]
        %v1152 = vld [vmem:[%s1142 + $0x48] sm:$0xff]
        %v1153 = vld [vmem:[%s1142 + $0x50] sm:$0xff]
        %v1154 = vld [vmem:[%s1142 + $0x58] sm:$0xff]
        %v1155 = vld [vmem:[%s1142 + $0x60] sm:$0xff]
        %v1156 = vld [vmem:[%s1142 + $0x68] sm:$0xff]
        %v1157 = vld [vmem:[%s1142 + $0x70] sm:$0xff]
        %v1158 = vld [vmem:[%s1142 + $0x78] sm:$0xff]
        %v1159 = vld [vmem:[%s1142 + $0x80] sm:$0xff]
        %v1160 = vld [vmem:[%s1142 + $0x88] sm:$0xff]
        %v1161 = vld [vmem:[%s1142 + $0x90] sm:$0xff]
        %v1162 = vld [vmem:[%s1142 + $0x98] sm:$0xff]
        %v1163 = vld [vmem:[%s1142 + $0xa0] sm:$0xff]
        %v1164 = vld [vmem:[%s1142 + $0xa8] sm:$0xff]
        %v1165 = vld [vmem:[%s1142 + $0xb0] sm:$0xff]
        %v1166 = vld [vmem:[%s1142 + $0xb8] sm:$0xff]
        %v1167 = vld [vmem:[%s1142 + $0xc0] sm:$0xff]
        %v1168 = vld [vmem:[%s1142 + $0xc8] sm:$0xff]
        %v1169 = vld [vmem:[%s1142 + $0xd0] sm:$0xff]
        %v1170 = vld [vmem:[%s1142 + $0xd8] sm:$0xff]
        %v1171 = vld [vmem:[%s1142 + $0xe0] sm:$0xff]
        %v1172 = vld [vmem:[%s1142 + $0xe8] sm:$0xff]
        %v1173 = vld [vmem:[%s1142 + $0xf0] sm:$0x3f]
        %v1174 = vld [vmem:[%s1142 + $0xf8] sm:$0x3f]
        %v1176 = vsel %vm655, %v1173, 0
        %v1179 = vsel %vm655, %v1174, 0
        %1181 = vmatprep.subr.mxu0 %v1179
        %1182 = vmatpush1.msra.mxu0 %v1176
        %1183 = vmatprep.subr.mxu0 %v1172
        %1184 = vmatpush1.msra.mxu0 %v1171
        %1185 = vmatprep.subr.mxu0 %v1170
        %1186 = vmatpush1.msra.mxu0 %v1169
        %1187 = vmatprep.subr.mxu0 %v1168
        %1188 = vmatpush1.msra.mxu0 %v1167
        %1189 = vmatprep.subr.mxu0 %v1166
        %1190 = vmatpush1.msra.mxu0 %v1165
        %1191 = vmatprep.subr.mxu0 %v1164
        %1192 = vmatpush1.msra.mxu0 %v1163
        %1193 = vmatprep.subr.mxu0 %v1162
        %1194 = vmatpush1.msra.mxu0 %v1161
        %1195 = vmatprep.subr.mxu0 %v1160
        %1196 = vmatpush1.msra.mxu0 %v1159
        %1197 = vmatprep.subr.mxu0 %v1158
        %1198 = vmatpush1.msra.mxu0 %v1157
        %1199 = vmatprep.subr.mxu0 %v1156
        %1200 = vmatpush1.msra.mxu0 %v1155
        %1201 = vmatprep.subr.mxu0 %v1154
        %1202 = vmatpush1.msra.mxu0 %v1153
        %1203 = vmatprep.subr.mxu0 %v1152
        %1204 = vmatpush1.msra.mxu0 %v1151
        %1205 = vmatprep.subr.mxu0 %v1150
        %1206 = vmatpush1.msra.mxu0 %v1149
        %1207 = vmatprep.subr.mxu0 %v1148
        %1208 = vmatpush1.msra.mxu0 %v1147
        %1209 = vmatprep.subr.mxu0 %v1146
        %1210 = vmatpush1.msra.mxu0 %v1145
        %1211 = vmatprep.subr.mxu0 %v1144
        %1212 = vmatpush1.msra.mxu0 %v1143
        %1213 = vmatprep.subr.mxu0 0.0
        %1214 = vmatpush2.msra.mxu0 0.0
        %1215 = vmatprep.subr.mxu0 0.0
        %1216 = vmatpush2.msra.mxu0 0.0
        %1217 = vmatprep.subr.mxu0 0.0
        %1218 = vmatpush2.msra.mxu0 0.0
        %1219 = vmatprep.subr.mxu0 0.0
        %1220 = vmatpush2.msra.mxu0 0.0
        %1221 = vmatprep.subr.mxu0 0.0
        %1222 = vmatpush2.msra.mxu0 0.0
        %1223 = vmatprep.subr.mxu0 0.0
        %1224 = vmatpush2.msra.mxu0 0.0
        %1225 = vmatprep.subr.mxu0 0.0
        %1226 = vmatpush2.msra.mxu0 0.0
        %1227 = vmatprep.subr.mxu0 0.0
        %1228 = vmatpush2.msra.mxu0 0.0
        %1229 = vmatprep.subr.mxu0 0.0
        %1230 = vmatpush2.msra.mxu0 0.0
        %1231 = vmatprep.subr.mxu0 0.0
        %1232 = vmatpush2.msra.mxu0 0.0
        %1233 = vmatprep.subr.mxu0 0.0
        %1234 = vmatpush2.msra.mxu0 0.0
        %1235 = vmatprep.subr.mxu0 0.0
        %1236 = vmatpush2.msra.mxu0 0.0
        %1237 = vmatprep.subr.mxu0 0.0
        %1238 = vmatpush2.msra.mxu0 0.0
        %1239 = vmatprep.subr.mxu0 0.0
        %1240 = vmatpush2.msra.mxu0 0.0
        %1241 = vmatprep.subr.mxu0 0.0
        %1242 = vmatpush2.msra.mxu0 0.0
        %1243 = vmatprep.subr.mxu0 0.0
        %1244 = vmatpush2.msra.mxu0 0.0
        %1245 = vmatprep.mubr.f32.mxu0 0.0
        %1246 = vmatmul.mubr.f32.gmra.mxu0 %v641
        %v1247 = vpop.f32.mrf.mxu0
        %v1248 = vadd.f32 0.0, %v1247
        %v1249 = vpop.f32.mrf.mxu0
        %v1250 = vadd.f32 0.0, %v1249
        %1251 = vmatprep.mubr.f32.mxu0 0.0
        %1252 = vmatmul.mubr.f32.gmra.mxu0 %v644
        %v1253 = vpop.f32.mrf.mxu0
        %v1254 = vadd.f32 0.0, %v1253
        %v1255 = vpop.f32.mrf.mxu0
        %v1256 = vadd.f32 0.0, %v1255
        %1257 = vmatprep.mubr.f32.mxu0 0.0
        %1258 = vmatmul.mubr.f32.gmra.mxu0 %v647
        %v1259 = vpop.f32.mrf.mxu0
        %v1260 = vadd.f32 0.0, %v1259
        %v1261 = vpop.f32.mrf.mxu0
        %v1262 = vadd.f32 0.0, %v1261
        %1263 = vmatprep.mubr.f32.mxu0 0.0
        %1264 = vmatmul.mubr.f32.gmra.mxu0 %v650
        %v1265 = vpop.f32.mrf.mxu0
        %v1266 = vadd.f32 0.0, %v1265
        %v1267 = vpop.f32.mrf.mxu0
        %v1268 = vadd.f32 0.0, %v1267
        %1269 = vmatprep.mubr.f32.mxu0 0.0
        %1270 = vmatmul.mubr.f32.gmra.mxu0 %v653
        %v1271 = vpop.f32.mrf.mxu0
        %v1272 = vadd.f32 0.0, %v1271
        %v1273 = vpop.f32.mrf.mxu0
        %v1274 = vadd.f32 0.0, %v1273
        %1275 = vdwg.mxu0
        %v1277 = vsel %vm655, %v1140, 0
        %v1280 = vsel %vm655, %v1141, 0
        %1282 = vmatprep.subr.mxu0 %v1280
        %1283 = vmatpush1.msra.mxu0 %v1277
        %1284 = vmatprep.subr.mxu0 %v1139
        %1285 = vmatpush1.msra.mxu0 %v1138
        %1286 = vmatprep.subr.mxu0 %v1137
        %1287 = vmatpush1.msra.mxu0 %v1136
        %1288 = vmatprep.subr.mxu0 %v1135
        %1289 = vmatpush1.msra.mxu0 %v1134
        %1290 = vmatprep.subr.mxu0 %v1133
        %1291 = vmatpush1.msra.mxu0 %v1132
        %1292 = vmatprep.subr.mxu0 %v1131
        %1293 = vmatpush1.msra.mxu0 %v1130
        %1294 = vmatprep.subr.mxu0 %v1129
        %1295 = vmatpush1.msra.mxu0 %v1128
        %1296 = vmatprep.subr.mxu0 %v1127
        %1297 = vmatpush1.msra.mxu0 %v1126
        %1298 = vmatprep.subr.mxu0 %v1125
        %1299 = vmatpush1.msra.mxu0 %v1124
        %1300 = vmatprep.subr.mxu0 %v1123
        %1301 = vmatpush1.msra.mxu0 %v1122
        %1302 = vmatprep.subr.mxu0 %v1121
        %1303 = vmatpush1.msra.mxu0 %v1120
        %1304 = vmatprep.subr.mxu0 %v1119
        %1305 = vmatpush1.msra.mxu0 %v1118
        %1306 = vmatprep.subr.mxu0 %v1117
        %1307 = vmatpush1.msra.mxu0 %v1116
        %1308 = vmatprep.subr.mxu0 %v1115
        %1309 = vmatpush1.msra.mxu0 %v1114
        %1310 = vmatprep.subr.mxu0 %v1113
        %1311 = vmatpush1.msra.mxu0 %v1112
        %1312 = vmatprep.subr.mxu0 %v1111
        %1313 = vmatpush1.msra.mxu0 %v1110
        %1314 = vmatprep.subr.mxu0 0.0
        %1315 = vmatpush2.msra.mxu0 0.0
        %1316 = vmatprep.subr.mxu0 0.0
        %1317 = vmatpush2.msra.mxu0 0.0
        %1318 = vmatprep.subr.mxu0 0.0
        %1319 = vmatpush2.msra.mxu0 0.0
        %1320 = vmatprep.subr.mxu0 0.0
        %1321 = vmatpush2.msra.mxu0 0.0
        %1322 = vmatprep.subr.mxu0 0.0
        %1323 = vmatpush2.msra.mxu0 0.0
        %1324 = vmatprep.subr.mxu0 0.0
        %1325 = vmatpush2.msra.mxu0 0.0
        %1326 = vmatprep.subr.mxu0 0.0
        %1327 = vmatpush2.msra.mxu0 0.0
        %1328 = vmatprep.subr.mxu0 0.0
        %1329 = vmatpush2.msra.mxu0 0.0
        %1330 = vmatprep.subr.mxu0 0.0
        %1331 = vmatpush2.msra.mxu0 0.0
        %1332 = vmatprep.subr.mxu0 0.0
        %1333 = vmatpush2.msra.mxu0 0.0
        %1334 = vmatprep.subr.mxu0 0.0
        %1335 = vmatpush2.msra.mxu0 0.0
        %1336 = vmatprep.subr.mxu0 0.0
        %1337 = vmatpush2.msra.mxu0 0.0
        %1338 = vmatprep.subr.mxu0 0.0
        %1339 = vmatpush2.msra.mxu0 0.0
        %1340 = vmatprep.subr.mxu0 0.0
        %1341 = vmatpush2.msra.mxu0 0.0
        %1342 = vmatprep.subr.mxu0 0.0
        %1343 = vmatpush2.msra.mxu0 0.0
        %1344 = vmatprep.subr.mxu0 0.0
        %1345 = vmatpush2.msra.mxu0 0.0
        %1346 = vmatprep.mubr.f32.mxu0 0.0
        %1347 = vmatmul.mubr.f32.gmra.mxu0 %v758
        %v1348 = vpop.f32.mrf.mxu0
        %v1349 = vadd.f32 %v1248, %v1348
        %v1350 = vpop.f32.mrf.mxu0
        %v1351 = vadd.f32 %v1250, %v1350
        %1352 = vmatprep.mubr.f32.mxu0 0.0
        %1353 = vmatmul.mubr.f32.gmra.mxu0 %v761
        %v1354 = vpop.f32.mrf.mxu0
        %v1355 = vadd.f32 %v1254, %v1354
        %v1356 = vpop.f32.mrf.mxu0
        %v1357 = vadd.f32 %v1256, %v1356
        %1358 = vmatprep.mubr.f32.mxu0 0.0
        %1359 = vmatmul.mubr.f32.gmra.mxu0 %v764
        %v1360 = vpop.f32.mrf.mxu0
        %v1361 = vadd.f32 %v1260, %v1360
        %v1362 = vpop.f32.mrf.mxu0
        %v1363 = vadd.f32 %v1262, %v1362
        %1364 = vmatprep.mubr.f32.mxu0 0.0
        %1365 = vmatmul.mubr.f32.gmra.mxu0 %v767
        %v1366 = vpop.f32.mrf.mxu0
        %v1367 = vadd.f32 %v1266, %v1366
        %v1368 = vpop.f32.mrf.mxu0
        %v1369 = vadd.f32 %v1268, %v1368
        %1370 = vmatprep.mubr.f32.mxu0 0.0
        %1371 = vmatmul.mubr.f32.gmra.mxu0 %v770
        %v1372 = vpop.f32.mrf.mxu0
        %v1373 = vadd.f32 %v1272, %v1372
        %v1374 = vpop.f32.mrf.mxu0
        %v1375 = vadd.f32 %v1274, %v1374
        %1376 = vdwg.mxu0
        %s1377 = scalar_lea.vmem %s2, 512
        %v1378 = vld [vmem:[%s1377] sm:$0xff]
        %v1379 = vld [vmem:[%s1377 + $0x8] sm:$0xff]
        %v1380 = vld [vmem:[%s1377 + $0x10] sm:$0xff]
        %v1381 = vld [vmem:[%s1377 + $0x18] sm:$0xff]
        %v1382 = vld [vmem:[%s1377 + $0x20] sm:$0xff]
        %v1383 = vld [vmem:[%s1377 + $0x28] sm:$0xff]
        %v1384 = vld [vmem:[%s1377 + $0x30] sm:$0xff]
        %v1385 = vld [vmem:[%s1377 + $0x38] sm:$0xff]
        %v1386 = vld [vmem:[%s1377 + $0x40] sm:$0xff]
        %v1387 = vld [vmem:[%s1377 + $0x48] sm:$0xff]
        %v1388 = vld [vmem:[%s1377 + $0x50] sm:$0xff]
        %v1389 = vld [vmem:[%s1377 + $0x58] sm:$0xff]
        %v1390 = vld [vmem:[%s1377 + $0x60] sm:$0xff]
        %v1391 = vld [vmem:[%s1377 + $0x68] sm:$0xff]
        %v1392 = vld [vmem:[%s1377 + $0x70] sm:$0xff]
        %v1393 = vld [vmem:[%s1377 + $0x78] sm:$0xff]
        %v1394 = vld [vmem:[%s1377 + $0x80] sm:$0xff]
        %v1395 = vld [vmem:[%s1377 + $0x88] sm:$0xff]
        %v1396 = vld [vmem:[%s1377 + $0x90] sm:$0xff]
        %v1397 = vld [vmem:[%s1377 + $0x98] sm:$0xff]
        %v1398 = vld [vmem:[%s1377 + $0xa0] sm:$0xff]
        %v1399 = vld [vmem:[%s1377 + $0xa8] sm:$0xff]
        %v1400 = vld [vmem:[%s1377 + $0xb0] sm:$0xff]
        %v1401 = vld [vmem:[%s1377 + $0xb8] sm:$0xff]
        %v1402 = vld [vmem:[%s1377 + $0xc0] sm:$0xff]
        %v1403 = vld [vmem:[%s1377 + $0xc8] sm:$0xff]
        %v1404 = vld [vmem:[%s1377 + $0xd0] sm:$0xff]
        %v1405 = vld [vmem:[%s1377 + $0xd8] sm:$0xff]
        %v1406 = vld [vmem:[%s1377 + $0xe0] sm:$0xff]
        %v1407 = vld [vmem:[%s1377 + $0xe8] sm:$0xff]
        %v1408 = vld [vmem:[%s1377 + $0xf0] sm:$0x3f]
        %v1409 = vld [vmem:[%s1377 + $0xf8] sm:$0x3f]
        %v1411 = vsel %vm655, %v1408, 0
        %v1414 = vsel %vm655, %v1409, 0
        %1416 = vmatprep.subr.mxu0 %v1414
        %1417 = vmatpush1.msra.mxu0 %v1411
        %1418 = vmatprep.subr.mxu0 %v1407
        %1419 = vmatpush1.msra.mxu0 %v1406
        %1420 = vmatprep.subr.mxu0 %v1405
        %1421 = vmatpush1.msra.mxu0 %v1404
        %1422 = vmatprep.subr.mxu0 %v1403
        %1423 = vmatpush1.msra.mxu0 %v1402
        %1424 = vmatprep.subr.mxu0 %v1401
        %1425 = vmatpush1.msra.mxu0 %v1400
        %1426 = vmatprep.subr.mxu0 %v1399
        %1427 = vmatpush1.msra.mxu0 %v1398
        %1428 = vmatprep.subr.mxu0 %v1397
        %1429 = vmatpush1.msra.mxu0 %v1396
        %1430 = vmatprep.subr.mxu0 %v1395
        %1431 = vmatpush1.msra.mxu0 %v1394
        %1432 = vmatprep.subr.mxu0 %v1393
        %1433 = vmatpush1.msra.mxu0 %v1392
        %1434 = vmatprep.subr.mxu0 %v1391
        %1435 = vmatpush1.msra.mxu0 %v1390
        %1436 = vmatprep.subr.mxu0 %v1389
        %1437 = vmatpush1.msra.mxu0 %v1388
        %1438 = vmatprep.subr.mxu0 %v1387
        %1439 = vmatpush1.msra.mxu0 %v1386
        %1440 = vmatprep.subr.mxu0 %v1385
        %1441 = vmatpush1.msra.mxu0 %v1384
        %1442 = vmatprep.subr.mxu0 %v1383
        %1443 = vmatpush1.msra.mxu0 %v1382
        %1444 = vmatprep.subr.mxu0 %v1381
        %1445 = vmatpush1.msra.mxu0 %v1380
        %1446 = vmatprep.subr.mxu0 %v1379
        %1447 = vmatpush1.msra.mxu0 %v1378
        %1448 = vmatprep.subr.mxu0 0.0
        %1449 = vmatpush2.msra.mxu0 0.0
        %1450 = vmatprep.subr.mxu0 0.0
        %1451 = vmatpush2.msra.mxu0 0.0
        %1452 = vmatprep.subr.mxu0 0.0
        %1453 = vmatpush2.msra.mxu0 0.0
        %1454 = vmatprep.subr.mxu0 0.0
        %1455 = vmatpush2.msra.mxu0 0.0
        %1456 = vmatprep.subr.mxu0 0.0
        %1457 = vmatpush2.msra.mxu0 0.0
        %1458 = vmatprep.subr.mxu0 0.0
        %1459 = vmatpush2.msra.mxu0 0.0
        %1460 = vmatprep.subr.mxu0 0.0
        %1461 = vmatpush2.msra.mxu0 0.0
        %1462 = vmatprep.subr.mxu0 0.0
        %1463 = vmatpush2.msra.mxu0 0.0
        %1464 = vmatprep.subr.mxu0 0.0
        %1465 = vmatpush2.msra.mxu0 0.0
        %1466 = vmatprep.subr.mxu0 0.0
        %1467 = vmatpush2.msra.mxu0 0.0
        %1468 = vmatprep.subr.mxu0 0.0
        %1469 = vmatpush2.msra.mxu0 0.0
        %1470 = vmatprep.subr.mxu0 0.0
        %1471 = vmatpush2.msra.mxu0 0.0
        %1472 = vmatprep.subr.mxu0 0.0
        %1473 = vmatpush2.msra.mxu0 0.0
        %1474 = vmatprep.subr.mxu0 0.0
        %1475 = vmatpush2.msra.mxu0 0.0
        %1476 = vmatprep.subr.mxu0 0.0
        %1477 = vmatpush2.msra.mxu0 0.0
        %1478 = vmatprep.subr.mxu0 0.0
        %1479 = vmatpush2.msra.mxu0 0.0
        %1480 = vmatprep.mubr.f32.mxu0 0.0
        %1481 = vmatmul.mubr.f32.gmra.mxu0 %v912
        %v1482 = vpop.f32.mrf.mxu0
        %v1483 = vadd.f32 0.0, %v1482
        %v1484 = vpop.f32.mrf.mxu0
        %v1485 = vadd.f32 0.0, %v1484
        %1486 = vmatprep.mubr.f32.mxu0 0.0
        %1487 = vmatmul.mubr.f32.gmra.mxu0 %v915
        %v1488 = vpop.f32.mrf.mxu0
        %v1489 = vadd.f32 0.0, %v1488
        %v1490 = vpop.f32.mrf.mxu0
        %v1491 = vadd.f32 0.0, %v1490
        %1492 = vmatprep.mubr.f32.mxu0 0.0
        %1493 = vmatmul.mubr.f32.gmra.mxu0 %v918
        %v1494 = vpop.f32.mrf.mxu0
        %v1495 = vadd.f32 0.0, %v1494
        %v1496 = vpop.f32.mrf.mxu0
        %v1497 = vadd.f32 0.0, %v1496
        %1498 = vmatprep.mubr.f32.mxu0 0.0
        %1499 = vmatmul.mubr.f32.gmra.mxu0 %v921
        %v1500 = vpop.f32.mrf.mxu0
        %v1501 = vadd.f32 0.0, %v1500
        %v1502 = vpop.f32.mrf.mxu0
        %v1503 = vadd.f32 0.0, %v1502
        %1504 = vmatprep.mubr.f32.mxu0 0.0
        %1505 = vmatmul.mubr.f32.gmra.mxu0 %v924
        %v1506 = vpop.f32.mrf.mxu0
        %v1507 = vadd.f32 0.0, %v1506
        %v1508 = vpop.f32.mrf.mxu0
        %v1509 = vadd.f32 0.0, %v1508
        %1510 = vdwg.mxu0
        %v1511 = vadd.f32 %v1349, %v1483
        %v1512 = vadd.f32 %v1351, %v1485
        %v1513 = vadd.f32 %v1355, %v1489
        %v1514 = vadd.f32 %v1357, %v1491
        %v1515 = vadd.f32 %v1361, %v1495
        %v1516 = vadd.f32 %v1363, %v1497
        %v1517 = vadd.f32 %v1367, %v1501
        %v1518 = vadd.f32 %v1369, %v1503
        %v1519 = vadd.f32 %v1373, %v1507
        %v1520 = vadd.f32 %v1375, %v1509
        %v1521 = vadd.f32 %v1511, %v1041
        %v1522 = vadd.f32 %v1512, %v1045
        %v1523 = vadd.f32 %v1513, %v1041
        %v1524 = vadd.f32 %v1514, %v1045
        %v1525 = vadd.f32 %v1515, %v1041
        %v1526 = vadd.f32 %v1516, %v1045
        %v1527 = vadd.f32 %v1517, %v1041
        %v1528 = vadd.f32 %v1518, %v1045
        %v1529 = vadd.f32 %v1519, %v1041
        %v1530 = vadd.f32 %v1520, %v1045
        %v1531 = vmax.f32 %v1521, 0.0
        %v1532 = vmax.f32 %v1522, 0.0
        %v1533 = vmax.f32 %v1523, 0.0
        %v1534 = vmax.f32 %v1524, 0.0
        %v1535 = vmax.f32 %v1525, 0.0
        %v1536 = vmax.f32 %v1526, 0.0
        %v1537 = vmax.f32 %v1527, 0.0
        %v1538 = vmax.f32 %v1528, 0.0
        %v1539 = vmax.f32 %v1529, 0.0
        %v1540 = vmax.f32 %v1530, 0.0
        %v1541 = vmul.f32 %v1531, %v1072
        %v1542 = vmul.f32 %v1532, %v1076
        %v1543 = vmul.f32 %v1533, %v1072
        %v1544 = vmul.f32 %v1534, %v1076
        %v1545 = vmul.f32 %v1535, %v1072
        %v1546 = vmul.f32 %v1536, %v1076
        %v1547 = vmul.f32 %v1537, %v1072
        %v1548 = vmul.f32 %v1538, %v1076
        %v1549 = vmul.f32 %v1539, %v1072
        %v1550 = vmul.f32 %v1540, %v1076
        %v1551 = vadd.f32 %v1541, %v1093
        %v1552 = vadd.f32 %v1542, %v1097
        %v1553 = vadd.f32 %v1543, %v1093
        %v1554 = vadd.f32 %v1544, %v1097
        %v1555 = vadd.f32 %v1545, %v1093
        %v1556 = vadd.f32 %v1546, %v1097
        %v1557 = vadd.f32 %v1547, %v1093
        %v1558 = vadd.f32 %v1548, %v1097
        %v1559 = vadd.f32 %v1549, %v1093
        %v1560 = vadd.f32 %v1550, %v1097
        %v1561 = vmax.f32 %v1100, %v1551
        %v1562 = vmax.f32 %v1101, %v1552
        %v1563 = vmax.f32 %v1102, %v1553
        %v1564 = vmax.f32 %v1103, %v1554
        %v1565 = vmax.f32 %v1104, %v1555
        %v1566 = vmax.f32 %v1105, %v1556
        %v1567 = vmax.f32 %v1106, %v1557
        %v1568 = vmax.f32 %v1107, %v1558
        %v1569 = vmax.f32 %v1108, %v1559
        %v1570 = vmax.f32 %v1109, %v1560
        %v1581 = vcombine.low %v1561, %v1562
        %v1582 = vcombine.high %v1561, %v1562
        %v1584 = vunpack.c.l.s4 1983009808
        %v1585 = vunpack.c.0.s8 %v1584
        %v1586 = vlaneseq
        %v1587 = vshrl.u32 %v1586, 7
        %v1588 = vsub.s32 %v1585, %v1587
        %v1589 = vrot.slane %v1581, %v1588
        %v1591 = vunpack.c.l.s4 1983009808
        %v1592 = vunpack.c.0.s8 %v1591
        %v1593 = vlaneseq
        %v1594 = vshrl.u32 %v1593, 7
        %v1595 = vsub.s32 %v1592, %v1594
        %v1596 = vrot.slane %v1582, %v1595
        %v1597 = vcombine.high %v1589, %v1589
        %v1598 = vcombine.high %v1596, %v1596
        %v1599 = vcombine.low %v1563, %v1564
        %v1600 = vcombine.high %v1563, %v1564
        %v1602 = vunpack.c.l.s4 1983009808
        %v1603 = vunpack.c.0.s8 %v1602
        %v1604 = vlaneseq
        %v1605 = vshrl.u32 %v1604, 7
        %v1606 = vsub.s32 %v1603, %v1605
        %v1607 = vrot.slane %v1599, %v1606
        %v1609 = vunpack.c.l.s4 1983009808
        %v1610 = vunpack.c.0.s8 %v1609
        %v1611 = vlaneseq
        %v1612 = vshrl.u32 %v1611, 7
        %v1613 = vsub.s32 %v1610, %v1612
        %v1614 = vrot.slane %v1600, %v1613
        %v1615 = vcombine.high %v1607, %v1607
        %v1616 = vcombine.high %v1614, %v1614
        %v1617 = vcombine.low %v1565, %v1566
        %v1618 = vcombine.high %v1565, %v1566
        %v1620 = vunpack.c.l.s4 1983009808
        %v1621 = vunpack.c.0.s8 %v1620
        %v1622 = vlaneseq
        %v1623 = vshrl.u32 %v1622, 7
        %v1624 = vsub.s32 %v1621, %v1623
        %v1625 = vrot.slane %v1617, %v1624
        %v1627 = vunpack.c.l.s4 1983009808
        %v1628 = vunpack.c.0.s8 %v1627
        %v1629 = vlaneseq
        %v1630 = vshrl.u32 %v1629, 7
        %v1631 = vsub.s32 %v1628, %v1630
        %v1632 = vrot.slane %v1618, %v1631
        %v1633 = vcombine.high %v1625, %v1625
        %v1634 = vcombine.high %v1632, %v1632
        %v1635 = vcombine.low %v1567, %v1568
        %v1636 = vcombine.high %v1567, %v1568
        %v1638 = vunpack.c.l.s4 1983009808
        %v1639 = vunpack.c.0.s8 %v1638
        %v1640 = vlaneseq
        %v1641 = vshrl.u32 %v1640, 7
        %v1642 = vsub.s32 %v1639, %v1641
        %v1643 = vrot.slane %v1635, %v1642
        %v1645 = vunpack.c.l.s4 1983009808
        %v1646 = vunpack.c.0.s8 %v1645
        %v1647 = vlaneseq
        %v1648 = vshrl.u32 %v1647, 7
        %v1649 = vsub.s32 %v1646, %v1648
        %v1650 = vrot.slane %v1636, %v1649
        %v1651 = vcombine.high %v1643, %v1643
        %v1652 = vcombine.high %v1650, %v1650
        %v1653 = vcombine.low %v1569, %v1570
        %v1654 = vcombine.high %v1569, %v1570
        %v1656 = vunpack.c.l.s4 1983009808
        %v1657 = vunpack.c.0.s8 %v1656
        %v1658 = vlaneseq
        %v1659 = vshrl.u32 %v1658, 7
        %v1660 = vsub.s32 %v1657, %v1659
        %v1661 = vrot.slane %v1653, %v1660
        %v1663 = vunpack.c.l.s4 1983009808
        %v1664 = vunpack.c.0.s8 %v1663
        %v1665 = vlaneseq
        %v1666 = vshrl.u32 %v1665, 7
        %v1667 = vsub.s32 %v1664, %v1666
        %v1668 = vrot.slane %v1654, %v1667
        %v1669 = vcombine.high %v1661, %v1661
        %v1670 = vcombine.high %v1668, %v1668
        %v1672 = vunpack.c.l.s4 1983009808
        %v1673 = vunpack.c.0.s8 %v1672
        %v1674 = vlaneseq
        %v1675 = vshrl.u32 %v1674, 7
        %v1676 = vsub.s32 %v1673, %v1675
        %v1677 = vrot.slane %v1589, %v1676
        %v1678 = vcombine.high %v1677, %v1677
        %v1680 = vunpack.c.l.s4 1983009808
        %v1681 = vunpack.c.0.s8 %v1680
        %v1682 = vlaneseq
        %v1683 = vshrl.u32 %v1682, 7
        %v1684 = vsub.s32 %v1681, %v1683
        %v1685 = vrot.slane %v1597, %v1684
        %v1686 = vcombine.high %v1685, %v1685
        %v1688 = vunpack.c.l.s4 1983009808
        %v1689 = vunpack.c.0.s8 %v1688
        %v1690 = vlaneseq
        %v1691 = vshrl.u32 %v1690, 7
        %v1692 = vsub.s32 %v1689, %v1691
        %v1693 = vrot.slane %v1596, %v1692
        %v1694 = vcombine.high %v1693, %v1693
        %v1696 = vunpack.c.l.s4 1983009808
        %v1697 = vunpack.c.0.s8 %v1696
        %v1698 = vlaneseq
        %v1699 = vshrl.u32 %v1698, 7
        %v1700 = vsub.s32 %v1697, %v1699
        %v1701 = vrot.slane %v1598, %v1700
        %v1702 = vcombine.high %v1701, %v1701
        %v1704 = vunpack.c.l.s4 1983009808
        %v1705 = vunpack.c.0.s8 %v1704
        %v1706 = vlaneseq
        %v1707 = vshrl.u32 %v1706, 7
        %v1708 = vsub.s32 %v1705, %v1707
        %v1709 = vrot.slane %v1607, %v1708
        %v1710 = vcombine.high %v1709, %v1709
        %v1712 = vunpack.c.l.s4 1983009808
        %v1713 = vunpack.c.0.s8 %v1712
        %v1714 = vlaneseq
        %v1715 = vshrl.u32 %v1714, 7
        %v1716 = vsub.s32 %v1713, %v1715
        %v1717 = vrot.slane %v1615, %v1716
        %v1718 = vcombine.high %v1717, %v1717
        %v1720 = vunpack.c.l.s4 1983009808
        %v1721 = vunpack.c.0.s8 %v1720
        %v1722 = vlaneseq
        %v1723 = vshrl.u32 %v1722, 7
        %v1724 = vsub.s32 %v1721, %v1723
        %v1725 = vrot.slane %v1614, %v1724
        %v1726 = vcombine.high %v1725, %v1725
        %v1728 = vunpack.c.l.s4 1983009808
        %v1729 = vunpack.c.0.s8 %v1728
        %v1730 = vlaneseq
        %v1731 = vshrl.u32 %v1730, 7
        %v1732 = vsub.s32 %v1729, %v1731
        %v1733 = vrot.slane %v1616, %v1732
        %v1734 = vcombine.high %v1733, %v1733
        %v1736 = vunpack.c.l.s4 1983009808
        %v1737 = vunpack.c.0.s8 %v1736
        %v1738 = vlaneseq
        %v1739 = vshrl.u32 %v1738, 7
        %v1740 = vsub.s32 %v1737, %v1739
        %v1741 = vrot.slane %v1625, %v1740
        %v1742 = vcombine.high %v1741, %v1741
        %v1744 = vunpack.c.l.s4 1983009808
        %v1745 = vunpack.c.0.s8 %v1744
        %v1746 = vlaneseq
        %v1747 = vshrl.u32 %v1746, 7
        %v1748 = vsub.s32 %v1745, %v1747
        %v1749 = vrot.slane %v1633, %v1748
        %v1750 = vcombine.high %v1749, %v1749
        %v1752 = vunpack.c.l.s4 1983009808
        %v1753 = vunpack.c.0.s8 %v1752
        %v1754 = vlaneseq
        %v1755 = vshrl.u32 %v1754, 7
        %v1756 = vsub.s32 %v1753, %v1755
        %v1757 = vrot.slane %v1632, %v1756
        %v1758 = vcombine.high %v1757, %v1757
        %v1760 = vunpack.c.l.s4 1983009808
        %v1761 = vunpack.c.0.s8 %v1760
        %v1762 = vlaneseq
        %v1763 = vshrl.u32 %v1762, 7
        %v1764 = vsub.s32 %v1761, %v1763
        %v1765 = vrot.slane %v1634, %v1764
        %v1766 = vcombine.high %v1765, %v1765
        %v1768 = vunpack.c.l.s4 1983009808
        %v1769 = vunpack.c.0.s8 %v1768
        %v1770 = vlaneseq
        %v1771 = vshrl.u32 %v1770, 7
        %v1772 = vsub.s32 %v1769, %v1771
        %v1773 = vrot.slane %v1643, %v1772
        %v1774 = vcombine.high %v1773, %v1773
        %v1776 = vunpack.c.l.s4 1983009808
        %v1777 = vunpack.c.0.s8 %v1776
        %v1778 = vlaneseq
        %v1779 = vshrl.u32 %v1778, 7
        %v1780 = vsub.s32 %v1777, %v1779
        %v1781 = vrot.slane %v1651, %v1780
        %v1782 = vcombine.high %v1781, %v1781
        %v1784 = vunpack.c.l.s4 1983009808
        %v1785 = vunpack.c.0.s8 %v1784
        %v1786 = vlaneseq
        %v1787 = vshrl.u32 %v1786, 7
        %v1788 = vsub.s32 %v1785, %v1787
        %v1789 = vrot.slane %v1650, %v1788
        %v1790 = vcombine.high %v1789, %v1789
        %v1792 = vunpack.c.l.s4 1983009808
        %v1793 = vunpack.c.0.s8 %v1792
        %v1794 = vlaneseq
        %v1795 = vshrl.u32 %v1794, 7
        %v1796 = vsub.s32 %v1793, %v1795
        %v1797 = vrot.slane %v1652, %v1796
        %v1798 = vcombine.high %v1797, %v1797
        %v1800 = vunpack.c.l.s4 1983009808
        %v1801 = vunpack.c.0.s8 %v1800
        %v1802 = vlaneseq
        %v1803 = vshrl.u32 %v1802, 7
        %v1804 = vsub.s32 %v1801, %v1803
        %v1805 = vrot.slane %v1661, %v1804
        %v1806 = vcombine.high %v1805, %v1805
        %v1808 = vunpack.c.l.s4 1983009808
        %v1809 = vunpack.c.0.s8 %v1808
        %v1810 = vlaneseq
        %v1811 = vshrl.u32 %v1810, 7
        %v1812 = vsub.s32 %v1809, %v1811
        %v1813 = vrot.slane %v1669, %v1812
        %v1814 = vcombine.high %v1813, %v1813
        %v1816 = vunpack.c.l.s4 1983009808
        %v1817 = vunpack.c.0.s8 %v1816
        %v1818 = vlaneseq
        %v1819 = vshrl.u32 %v1818, 7
        %v1820 = vsub.s32 %v1817, %v1819
        %v1821 = vrot.slane %v1668, %v1820
        %v1822 = vcombine.high %v1821, %v1821
        %v1824 = vunpack.c.l.s4 1983009808
        %v1825 = vunpack.c.0.s8 %v1824
        %v1826 = vlaneseq
        %v1827 = vshrl.u32 %v1826, 7
        %v1828 = vsub.s32 %v1825, %v1827
        %v1829 = vrot.slane %v1670, %v1828
        %v1830 = vcombine.high %v1829, %v1829
        %vm1871 = vcmask 1041408
        %v1872 = vsel %vm1871, %v1677, -inf
        %v1873 = vrot.slane %v1872, 4
        %v1874 = vmax.f32 %v1872, %v1873
        %v1875 = vrot.slane %v1874, 2
        %v1876 = vmax.f32 %v1874, %v1875
        %v1877 = vrot.slane %v1876, 1
        %v1878 = vmax.f32 %v1876, %v1877
        %vm1879 = vcmask 386048
        %v1880 = vsel %vm1879, %v1678, -inf
        %v1881 = vrot.slane %v1880, 4
        %v1882 = vmax.f32 %v1880, %v1881
        %v1883 = vrot.slane %v1882, 2
        %v1884 = vmax.f32 %v1882, %v1883
        %v1885 = vrot.slane %v1884, 1
        %v1886 = vmax.f32 %v1884, %v1885
        %v1887 = vsel %vm1871, %v1685, -inf
        %v1888 = vrot.slane %v1887, 4
        %v1889 = vmax.f32 %v1887, %v1888
        %v1890 = vrot.slane %v1889, 2
        %v1891 = vmax.f32 %v1889, %v1890
        %v1892 = vrot.slane %v1891, 1
        %v1893 = vmax.f32 %v1891, %v1892
        %v1894 = vsel %vm1879, %v1686, -inf
        %v1895 = vrot.slane %v1894, 4
        %v1896 = vmax.f32 %v1894, %v1895
        %v1897 = vrot.slane %v1896, 2
        %v1898 = vmax.f32 %v1896, %v1897
        %v1899 = vrot.slane %v1898, 1
        %v1900 = vmax.f32 %v1898, %v1899
        %v1901 = vsel %vm1871, %v1693, -inf
        %v1902 = vrot.slane %v1901, 4
        %v1903 = vmax.f32 %v1901, %v1902
        %v1904 = vrot.slane %v1903, 2
        %v1905 = vmax.f32 %v1903, %v1904
        %v1906 = vrot.slane %v1905, 1
        %v1907 = vmax.f32 %v1905, %v1906
        %v1908 = vsel %vm1879, %v1694, -inf
        %v1909 = vrot.slane %v1908, 4
        %v1910 = vmax.f32 %v1908, %v1909
        %v1911 = vrot.slane %v1910, 2
        %v1912 = vmax.f32 %v1910, %v1911
        %v1913 = vrot.slane %v1912, 1
        %v1914 = vmax.f32 %v1912, %v1913
        %v1915 = vsel %vm1871, %v1701, -inf
        %v1916 = vrot.slane %v1915, 4
        %v1917 = vmax.f32 %v1915, %v1916
        %v1918 = vrot.slane %v1917, 2
        %v1919 = vmax.f32 %v1917, %v1918
        %v1920 = vrot.slane %v1919, 1
        %v1921 = vmax.f32 %v1919, %v1920
        %v1922 = vsel %vm1879, %v1702, -inf
        %v1923 = vrot.slane %v1922, 4
        %v1924 = vmax.f32 %v1922, %v1923
        %v1925 = vrot.slane %v1924, 2
        %v1926 = vmax.f32 %v1924, %v1925
        %v1927 = vrot.slane %v1926, 1
        %v1928 = vmax.f32 %v1926, %v1927
        %v1929 = vsel %vm1871, %v1709, -inf
        %v1930 = vrot.slane %v1929, 4
        %v1931 = vmax.f32 %v1929, %v1930
        %v1932 = vrot.slane %v1931, 2
        %v1933 = vmax.f32 %v1931, %v1932
        %v1934 = vrot.slane %v1933, 1
        %v1935 = vmax.f32 %v1933, %v1934
        %v1936 = vsel %vm1879, %v1710, -inf
        %v1937 = vrot.slane %v1936, 4
        %v1938 = vmax.f32 %v1936, %v1937
        %v1939 = vrot.slane %v1938, 2
        %v1940 = vmax.f32 %v1938, %v1939
        %v1941 = vrot.slane %v1940, 1
        %v1942 = vmax.f32 %v1940, %v1941
        %v1943 = vsel %vm1871, %v1717, -inf
        %v1944 = vrot.slane %v1943, 4
        %v1945 = vmax.f32 %v1943, %v1944
        %v1946 = vrot.slane %v1945, 2
        %v1947 = vmax.f32 %v1945, %v1946
        %v1948 = vrot.slane %v1947, 1
        %v1949 = vmax.f32 %v1947, %v1948
        %v1950 = vsel %vm1879, %v1718, -inf
        %v1951 = vrot.slane %v1950, 4
        %v1952 = vmax.f32 %v1950, %v1951
        %v1953 = vrot.slane %v1952, 2
        %v1954 = vmax.f32 %v1952, %v1953
        %v1955 = vrot.slane %v1954, 1
        %v1956 = vmax.f32 %v1954, %v1955
        %v1957 = vsel %vm1871, %v1725, -inf
        %v1958 = vrot.slane %v1957, 4
        %v1959 = vmax.f32 %v1957, %v1958
        %v1960 = vrot.slane %v1959, 2
        %v1961 = vmax.f32 %v1959, %v1960
        %v1962 = vrot.slane %v1961, 1
        %v1963 = vmax.f32 %v1961, %v1962
        %v1964 = vsel %vm1879, %v1726, -inf
        %v1965 = vrot.slane %v1964, 4
        %v1966 = vmax.f32 %v1964, %v1965
        %v1967 = vrot.slane %v1966, 2
        %v1968 = vmax.f32 %v1966, %v1967
        %v1969 = vrot.slane %v1968, 1
        %v1970 = vmax.f32 %v1968, %v1969
        %v1971 = vsel %vm1871, %v1733, -inf
        %v1972 = vrot.slane %v1971, 4
        %v1973 = vmax.f32 %v1971, %v1972
        %v1974 = vrot.slane %v1973, 2
        %v1975 = vmax.f32 %v1973, %v1974
        %v1976 = vrot.slane %v1975, 1
        %v1977 = vmax.f32 %v1975, %v1976
        %v1978 = vsel %vm1879, %v1734, -inf
        %v1979 = vrot.slane %v1978, 4
        %v1980 = vmax.f32 %v1978, %v1979
        %v1981 = vrot.slane %v1980, 2
        %v1982 = vmax.f32 %v1980, %v1981
        %v1983 = vrot.slane %v1982, 1
        %v1984 = vmax.f32 %v1982, %v1983
        %v1985 = vsel %vm1871, %v1741, -inf
        %v1986 = vrot.slane %v1985, 4
        %v1987 = vmax.f32 %v1985, %v1986
        %v1988 = vrot.slane %v1987, 2
        %v1989 = vmax.f32 %v1987, %v1988
        %v1990 = vrot.slane %v1989, 1
        %v1991 = vmax.f32 %v1989, %v1990
        %v1992 = vsel %vm1879, %v1742, -inf
        %v1993 = vrot.slane %v1992, 4
        %v1994 = vmax.f32 %v1992, %v1993
        %v1995 = vrot.slane %v1994, 2
        %v1996 = vmax.f32 %v1994, %v1995
        %v1997 = vrot.slane %v1996, 1
        %v1998 = vmax.f32 %v1996, %v1997
        %v1999 = vsel %vm1871, %v1749, -inf
        %v2000 = vrot.slane %v1999, 4
        %v2001 = vmax.f32 %v1999, %v2000
        %v2002 = vrot.slane %v2001, 2
        %v2003 = vmax.f32 %v2001, %v2002
        %v2004 = vrot.slane %v2003, 1
        %v2005 = vmax.f32 %v2003, %v2004
        %v2006 = vsel %vm1879, %v1750, -inf
        %v2007 = vrot.slane %v2006, 4
        %v2008 = vmax.f32 %v2006, %v2007
        %v2009 = vrot.slane %v2008, 2
        %v2010 = vmax.f32 %v2008, %v2009
        %v2011 = vrot.slane %v2010, 1
        %v2012 = vmax.f32 %v2010, %v2011
        %v2013 = vsel %vm1871, %v1757, -inf
        %v2014 = vrot.slane %v2013, 4
        %v2015 = vmax.f32 %v2013, %v2014
        %v2016 = vrot.slane %v2015, 2
        %v2017 = vmax.f32 %v2015, %v2016
        %v2018 = vrot.slane %v2017, 1
        %v2019 = vmax.f32 %v2017, %v2018
        %v2020 = vsel %vm1879, %v1758, -inf
        %v2021 = vrot.slane %v2020, 4
        %v2022 = vmax.f32 %v2020, %v2021
        %v2023 = vrot.slane %v2022, 2
        %v2024 = vmax.f32 %v2022, %v2023
        %v2025 = vrot.slane %v2024, 1
        %v2026 = vmax.f32 %v2024, %v2025
        %v2027 = vsel %vm1871, %v1765, -inf
        %v2028 = vrot.slane %v2027, 4
        %v2029 = vmax.f32 %v2027, %v2028
        %v2030 = vrot.slane %v2029, 2
        %v2031 = vmax.f32 %v2029, %v2030
        %v2032 = vrot.slane %v2031, 1
        %v2033 = vmax.f32 %v2031, %v2032
        %v2034 = vsel %vm1879, %v1766, -inf
        %v2035 = vrot.slane %v2034, 4
        %v2036 = vmax.f32 %v2034, %v2035
        %v2037 = vrot.slane %v2036, 2
        %v2038 = vmax.f32 %v2036, %v2037
        %v2039 = vrot.slane %v2038, 1
        %v2040 = vmax.f32 %v2038, %v2039
        %v2041 = vsel %vm1871, %v1773, -inf
        %v2042 = vrot.slane %v2041, 4
        %v2043 = vmax.f32 %v2041, %v2042
        %v2044 = vrot.slane %v2043, 2
        %v2045 = vmax.f32 %v2043, %v2044
        %v2046 = vrot.slane %v2045, 1
        %v2047 = vmax.f32 %v2045, %v2046
        %v2048 = vsel %vm1879, %v1774, -inf
        %v2049 = vrot.slane %v2048, 4
        %v2050 = vmax.f32 %v2048, %v2049
        %v2051 = vrot.slane %v2050, 2
        %v2052 = vmax.f32 %v2050, %v2051
        %v2053 = vrot.slane %v2052, 1
        %v2054 = vmax.f32 %v2052, %v2053
        %v2055 = vsel %vm1871, %v1781, -inf
        %v2056 = vrot.slane %v2055, 4
        %v2057 = vmax.f32 %v2055, %v2056
        %v2058 = vrot.slane %v2057, 2
        %v2059 = vmax.f32 %v2057, %v2058
        %v2060 = vrot.slane %v2059, 1
        %v2061 = vmax.f32 %v2059, %v2060
        %v2062 = vsel %vm1879, %v1782, -inf
        %v2063 = vrot.slane %v2062, 4
        %v2064 = vmax.f32 %v2062, %v2063
        %v2065 = vrot.slane %v2064, 2
        %v2066 = vmax.f32 %v2064, %v2065
        %v2067 = vrot.slane %v2066, 1
        %v2068 = vmax.f32 %v2066, %v2067
        %v2069 = vsel %vm1871, %v1789, -inf
        %v2070 = vrot.slane %v2069, 4
        %v2071 = vmax.f32 %v2069, %v2070
        %v2072 = vrot.slane %v2071, 2
        %v2073 = vmax.f32 %v2071, %v2072
        %v2074 = vrot.slane %v2073, 1
        %v2075 = vmax.f32 %v2073, %v2074
        %v2076 = vsel %vm1879, %v1790, -inf
        %v2077 = vrot.slane %v2076, 4
        %v2078 = vmax.f32 %v2076, %v2077
        %v2079 = vrot.slane %v2078, 2
        %v2080 = vmax.f32 %v2078, %v2079
        %v2081 = vrot.slane %v2080, 1
        %v2082 = vmax.f32 %v2080, %v2081
        %v2083 = vsel %vm1871, %v1797, -inf
        %v2084 = vrot.slane %v2083, 4
        %v2085 = vmax.f32 %v2083, %v2084
        %v2086 = vrot.slane %v2085, 2
        %v2087 = vmax.f32 %v2085, %v2086
        %v2088 = vrot.slane %v2087, 1
        %v2089 = vmax.f32 %v2087, %v2088
        %v2090 = vsel %vm1879, %v1798, -inf
        %v2091 = vrot.slane %v2090, 4
        %v2092 = vmax.f32 %v2090, %v2091
        %v2093 = vrot.slane %v2092, 2
        %v2094 = vmax.f32 %v2092, %v2093
        %v2095 = vrot.slane %v2094, 1
        %v2096 = vmax.f32 %v2094, %v2095
        %v2097 = vsel %vm1871, %v1805, -inf
        %v2098 = vrot.slane %v2097, 4
        %v2099 = vmax.f32 %v2097, %v2098
        %v2100 = vrot.slane %v2099, 2
        %v2101 = vmax.f32 %v2099, %v2100
        %v2102 = vrot.slane %v2101, 1
        %v2103 = vmax.f32 %v2101, %v2102
        %v2104 = vsel %vm1879, %v1806, -inf
        %v2105 = vrot.slane %v2104, 4
        %v2106 = vmax.f32 %v2104, %v2105
        %v2107 = vrot.slane %v2106, 2
        %v2108 = vmax.f32 %v2106, %v2107
        %v2109 = vrot.slane %v2108, 1
        %v2110 = vmax.f32 %v2108, %v2109
        %v2111 = vsel %vm1871, %v1813, -inf
        %v2112 = vrot.slane %v2111, 4
        %v2113 = vmax.f32 %v2111, %v2112
        %v2114 = vrot.slane %v2113, 2
        %v2115 = vmax.f32 %v2113, %v2114
        %v2116 = vrot.slane %v2115, 1
        %v2117 = vmax.f32 %v2115, %v2116
        %v2118 = vsel %vm1879, %v1814, -inf
        %v2119 = vrot.slane %v2118, 4
        %v2120 = vmax.f32 %v2118, %v2119
        %v2121 = vrot.slane %v2120, 2
        %v2122 = vmax.f32 %v2120, %v2121
        %v2123 = vrot.slane %v2122, 1
        %v2124 = vmax.f32 %v2122, %v2123
        %v2125 = vsel %vm1871, %v1821, -inf
        %v2126 = vrot.slane %v2125, 4
        %v2127 = vmax.f32 %v2125, %v2126
        %v2128 = vrot.slane %v2127, 2
        %v2129 = vmax.f32 %v2127, %v2128
        %v2130 = vrot.slane %v2129, 1
        %v2131 = vmax.f32 %v2129, %v2130
        %v2132 = vsel %vm1879, %v1822, -inf
        %v2133 = vrot.slane %v2132, 4
        %v2134 = vmax.f32 %v2132, %v2133
        %v2135 = vrot.slane %v2134, 2
        %v2136 = vmax.f32 %v2134, %v2135
        %v2137 = vrot.slane %v2136, 1
        %v2138 = vmax.f32 %v2136, %v2137
        %v2139 = vsel %vm1871, %v1829, -inf
        %v2140 = vrot.slane %v2139, 4
        %v2141 = vmax.f32 %v2139, %v2140
        %v2142 = vrot.slane %v2141, 2
        %v2143 = vmax.f32 %v2141, %v2142
        %v2144 = vrot.slane %v2143, 1
        %v2145 = vmax.f32 %v2143, %v2144
        %v2146 = vsel %vm1879, %v1830, -inf
        %v2147 = vrot.slane %v2146, 4
        %v2148 = vmax.f32 %v2146, %v2147
        %v2149 = vrot.slane %v2148, 2
        %v2150 = vmax.f32 %v2148, %v2149
        %v2151 = vrot.slane %v2150, 1
        %v2152 = vmax.f32 %v2150, %v2151
        %vm2193 = vcmask 1042434
        %v2194 = vsel %vm2193, %v1893, %v1878
        %vm2195 = vcmask 1043459
        %v2196 = vsel %vm2195, %v1907, %v2194
        %vm2197 = vcmask 1044484
        %v2198 = vsel %vm2197, %v1921, %v2196
        %vm2199 = vcmask 1045509
        %v2200 = vsel %vm2199, %v1935, %v2198
        %vm2201 = vcmask 1046534
        %v2202 = vsel %vm2201, %v1949, %v2200
        %vm2203 = vcmask 1047559
        %v2204 = vsel %vm2203, %v1963, %v2202
        %v2205 = vsel %vm2193, %v1900, %v1886
        %v2206 = vsel %vm2195, %v1914, %v2205
        %v2207 = vsel %vm2197, %v1928, %v2206
        %v2208 = vsel %vm2199, %v1942, %v2207
        %v2209 = vsel %vm2201, %v1956, %v2208
        %v2210 = vsel %vm2203, %v1970, %v2209
        %vm2211 = vcmask 1041409
        %v2212 = vsel %vm2211, %v1991, %v1977
        %v2213 = vsel %vm2193, %v2005, %v2212
        %v2214 = vsel %vm2195, %v2019, %v2213
        %v2215 = vsel %vm2197, %v2033, %v2214
        %v2216 = vsel %vm2199, %v2047, %v2215
        %v2217 = vsel %vm2201, %v2061, %v2216
        %v2218 = vsel %vm2203, %v2075, %v2217
        %v2219 = vsel %vm2211, %v1998, %v1984
        %v2220 = vsel %vm2193, %v2012, %v2219
        %v2221 = vsel %vm2195, %v2026, %v2220
        %v2222 = vsel %vm2197, %v2040, %v2221
        %v2223 = vsel %vm2199, %v2054, %v2222
        %v2224 = vsel %vm2201, %v2068, %v2223
        %v2225 = vsel %vm2203, %v2082, %v2224
        %v2226 = vsel %vm2211, %v2103, %v2089
        %v2227 = vsel %vm2193, %v2117, %v2226
        %v2228 = vsel %vm2195, %v2131, %v2227
        %v2229 = vsel %vm2197, %v2145, %v2228
        %v2230 = vsel %vm2211, %v2110, %v2096
        %v2231 = vsel %vm2193, %v2124, %v2230
        %v2232 = vsel %vm2195, %v2138, %v2231
        %v2233 = vsel %vm2197, %v2152, %v2232
        %2240 = vst [vmem:[#allocation2] sm:$0xfe] %v2204
        %vm2241 = vcmask 392193
        %2242 = vst.msk [vmem:[#allocation2 + $0x8] sm:$0xfe] %vm2241, %v2210
        %2243 = vst [vmem:[#allocation2 + $0x10] sm:$0xff] %v2218
        %vm2244 = vcmask 392192
        %2245 = vst.msk [vmem:[#allocation2 + $0x18] sm:$0xff] %vm2244, %v2225
        %2246 = vst [vmem:[#allocation2 + $0x20] sm:$0x1f] %v2229
        %vm2247 = vcmask 389120
        %2248 = vst.msk [vmem:[#allocation2 + $0x28] sm:$0x1f] %vm2247, %v2233
        %v2249 = vlaneseq
        %vm2250 = vcmp.ge.s32.totalorder %v2249, 0
        %vm2251 = vcmp.lt.s32.totalorder %v2249, 176
        %vm2252 = vmand %vm2250, %vm2251
        %2253 = vst.msk [vmem:[#allocation2] ss:$8 sm:$0x3] %vm2252, 0.0
        %2254 = vst.msk [vmem:[#allocation2] ss:$8 sm:$0x0] %vm2252, 0.0
        %s2255 = scalar_lea.vmem [#allocation2], 37
        %2256 = vst.msk [vmem:[%s2255] ss:$8 sm:$0x3] %vm2252, 0.0
        %2257 = vst.msk [vmem:[%s2255] ss:$8 sm:$0x0] %vm2252, 0.0
        %v2258 = vld [vmem:[%s6] ss:$4 sm:$0x3]
        %s2259 = scalar_lea.vmem %s6, 1
        %v2260 = vld [vmem:[%s2259] ss:$4 sm:$0x3]
        %s2261 = scalar_lea.vmem %s6, 2
        %v2262 = vld [vmem:[%s2261] ss:$4 sm:$0x3]
        %v2263 = vld [vmem:[#allocation2] sm:$0xff]
        %v2264 = vld [vmem:[#allocation2 + $0x8] sm:$0xff]
        %v2265 = vld [vmem:[#allocation2 + $0x10] sm:$0xff]
        %v2266 = vld [vmem:[#allocation2 + $0x18] sm:$0xff]
        %v2267 = vld [vmem:[#allocation2 + $0x20] sm:$0xf]
        %v2268 = vld [vmem:[#allocation2 + $0x28] sm:$0xf]
        %v2269 = vld [vmem:[%s4] sm:$0xff]
        %v2270 = vld [vmem:[%s4 + $0x8] sm:$0xff]
        %v2271 = vld [vmem:[%s4 + $0x10] sm:$0xff]
        %v2272 = vld [vmem:[%s4 + $0x18] sm:$0xff]
        %v2273 = vld [vmem:[%s4 + $0x20] sm:$0xff]
        %v2274 = vld [vmem:[%s4 + $0x28] sm:$0xff]
        %v2275 = vld [vmem:[%s4 + $0x30] sm:$0xff]
        %v2276 = vld [vmem:[%s4 + $0x38] sm:$0xff]
        %v2277 = vld [vmem:[%s4 + $0x40] sm:$0xff]
        %v2278 = vld [vmem:[%s4 + $0x48] sm:$0xff]
        %v2279 = vld [vmem:[%s4 + $0x50] sm:$0xff]
        %v2280 = vld [vmem:[%s4 + $0x58] sm:$0xff]
        %v2281 = vld [vmem:[%s4 + $0x60] sm:$0xff]
        %v2282 = vld [vmem:[%s4 + $0x68] sm:$0xff]
        %v2283 = vld [vmem:[%s4 + $0x70] sm:$0xff]
        %v2284 = vld [vmem:[%s4 + $0x78] sm:$0xff]
        %v2285 = vld [vmem:[%s4 + $0x80] sm:$0xff]
        %v2286 = vld [vmem:[%s4 + $0x88] sm:$0xff]
        %v2287 = vld [vmem:[%s4 + $0x90] sm:$0xff]
        %v2288 = vld [vmem:[%s4 + $0x98] sm:$0xff]
        %v2289 = vld [vmem:[%s4 + $0xa0] sm:$0xff]
        %v2290 = vld [vmem:[%s4 + $0xa8] sm:$0xff]
        %v2291 = vld [vmem:[%s4 + $0xb0] sm:$0xff]
        %v2292 = vld [vmem:[%s4 + $0xb8] sm:$0xff]
        %v2293 = vld [vmem:[%s4 + $0xc0] sm:$0xff]
        %v2294 = vld [vmem:[%s4 + $0xc8] sm:$0xff]
        %v2295 = vld [vmem:[%s4 + $0xd0] sm:$0xff]
        %v2296 = vld [vmem:[%s4 + $0xd8] sm:$0xff]
        %v2297 = vld [vmem:[%s4 + $0xe0] sm:$0xff]
        %v2298 = vld [vmem:[%s4 + $0xe8] sm:$0xff]
        %v2299 = vld [vmem:[%s4 + $0xf0] sm:$0xff]
        %v2300 = vld [vmem:[%s4 + $0xf8] sm:$0xff]
        %v2301 = vld [vmem:[%s4 + $0x100] sm:$0xff]
        %v2302 = vld [vmem:[%s4 + $0x108] sm:$0xff]
        %v2303 = vld [vmem:[%s4 + $0x110] sm:$0xff]
        %v2304 = vld [vmem:[%s4 + $0x118] sm:$0xff]
        %v2305 = vld [vmem:[%s4 + $0x120] sm:$0xff]
        %v2306 = vld [vmem:[%s4 + $0x128] sm:$0xff]
        %v2307 = vld [vmem:[%s4 + $0x130] sm:$0xff]
        %v2308 = vld [vmem:[%s4 + $0x138] sm:$0xff]
        %v2309 = vld [vmem:[%s4 + $0x140] sm:$0xff]
        %v2310 = vld [vmem:[%s4 + $0x148] sm:$0xff]
        %v2311 = vld [vmem:[%s4 + $0x150] sm:$0xff]
        %v2312 = vld [vmem:[%s4 + $0x158] sm:$0xff]
        %v2313 = vld [vmem:[#allocation2] sm:$0xfe]
        %v2314 = vld [vmem:[#allocation2 + $0x8] sm:$0xfe]
        %v2315 = vld [vmem:[#allocation2 + $0x20] sm:$0x1f]
        %v2316 = vld [vmem:[#allocation2 + $0x28] sm:$0x1f]
        %s2317 = scalar_lea.vmem %s4, 352
        %v2318 = vld [vmem:[%s2317] sm:$0xff]
        %v2319 = vld [vmem:[%s2317 + $0x8] sm:$0xff]
        %v2320 = vld [vmem:[%s2317 + $0x10] sm:$0xff]
        %v2321 = vld [vmem:[%s2317 + $0x18] sm:$0xff]
        %v2322 = vld [vmem:[%s2317 + $0x20] sm:$0xff]
        %v2323 = vld [vmem:[%s2317 + $0x28] sm:$0xff]
        %v2324 = vld [vmem:[%s2317 + $0x30] sm:$0xff]
        %v2325 = vld [vmem:[%s2317 + $0x38] sm:$0xff]
        %v2326 = vld [vmem:[%s2317 + $0x40] sm:$0xff]
        %v2327 = vld [vmem:[%s2317 + $0x48] sm:$0xff]
        %v2328 = vld [vmem:[%s2317 + $0x50] sm:$0xff]
        %v2329 = vld [vmem:[%s2317 + $0x58] sm:$0xff]
        %v2330 = vld [vmem:[%s2317 + $0x60] sm:$0xff]
        %v2331 = vld [vmem:[%s2317 + $0x68] sm:$0xff]
        %v2332 = vld [vmem:[%s2317 + $0x70] sm:$0xff]
        %v2333 = vld [vmem:[%s2317 + $0x78] sm:$0xff]
        %v2334 = vld [vmem:[%s2317 + $0x80] sm:$0xff]
        %v2335 = vld [vmem:[%s2317 + $0x88] sm:$0xff]
        %v2336 = vld [vmem:[%s2317 + $0x90] sm:$0xff]
        %v2337 = vld [vmem:[%s2317 + $0x98] sm:$0xff]
        %v2338 = vld [vmem:[%s2317 + $0xa0] sm:$0xff]
        %v2339 = vld [vmem:[%s2317 + $0xa8] sm:$0xff]
        %v2340 = vld [vmem:[%s2317 + $0xb0] sm:$0xff]
        %v2341 = vld [vmem:[%s2317 + $0xb8] sm:$0xff]
        %v2342 = vld [vmem:[%s2317 + $0xc0] sm:$0xff]
        %v2343 = vld [vmem:[%s2317 + $0xc8] sm:$0xff]
        %v2344 = vld [vmem:[%s2317 + $0xd0] sm:$0xff]
        %v2345 = vld [vmem:[%s2317 + $0xd8] sm:$0xff]
        %v2346 = vld [vmem:[%s2317 + $0xe0] sm:$0xff]
        %v2347 = vld [vmem:[%s2317 + $0xe8] sm:$0xff]
        %v2348 = vld [vmem:[%s2317 + $0xf0] sm:$0xff]
        %v2349 = vld [vmem:[%s2317 + $0xf8] sm:$0xff]
        %v2350 = vld [vmem:[%s2317 + $0x100] sm:$0xff]
        %v2351 = vld [vmem:[%s2317 + $0x108] sm:$0xff]
        %v2352 = vld [vmem:[%s2317 + $0x110] sm:$0xff]
        %v2353 = vld [vmem:[%s2317 + $0x118] sm:$0xff]
        %v2354 = vld [vmem:[%s2317 + $0x120] sm:$0xff]
        %v2355 = vld [vmem:[%s2317 + $0x128] sm:$0xff]
        %v2356 = vld [vmem:[%s2317 + $0x130] sm:$0xff]
        %v2357 = vld [vmem:[%s2317 + $0x138] sm:$0xff]
        %v2358 = vld [vmem:[%s2317 + $0x140] sm:$0xff]
        %v2359 = vld [vmem:[%s2317 + $0x148] sm:$0xff]
        %v2360 = vld [vmem:[%s2317 + $0x150] sm:$0xff]
        %v2361 = vld [vmem:[%s2317 + $0x158] sm:$0xff]
        %vm2368 = vcmask 1046528
        %v2369 = vrot.slane %v2313, 1
        %v2370 = vrot.slane %v2265, 1
        %v2371 = vsel %vm2368, %v2369, %v2370
        %v2372 = vrot.slane %v2314, 1
        %v2373 = vrot.slane %v2266, 1
        %v2374 = vsel %vm2368, %v2372, %v2373
        %v2375 = vrot.slane %v2315, 1
        %v2376 = vsel %vm2368, %v2370, %v2375
        %v2377 = vrot.slane %v2316, 1
        %v2378 = vsel %vm2368, %v2373, %v2377
        %v2382 = vsel %vm2244, %v2374, 0
        %v2384 = vsel %vm2244, %v2378, 0
        %v2386 = vsel %vm2244, %v2377, 0
        %2388 = vmatprep.subr.mxu0 %v2349
        %2389 = vmatpush1.msra.mxu0 %v2348
        %2390 = vmatprep.subr.mxu0 %v2347
        %2391 = vmatpush1.msra.mxu0 %v2346
        %2392 = vmatprep.subr.mxu0 %v2345
        %2393 = vmatpush1.msra.mxu0 %v2344
        %2394 = vmatprep.subr.mxu0 %v2343
        %2395 = vmatpush1.msra.mxu0 %v2342
        %2396 = vmatprep.subr.mxu0 %v2341
        %2397 = vmatpush1.msra.mxu0 %v2340
        %2398 = vmatprep.subr.mxu0 %v2339
        %2399 = vmatpush1.msra.mxu0 %v2338
        %2400 = vmatprep.subr.mxu0 %v2337
        %2401 = vmatpush1.msra.mxu0 %v2336
        %2402 = vmatprep.subr.mxu0 %v2335
        %2403 = vmatpush1.msra.mxu0 %v2334
        %2404 = vmatprep.subr.mxu0 %v2333
        %2405 = vmatpush1.msra.mxu0 %v2332
        %2406 = vmatprep.subr.mxu0 %v2331
        %2407 = vmatpush1.msra.mxu0 %v2330
        %2408 = vmatprep.subr.mxu0 %v2329
        %2409 = vmatpush1.msra.mxu0 %v2328
        %2410 = vmatprep.subr.mxu0 %v2327
        %2411 = vmatpush1.msra.mxu0 %v2326
        %2412 = vmatprep.subr.mxu0 %v2325
        %2413 = vmatpush1.msra.mxu0 %v2324
        %2414 = vmatprep.subr.mxu0 %v2323
        %2415 = vmatpush1.msra.mxu0 %v2322
        %2416 = vmatprep.subr.mxu0 %v2321
        %2417 = vmatpush1.msra.mxu0 %v2320
        %2418 = vmatprep.subr.mxu0 %v2319
        %2419 = vmatpush1.msra.mxu0 %v2318
        %2420 = vmatprep.subr.mxu0 0.0
        %2421 = vmatpush2.msra.mxu0 0.0
        %2422 = vmatprep.subr.mxu0 0.0
        %2423 = vmatpush2.msra.mxu0 0.0
        %2424 = vmatprep.subr.mxu0 0.0
        %2425 = vmatpush2.msra.mxu0 0.0
        %2426 = vmatprep.subr.mxu0 0.0
        %2427 = vmatpush2.msra.mxu0 0.0
        %2428 = vmatprep.subr.mxu0 0.0
        %2429 = vmatpush2.msra.mxu0 0.0
        %2430 = vmatprep.subr.mxu0 0.0
        %2431 = vmatpush2.msra.mxu0 0.0
        %2432 = vmatprep.subr.mxu0 0.0
        %2433 = vmatpush2.msra.mxu0 0.0
        %2434 = vmatprep.subr.mxu0 0.0
        %2435 = vmatpush2.msra.mxu0 0.0
        %2436 = vmatprep.subr.mxu0 0.0
        %2437 = vmatpush2.msra.mxu0 0.0
        %2438 = vmatprep.subr.mxu0 0.0
        %2439 = vmatpush2.msra.mxu0 0.0
        %2440 = vmatprep.subr.mxu0 %v2361
        %2441 = vmatpush2.msra.mxu0 %v2360
        %2442 = vmatprep.subr.mxu0 %v2359
        %2443 = vmatpush2.msra.mxu0 %v2358
        %2444 = vmatprep.subr.mxu0 %v2357
        %2445 = vmatpush2.msra.mxu0 %v2356
        %2446 = vmatprep.subr.mxu0 %v2355
        %2447 = vmatpush2.msra.mxu0 %v2354
        %2448 = vmatprep.subr.mxu0 %v2353
        %2449 = vmatpush2.msra.mxu0 %v2352
        %2450 = vmatprep.subr.mxu0 %v2351
        %2451 = vmatpush2.msra.mxu0 %v2350
        %2452 = vmatprep.mubr.f32.mxu0 %v2382
        %2453 = vmatmul.mubr.f32.gmra.mxu0 %v2371
        %v2454 = vpop.f32.mrf.mxu0
        %v2455 = vadd.f32 0.0, %v2454
        %v2456 = vpop.f32.mrf.mxu0
        %v2457 = vadd.f32 0.0, %v2456
        %2458 = vmatprep.mubr.f32.mxu0 %v2384
        %2459 = vmatmul.mubr.f32.gmra.mxu0 %v2376
        %v2460 = vpop.f32.mrf.mxu0
        %v2461 = vadd.f32 0.0, %v2460
        %v2462 = vpop.f32.mrf.mxu0
        %v2463 = vadd.f32 0.0, %v2462
        %2464 = vmatprep.mubr.f32.mxu0 %v2386
        %2465 = vmatmul.mubr.f32.gmra.mxu0 %v2375
        %v2466 = vpop.f32.mrf.mxu0
        %v2467 = vadd.f32 0.0, %v2466
        %v2468 = vpop.f32.mrf.mxu0
        %v2469 = vadd.f32 0.0, %v2468
        %2470 = vdwg.mxu0
        %v2472 = vsel %vm2244, %v2264, 0
        %v2474 = vsel %vm2244, %v2266, 0
        %v2477 = vsel %vm2244, %v2268, 0
        %2479 = vmatprep.subr.mxu0 %v2300
        %2480 = vmatpush1.msra.mxu0 %v2299
        %2481 = vmatprep.subr.mxu0 %v2298
        %2482 = vmatpush1.msra.mxu0 %v2297
        %2483 = vmatprep.subr.mxu0 %v2296
        %2484 = vmatpush1.msra.mxu0 %v2295
        %2485 = vmatprep.subr.mxu0 %v2294
        %2486 = vmatpush1.msra.mxu0 %v2293
        %2487 = vmatprep.subr.mxu0 %v2292
        %2488 = vmatpush1.msra.mxu0 %v2291
        %2489 = vmatprep.subr.mxu0 %v2290
        %2490 = vmatpush1.msra.mxu0 %v2289
        %2491 = vmatprep.subr.mxu0 %v2288
        %2492 = vmatpush1.msra.mxu0 %v2287
        %2493 = vmatprep.subr.mxu0 %v2286
        %2494 = vmatpush1.msra.mxu0 %v2285
        %2495 = vmatprep.subr.mxu0 %v2284
        %2496 = vmatpush1.msra.mxu0 %v2283
        %2497 = vmatprep.subr.mxu0 %v2282
        %2498 = vmatpush1.msra.mxu0 %v2281
        %2499 = vmatprep.subr.mxu0 %v2280
        %2500 = vmatpush1.msra.mxu0 %v2279
        %2501 = vmatprep.subr.mxu0 %v2278
        %2502 = vmatpush1.msra.mxu0 %v2277
        %2503 = vmatprep.subr.mxu0 %v2276
        %2504 = vmatpush1.msra.mxu0 %v2275
        %2505 = vmatprep.subr.mxu0 %v2274
        %2506 = vmatpush1.msra.mxu0 %v2273
        %2507 = vmatprep.subr.mxu0 %v2272
        %2508 = vmatpush1.msra.mxu0 %v2271
        %2509 = vmatprep.subr.mxu0 %v2270
        %2510 = vmatpush1.msra.mxu0 %v2269
        %2511 = vmatprep.subr.mxu0 0.0
        %2512 = vmatpush2.msra.mxu0 0.0
        %2513 = vmatprep.subr.mxu0 0.0
        %2514 = vmatpush2.msra.mxu0 0.0
        %2515 = vmatprep.subr.mxu0 0.0
        %2516 = vmatpush2.msra.mxu0 0.0
        %2517 = vmatprep.subr.mxu0 0.0
        %2518 = vmatpush2.msra.mxu0 0.0
        %2519 = vmatprep.subr.mxu0 0.0
        %2520 = vmatpush2.msra.mxu0 0.0
        %2521 = vmatprep.subr.mxu0 0.0
        %2522 = vmatpush2.msra.mxu0 0.0
        %2523 = vmatprep.subr.mxu0 0.0
        %2524 = vmatpush2.msra.mxu0 0.0
        %2525 = vmatprep.subr.mxu0 0.0
        %2526 = vmatpush2.msra.mxu0 0.0
        %2527 = vmatprep.subr.mxu0 0.0
        %2528 = vmatpush2.msra.mxu0 0.0
        %2529 = vmatprep.subr.mxu0 0.0
        %2530 = vmatpush2.msra.mxu0 0.0
        %2531 = vmatprep.subr.mxu0 %v2312
        %2532 = vmatpush2.msra.mxu0 %v2311
        %2533 = vmatprep.subr.mxu0 %v2310
        %2534 = vmatpush2.msra.mxu0 %v2309
        %2535 = vmatprep.subr.mxu0 %v2308
        %2536 = vmatpush2.msra.mxu0 %v2307
        %2537 = vmatprep.subr.mxu0 %v2306
        %2538 = vmatpush2.msra.mxu0 %v2305
        %2539 = vmatprep.subr.mxu0 %v2304
        %2540 = vmatpush2.msra.mxu0 %v2303
        %2541 = vmatprep.subr.mxu0 %v2302
        %2542 = vmatpush2.msra.mxu0 %v2301
        %2543 = vmatprep.mubr.f32.mxu0 %v2472
        %2544 = vmatmul.mubr.f32.gmra.mxu0 %v2263
        %v2545 = vpop.f32.mrf.mxu0
        %v2546 = vadd.f32 %v2455, %v2545
        %v2547 = vpop.f32.mrf.mxu0
        %v2548 = vadd.f32 %v2457, %v2547
        %2549 = vmatprep.mubr.f32.mxu0 %v2474
        %2550 = vmatmul.mubr.f32.gmra.mxu0 %v2265
        %v2551 = vpop.f32.mrf.mxu0
        %v2552 = vadd.f32 %v2461, %v2551
        %v2553 = vpop.f32.mrf.mxu0
        %v2554 = vadd.f32 %v2463, %v2553
        %2555 = vmatprep.mubr.f32.mxu0 %v2477
        %2556 = vmatmul.mubr.f32.gmra.mxu0 %v2267
        %v2557 = vpop.f32.mrf.mxu0
        %v2558 = vadd.f32 %v2467, %v2557
        %v2559 = vpop.f32.mrf.mxu0
        %v2560 = vadd.f32 %v2469, %v2559
        %2561 = vdwg.mxu0
        %v2562 = vld [vmem:[#allocation2] sm:$0xfc]
        %v2563 = vld [vmem:[#allocation2 + $0x8] sm:$0xfc]
        %v2564 = vld [vmem:[#allocation2 + $0x20] sm:$0x3f]
        %v2565 = vld [vmem:[#allocation2 + $0x28] sm:$0x3f]
        %s2566 = scalar_lea.vmem %s4, 704
        %v2567 = vld [vmem:[%s2566] sm:$0xff]
        %v2568 = vld [vmem:[%s2566 + $0x8] sm:$0xff]
        %v2569 = vld [vmem:[%s2566 + $0x10] sm:$0xff]
        %v2570 = vld [vmem:[%s2566 + $0x18] sm:$0xff]
        %v2571 = vld [vmem:[%s2566 + $0x20] sm:$0xff]
        %v2572 = vld [vmem:[%s2566 + $0x28] sm:$0xff]
        %v2573 = vld [vmem:[%s2566 + $0x30] sm:$0xff]
        %v2574 = vld [vmem:[%s2566 + $0x38] sm:$0xff]
        %v2575 = vld [vmem:[%s2566 + $0x40] sm:$0xff]
        %v2576 = vld [vmem:[%s2566 + $0x48] sm:$0xff]
        %v2577 = vld [vmem:[%s2566 + $0x50] sm:$0xff]
        %v2578 = vld [vmem:[%s2566 + $0x58] sm:$0xff]
        %v2579 = vld [vmem:[%s2566 + $0x60] sm:$0xff]
        %v2580 = vld [vmem:[%s2566 + $0x68] sm:$0xff]
        %v2581 = vld [vmem:[%s2566 + $0x70] sm:$0xff]
        %v2582 = vld [vmem:[%s2566 + $0x78] sm:$0xff]
        %v2583 = vld [vmem:[%s2566 + $0x80] sm:$0xff]
        %v2584 = vld [vmem:[%s2566 + $0x88] sm:$0xff]
        %v2585 = vld [vmem:[%s2566 + $0x90] sm:$0xff]
        %v2586 = vld [vmem:[%s2566 + $0x98] sm:$0xff]
        %v2587 = vld [vmem:[%s2566 + $0xa0] sm:$0xff]
        %v2588 = vld [vmem:[%s2566 + $0xa8] sm:$0xff]
        %v2589 = vld [vmem:[%s2566 + $0xb0] sm:$0xff]
        %v2590 = vld [vmem:[%s2566 + $0xb8] sm:$0xff]
        %v2591 = vld [vmem:[%s2566 + $0xc0] sm:$0xff]
        %v2592 = vld [vmem:[%s2566 + $0xc8] sm:$0xff]
        %v2593 = vld [vmem:[%s2566 + $0xd0] sm:$0xff]
        %v2594 = vld [vmem:[%s2566 + $0xd8] sm:$0xff]
        %v2595 = vld [vmem:[%s2566 + $0xe0] sm:$0xff]
        %v2596 = vld [vmem:[%s2566 + $0xe8] sm:$0xff]
        %v2597 = vld [vmem:[%s2566 + $0xf0] sm:$0xff]
        %v2598 = vld [vmem:[%s2566 + $0xf8] sm:$0xff]
        %v2599 = vld [vmem:[%s2566 + $0x100] sm:$0xff]
        %v2600 = vld [vmem:[%s2566 + $0x108] sm:$0xff]
        %v2601 = vld [vmem:[%s2566 + $0x110] sm:$0xff]
        %v2602 = vld [vmem:[%s2566 + $0x118] sm:$0xff]
        %v2603 = vld [vmem:[%s2566 + $0x120] sm:$0xff]
        %v2604 = vld [vmem:[%s2566 + $0x128] sm:$0xff]
        %v2605 = vld [vmem:[%s2566 + $0x130] sm:$0xff]
        %v2606 = vld [vmem:[%s2566 + $0x138] sm:$0xff]
        %v2607 = vld [vmem:[%s2566 + $0x140] sm:$0xff]
        %v2608 = vld [vmem:[%s2566 + $0x148] sm:$0xff]
        %v2609 = vld [vmem:[%s2566 + $0x150] sm:$0xff]
        %v2610 = vld [vmem:[%s2566 + $0x158] sm:$0xff]
        %v2615 = vrot.slane %v2562, 2
        %v2616 = vrot.slane %v2265, 2
        %v2617 = vsel %vm655, %v2615, %v2616
        %v2618 = vrot.slane %v2563, 2
        %v2619 = vrot.slane %v2266, 2
        %v2620 = vsel %vm655, %v2618, %v2619
        %v2621 = vrot.slane %v2564, 2
        %v2622 = vsel %vm655, %v2616, %v2621
        %v2623 = vrot.slane %v2565, 2
        %v2624 = vsel %vm655, %v2619, %v2623
        %v2628 = vsel %vm2244, %v2620, 0
        %v2630 = vsel %vm2244, %v2624, 0
        %v2632 = vsel %vm2244, %v2623, 0
        %2634 = vmatprep.subr.mxu0 %v2598
        %2635 = vmatpush1.msra.mxu0 %v2597
        %2636 = vmatprep.subr.mxu0 %v2596
        %2637 = vmatpush1.msra.mxu0 %v2595
        %2638 = vmatprep.subr.mxu0 %v2594
        %2639 = vmatpush1.msra.mxu0 %v2593
        %2640 = vmatprep.subr.mxu0 %v2592
        %2641 = vmatpush1.msra.mxu0 %v2591
        %2642 = vmatprep.subr.mxu0 %v2590
        %2643 = vmatpush1.msra.mxu0 %v2589
        %2644 = vmatprep.subr.mxu0 %v2588
        %2645 = vmatpush1.msra.mxu0 %v2587
        %2646 = vmatprep.subr.mxu0 %v2586
        %2647 = vmatpush1.msra.mxu0 %v2585
        %2648 = vmatprep.subr.mxu0 %v2584
        %2649 = vmatpush1.msra.mxu0 %v2583
        %2650 = vmatprep.subr.mxu0 %v2582
        %2651 = vmatpush1.msra.mxu0 %v2581
        %2652 = vmatprep.subr.mxu0 %v2580
        %2653 = vmatpush1.msra.mxu0 %v2579
        %2654 = vmatprep.subr.mxu0 %v2578
        %2655 = vmatpush1.msra.mxu0 %v2577
        %2656 = vmatprep.subr.mxu0 %v2576
        %2657 = vmatpush1.msra.mxu0 %v2575
        %2658 = vmatprep.subr.mxu0 %v2574
        %2659 = vmatpush1.msra.mxu0 %v2573
        %2660 = vmatprep.subr.mxu0 %v2572
        %2661 = vmatpush1.msra.mxu0 %v2571
        %2662 = vmatprep.subr.mxu0 %v2570
        %2663 = vmatpush1.msra.mxu0 %v2569
        %2664 = vmatprep.subr.mxu0 %v2568
        %2665 = vmatpush1.msra.mxu0 %v2567
        %2666 = vmatprep.subr.mxu0 0.0
        %2667 = vmatpush2.msra.mxu0 0.0
        %2668 = vmatprep.subr.mxu0 0.0
        %2669 = vmatpush2.msra.mxu0 0.0
        %2670 = vmatprep.subr.mxu0 0.0
        %2671 = vmatpush2.msra.mxu0 0.0
        %2672 = vmatprep.subr.mxu0 0.0
        %2673 = vmatpush2.msra.mxu0 0.0
        %2674 = vmatprep.subr.mxu0 0.0
        %2675 = vmatpush2.msra.mxu0 0.0
        %2676 = vmatprep.subr.mxu0 0.0
        %2677 = vmatpush2.msra.mxu0 0.0
        %2678 = vmatprep.subr.mxu0 0.0
        %2679 = vmatpush2.msra.mxu0 0.0
        %2680 = vmatprep.subr.mxu0 0.0
        %2681 = vmatpush2.msra.mxu0 0.0
        %2682 = vmatprep.subr.mxu0 0.0
        %2683 = vmatpush2.msra.mxu0 0.0
        %2684 = vmatprep.subr.mxu0 0.0
        %2685 = vmatpush2.msra.mxu0 0.0
        %2686 = vmatprep.subr.mxu0 %v2610
        %2687 = vmatpush2.msra.mxu0 %v2609
        %2688 = vmatprep.subr.mxu0 %v2608
        %2689 = vmatpush2.msra.mxu0 %v2607
        %2690 = vmatprep.subr.mxu0 %v2606
        %2691 = vmatpush2.msra.mxu0 %v2605
        %2692 = vmatprep.subr.mxu0 %v2604
        %2693 = vmatpush2.msra.mxu0 %v2603
        %2694 = vmatprep.subr.mxu0 %v2602
        %2695 = vmatpush2.msra.mxu0 %v2601
        %2696 = vmatprep.subr.mxu0 %v2600
        %2697 = vmatpush2.msra.mxu0 %v2599
        %2698 = vmatprep.mubr.f32.mxu0 %v2628
        %2699 = vmatmul.mubr.f32.gmra.mxu0 %v2617
        %v2700 = vpop.f32.mrf.mxu0
        %v2701 = vadd.f32 0.0, %v2700
        %v2702 = vpop.f32.mrf.mxu0
        %v2703 = vadd.f32 0.0, %v2702
        %2704 = vmatprep.mubr.f32.mxu0 %v2630
        %2705 = vmatmul.mubr.f32.gmra.mxu0 %v2622
        %v2706 = vpop.f32.mrf.mxu0
        %v2707 = vadd.f32 0.0, %v2706
        %v2708 = vpop.f32.mrf.mxu0
        %v2709 = vadd.f32 0.0, %v2708
        %2710 = vmatprep.mubr.f32.mxu0 %v2632
        %2711 = vmatmul.mubr.f32.gmra.mxu0 %v2621
        %v2712 = vpop.f32.mrf.mxu0
        %v2713 = vadd.f32 0.0, %v2712
        %v2714 = vpop.f32.mrf.mxu0
        %v2715 = vadd.f32 0.0, %v2714
        %2716 = vdwg.mxu0
        %v2717 = vadd.f32 %v2546, %v2701
        %v2718 = vadd.f32 %v2548, %v2703
        %v2719 = vadd.f32 %v2552, %v2707
        %v2720 = vadd.f32 %v2554, %v2709
        %v2721 = vadd.f32 %v2558, %v2713
        %v2722 = vadd.f32 %v2560, %v2715
        %v2724 = vlaneseq
        %v2725 = vshrl.u32 %v2724, 7
        %v2726 = vsub.s32 0, %v2725
        %v2727 = vrot.slane %v2258, %v2726
        %v2728 = vlaneseq
        %v2729 = vshrl.u32 %v2728, 7
        %v2730 = vsub.s32 1, %v2729
        %v2731 = vrot.slane %v2258, %v2730
        %v2734 = vadd.f32 %v2717, %v2727
        %v2735 = vadd.f32 %v2718, %v2731
        %v2736 = vadd.f32 %v2719, %v2727
        %v2737 = vadd.f32 %v2720, %v2731
        %v2738 = vadd.f32 %v2721, %v2727
        %v2739 = vadd.f32 %v2722, %v2731
        %v2740 = vmax.f32 %v2734, 0.0
        %v2741 = vmax.f32 %v2735, 0.0
        %v2742 = vmax.f32 %v2736, 0.0
        %v2743 = vmax.f32 %v2737, 0.0
        %v2744 = vmax.f32 %v2738, 0.0
        %v2745 = vmax.f32 %v2739, 0.0
        %v2747 = vlaneseq
        %v2748 = vshrl.u32 %v2747, 7
        %v2749 = vsub.s32 0, %v2748
        %v2750 = vrot.slane %v2260, %v2749
        %v2751 = vlaneseq
        %v2752 = vshrl.u32 %v2751, 7
        %v2753 = vsub.s32 1, %v2752
        %v2754 = vrot.slane %v2260, %v2753
        %v2757 = vmul.f32 %v2740, %v2750
        %v2758 = vmul.f32 %v2741, %v2754
        %v2759 = vmul.f32 %v2742, %v2750
        %v2760 = vmul.f32 %v2743, %v2754
        %v2761 = vmul.f32 %v2744, %v2750
        %v2762 = vmul.f32 %v2745, %v2754
        %v2764 = vlaneseq
        %v2765 = vshrl.u32 %v2764, 7
        %v2766 = vsub.s32 0, %v2765
        %v2767 = vrot.slane %v2262, %v2766
        %v2768 = vlaneseq
        %v2769 = vshrl.u32 %v2768, 7
        %v2770 = vsub.s32 1, %v2769
        %v2771 = vrot.slane %v2262, %v2770
        %v2774 = vadd.f32 %v2757, %v2767
        %v2775 = vadd.f32 %v2758, %v2771
        %v2776 = vadd.f32 %v2759, %v2767
        %v2777 = vadd.f32 %v2760, %v2771
        %v2778 = vadd.f32 %v2761, %v2767
        %v2779 = vadd.f32 %v2762, %v2771
        %v2780 = vld [vmem:[%s5] sm:$0xff]
        %v2781 = vld [vmem:[%s5 + $0x8] sm:$0xff]
        %v2782 = vld [vmem:[%s5 + $0x10] sm:$0xff]
        %v2783 = vld [vmem:[%s5 + $0x18] sm:$0xff]
        %v2784 = vld [vmem:[%s5 + $0x20] sm:$0xff]
        %v2785 = vld [vmem:[%s5 + $0x28] sm:$0xff]
        %v2786 = vld [vmem:[%s5 + $0x30] sm:$0xff]
        %v2787 = vld [vmem:[%s5 + $0x38] sm:$0xff]
        %v2788 = vld [vmem:[%s5 + $0x40] sm:$0xff]
        %v2789 = vld [vmem:[%s5 + $0x48] sm:$0xff]
        %v2790 = vld [vmem:[%s5 + $0x50] sm:$0xff]
        %v2791 = vld [vmem:[%s5 + $0x58] sm:$0xff]
        %v2792 = vld [vmem:[%s5 + $0x60] sm:$0xff]
        %v2793 = vld [vmem:[%s5 + $0x68] sm:$0xff]
        %v2794 = vld [vmem:[%s5 + $0x70] sm:$0xff]
        %v2795 = vld [vmem:[%s5 + $0x78] sm:$0xff]
        %v2796 = vld [vmem:[%s5 + $0x80] sm:$0xff]
        %v2797 = vld [vmem:[%s5 + $0x88] sm:$0xff]
        %v2798 = vld [vmem:[%s5 + $0x90] sm:$0xff]
        %v2799 = vld [vmem:[%s5 + $0x98] sm:$0xff]
        %v2800 = vld [vmem:[%s5 + $0xa0] sm:$0xff]
        %v2801 = vld [vmem:[%s5 + $0xa8] sm:$0xff]
        %v2802 = vld [vmem:[%s5 + $0xb0] sm:$0xff]
        %v2803 = vld [vmem:[%s5 + $0xb8] sm:$0xff]
        %v2804 = vld [vmem:[%s5 + $0xc0] sm:$0xff]
        %v2805 = vld [vmem:[%s5 + $0xc8] sm:$0xff]
        %v2806 = vld [vmem:[%s5 + $0xd0] sm:$0xff]
        %v2807 = vld [vmem:[%s5 + $0xd8] sm:$0xff]
        %v2808 = vld [vmem:[%s5 + $0xe0] sm:$0xff]
        %v2809 = vld [vmem:[%s5 + $0xe8] sm:$0xff]
        %v2810 = vld [vmem:[%s5 + $0xf0] sm:$0xff]
        %v2811 = vld [vmem:[%s5 + $0xf8] sm:$0xff]
        %v2812 = vld [vmem:[%s5 + $0x100] sm:$0xff]
        %v2813 = vld [vmem:[%s5 + $0x108] sm:$0xff]
        %v2814 = vld [vmem:[%s5 + $0x110] sm:$0xff]
        %v2815 = vld [vmem:[%s5 + $0x118] sm:$0xff]
        %v2816 = vld [vmem:[%s5 + $0x120] sm:$0xff]
        %v2817 = vld [vmem:[%s5 + $0x128] sm:$0xff]
        %v2818 = vld [vmem:[%s5 + $0x130] sm:$0xff]
        %v2819 = vld [vmem:[%s5 + $0x138] sm:$0xff]
        %v2820 = vld [vmem:[%s5 + $0x140] sm:$0xff]
        %v2821 = vld [vmem:[%s5 + $0x148] sm:$0xff]
        %v2822 = vld [vmem:[%s5 + $0x150] sm:$0xff]
        %v2823 = vld [vmem:[%s5 + $0x158] sm:$0xff]
        %s2824 = scalar_lea.vmem %s5, 352
        %v2825 = vld [vmem:[%s2824] sm:$0xff]
        %v2826 = vld [vmem:[%s2824 + $0x8] sm:$0xff]
        %v2827 = vld [vmem:[%s2824 + $0x10] sm:$0xff]
        %v2828 = vld [vmem:[%s2824 + $0x18] sm:$0xff]
        %v2829 = vld [vmem:[%s2824 + $0x20] sm:$0xff]
        %v2830 = vld [vmem:[%s2824 + $0x28] sm:$0xff]
        %v2831 = vld [vmem:[%s2824 + $0x30] sm:$0xff]
        %v2832 = vld [vmem:[%s2824 + $0x38] sm:$0xff]
        %v2833 = vld [vmem:[%s2824 + $0x40] sm:$0xff]
        %v2834 = vld [vmem:[%s2824 + $0x48] sm:$0xff]
        %v2835 = vld [vmem:[%s2824 + $0x50] sm:$0xff]
        %v2836 = vld [vmem:[%s2824 + $0x58] sm:$0xff]
        %v2837 = vld [vmem:[%s2824 + $0x60] sm:$0xff]
        %v2838 = vld [vmem:[%s2824 + $0x68] sm:$0xff]
        %v2839 = vld [vmem:[%s2824 + $0x70] sm:$0xff]
        %v2840 = vld [vmem:[%s2824 + $0x78] sm:$0xff]
        %v2841 = vld [vmem:[%s2824 + $0x80] sm:$0xff]
        %v2842 = vld [vmem:[%s2824 + $0x88] sm:$0xff]
        %v2843 = vld [vmem:[%s2824 + $0x90] sm:$0xff]
        %v2844 = vld [vmem:[%s2824 + $0x98] sm:$0xff]
        %v2845 = vld [vmem:[%s2824 + $0xa0] sm:$0xff]
        %v2846 = vld [vmem:[%s2824 + $0xa8] sm:$0xff]
        %v2847 = vld [vmem:[%s2824 + $0xb0] sm:$0xff]
        %v2848 = vld [vmem:[%s2824 + $0xb8] sm:$0xff]
        %v2849 = vld [vmem:[%s2824 + $0xc0] sm:$0xff]
        %v2850 = vld [vmem:[%s2824 + $0xc8] sm:$0xff]
        %v2851 = vld [vmem:[%s2824 + $0xd0] sm:$0xff]
        %v2852 = vld [vmem:[%s2824 + $0xd8] sm:$0xff]
        %v2853 = vld [vmem:[%s2824 + $0xe0] sm:$0xff]
        %v2854 = vld [vmem:[%s2824 + $0xe8] sm:$0xff]
        %v2855 = vld [vmem:[%s2824 + $0xf0] sm:$0xff]
        %v2856 = vld [vmem:[%s2824 + $0xf8] sm:$0xff]
        %v2857 = vld [vmem:[%s2824 + $0x100] sm:$0xff]
        %v2858 = vld [vmem:[%s2824 + $0x108] sm:$0xff]
        %v2859 = vld [vmem:[%s2824 + $0x110] sm:$0xff]
        %v2860 = vld [vmem:[%s2824 + $0x118] sm:$0xff]
        %v2861 = vld [vmem:[%s2824 + $0x120] sm:$0xff]
        %v2862 = vld [vmem:[%s2824 + $0x128] sm:$0xff]
        %v2863 = vld [vmem:[%s2824 + $0x130] sm:$0xff]
        %v2864 = vld [vmem:[%s2824 + $0x138] sm:$0xff]
        %v2865 = vld [vmem:[%s2824 + $0x140] sm:$0xff]
        %v2866 = vld [vmem:[%s2824 + $0x148] sm:$0xff]
        %v2867 = vld [vmem:[%s2824 + $0x150] sm:$0xff]
        %v2868 = vld [vmem:[%s2824 + $0x158] sm:$0xff]
        %2869 = vmatprep.subr.mxu0 %v2856
        %2870 = vmatpush1.msra.mxu0 %v2855
        %2871 = vmatprep.subr.mxu0 %v2854
        %2872 = vmatpush1.msra.mxu0 %v2853
        %2873 = vmatprep.subr.mxu0 %v2852
        %2874 = vmatpush1.msra.mxu0 %v2851
        %2875 = vmatprep.subr.mxu0 %v2850
        %2876 = vmatpush1.msra.mxu0 %v2849
        %2877 = vmatprep.subr.mxu0 %v2848
        %2878 = vmatpush1.msra.mxu0 %v2847
        %2879 = vmatprep.subr.mxu0 %v2846
        %2880 = vmatpush1.msra.mxu0 %v2845
        %2881 = vmatprep.subr.mxu0 %v2844
        %2882 = vmatpush1.msra.mxu0 %v2843
        %2883 = vmatprep.subr.mxu0 %v2842
        %2884 = vmatpush1.msra.mxu0 %v2841
        %2885 = vmatprep.subr.mxu0 %v2840
        %2886 = vmatpush1.msra.mxu0 %v2839
        %2887 = vmatprep.subr.mxu0 %v2838
        %2888 = vmatpush1.msra.mxu0 %v2837
        %2889 = vmatprep.subr.mxu0 %v2836
        %2890 = vmatpush1.msra.mxu0 %v2835
        %2891 = vmatprep.subr.mxu0 %v2834
        %2892 = vmatpush1.msra.mxu0 %v2833
        %2893 = vmatprep.subr.mxu0 %v2832
        %2894 = vmatpush1.msra.mxu0 %v2831
        %2895 = vmatprep.subr.mxu0 %v2830
        %2896 = vmatpush1.msra.mxu0 %v2829
        %2897 = vmatprep.subr.mxu0 %v2828
        %2898 = vmatpush1.msra.mxu0 %v2827
        %2899 = vmatprep.subr.mxu0 %v2826
        %2900 = vmatpush1.msra.mxu0 %v2825
        %2901 = vmatprep.subr.mxu0 0.0
        %2902 = vmatpush2.msra.mxu0 0.0
        %2903 = vmatprep.subr.mxu0 0.0
        %2904 = vmatpush2.msra.mxu0 0.0
        %2905 = vmatprep.subr.mxu0 0.0
        %2906 = vmatpush2.msra.mxu0 0.0
        %2907 = vmatprep.subr.mxu0 0.0
        %2908 = vmatpush2.msra.mxu0 0.0
        %2909 = vmatprep.subr.mxu0 0.0
        %2910 = vmatpush2.msra.mxu0 0.0
        %2911 = vmatprep.subr.mxu0 0.0
        %2912 = vmatpush2.msra.mxu0 0.0
        %2913 = vmatprep.subr.mxu0 0.0
        %2914 = vmatpush2.msra.mxu0 0.0
        %2915 = vmatprep.subr.mxu0 0.0
        %2916 = vmatpush2.msra.mxu0 0.0
        %2917 = vmatprep.subr.mxu0 0.0
        %2918 = vmatpush2.msra.mxu0 0.0
        %2919 = vmatprep.subr.mxu0 0.0
        %2920 = vmatpush2.msra.mxu0 0.0
        %2921 = vmatprep.subr.mxu0 %v2868
        %2922 = vmatpush2.msra.mxu0 %v2867
        %2923 = vmatprep.subr.mxu0 %v2866
        %2924 = vmatpush2.msra.mxu0 %v2865
        %2925 = vmatprep.subr.mxu0 %v2864
        %2926 = vmatpush2.msra.mxu0 %v2863
        %2927 = vmatprep.subr.mxu0 %v2862
        %2928 = vmatpush2.msra.mxu0 %v2861
        %2929 = vmatprep.subr.mxu0 %v2860
        %2930 = vmatpush2.msra.mxu0 %v2859
        %2931 = vmatprep.subr.mxu0 %v2858
        %2932 = vmatpush2.msra.mxu0 %v2857
        %2933 = vmatprep.mubr.f32.mxu0 %v2382
        %2934 = vmatmul.mubr.f32.gmra.mxu0 %v2371
        %v2935 = vpop.f32.mrf.mxu0
        %v2936 = vadd.f32 0.0, %v2935
        %v2937 = vpop.f32.mrf.mxu0
        %v2938 = vadd.f32 0.0, %v2937
        %2939 = vmatprep.mubr.f32.mxu0 %v2384
        %2940 = vmatmul.mubr.f32.gmra.mxu0 %v2376
        %v2941 = vpop.f32.mrf.mxu0
        %v2942 = vadd.f32 0.0, %v2941
        %v2943 = vpop.f32.mrf.mxu0
        %v2944 = vadd.f32 0.0, %v2943
        %2945 = vmatprep.mubr.f32.mxu0 %v2386
        %2946 = vmatmul.mubr.f32.gmra.mxu0 %v2375
        %v2947 = vpop.f32.mrf.mxu0
        %v2948 = vadd.f32 0.0, %v2947
        %v2949 = vpop.f32.mrf.mxu0
        %v2950 = vadd.f32 0.0, %v2949
        %2951 = vdwg.mxu0
        %2952 = vmatprep.subr.mxu0 %v2811
        %2953 = vmatpush1.msra.mxu0 %v2810
        %2954 = vmatprep.subr.mxu0 %v2809
        %2955 = vmatpush1.msra.mxu0 %v2808
        %2956 = vmatprep.subr.mxu0 %v2807
        %2957 = vmatpush1.msra.mxu0 %v2806
        %2958 = vmatprep.subr.mxu0 %v2805
        %2959 = vmatpush1.msra.mxu0 %v2804
        %2960 = vmatprep.subr.mxu0 %v2803
        %2961 = vmatpush1.msra.mxu0 %v2802
        %2962 = vmatprep.subr.mxu0 %v2801
        %2963 = vmatpush1.msra.mxu0 %v2800
        %2964 = vmatprep.subr.mxu0 %v2799
        %2965 = vmatpush1.msra.mxu0 %v2798
        %2966 = vmatprep.subr.mxu0 %v2797
        %2967 = vmatpush1.msra.mxu0 %v2796
        %2968 = vmatprep.subr.mxu0 %v2795
        %2969 = vmatpush1.msra.mxu0 %v2794
        %2970 = vmatprep.subr.mxu0 %v2793
        %2971 = vmatpush1.msra.mxu0 %v2792
        %2972 = vmatprep.subr.mxu0 %v2791
        %2973 = vmatpush1.msra.mxu0 %v2790
        %2974 = vmatprep.subr.mxu0 %v2789
        %2975 = vmatpush1.msra.mxu0 %v2788
        %2976 = vmatprep.subr.mxu0 %v2787
        %2977 = vmatpush1.msra.mxu0 %v2786
        %2978 = vmatprep.subr.mxu0 %v2785
        %2979 = vmatpush1.msra.mxu0 %v2784
        %2980 = vmatprep.subr.mxu0 %v2783
        %2981 = vmatpush1.msra.mxu0 %v2782
        %2982 = vmatprep.subr.mxu0 %v2781
        %2983 = vmatpush1.msra.mxu0 %v2780
        %2984 = vmatprep.subr.mxu0 0.0
        %2985 = vmatpush2.msra.mxu0 0.0
        %2986 = vmatprep.subr.mxu0 0.0
        %2987 = vmatpush2.msra.mxu0 0.0
        %2988 = vmatprep.subr.mxu0 0.0
        %2989 = vmatpush2.msra.mxu0 0.0
        %2990 = vmatprep.subr.mxu0 0.0
        %2991 = vmatpush2.msra.mxu0 0.0
        %2992 = vmatprep.subr.mxu0 0.0
        %2993 = vmatpush2.msra.mxu0 0.0
        %2994 = vmatprep.subr.mxu0 0.0
        %2995 = vmatpush2.msra.mxu0 0.0
        %2996 = vmatprep.subr.mxu0 0.0
        %2997 = vmatpush2.msra.mxu0 0.0
        %2998 = vmatprep.subr.mxu0 0.0
        %2999 = vmatpush2.msra.mxu0 0.0
        %3000 = vmatprep.subr.mxu0 0.0
        %3001 = vmatpush2.msra.mxu0 0.0
        %3002 = vmatprep.subr.mxu0 0.0
        %3003 = vmatpush2.msra.mxu0 0.0
        %3004 = vmatprep.subr.mxu0 %v2823
        %3005 = vmatpush2.msra.mxu0 %v2822
        %3006 = vmatprep.subr.mxu0 %v2821
        %3007 = vmatpush2.msra.mxu0 %v2820
        %3008 = vmatprep.subr.mxu0 %v2819
        %3009 = vmatpush2.msra.mxu0 %v2818
        %3010 = vmatprep.subr.mxu0 %v2817
        %3011 = vmatpush2.msra.mxu0 %v2816
        %3012 = vmatprep.subr.mxu0 %v2815
        %3013 = vmatpush2.msra.mxu0 %v2814
        %3014 = vmatprep.subr.mxu0 %v2813
        %3015 = vmatpush2.msra.mxu0 %v2812
        %3016 = vmatprep.mubr.f32.mxu0 %v2472
        %3017 = vmatmul.mubr.f32.gmra.mxu0 %v2263
        %v3018 = vpop.f32.mrf.mxu0
        %v3019 = vadd.f32 %v2936, %v3018
        %v3020 = vpop.f32.mrf.mxu0
        %v3021 = vadd.f32 %v2938, %v3020
        %3022 = vmatprep.mubr.f32.mxu0 %v2474
        %3023 = vmatmul.mubr.f32.gmra.mxu0 %v2265
        %v3024 = vpop.f32.mrf.mxu0
        %v3025 = vadd.f32 %v2942, %v3024
        %v3026 = vpop.f32.mrf.mxu0
        %v3027 = vadd.f32 %v2944, %v3026
        %3028 = vmatprep.mubr.f32.mxu0 %v2477
        %3029 = vmatmul.mubr.f32.gmra.mxu0 %v2267
        %v3030 = vpop.f32.mrf.mxu0
        %v3031 = vadd.f32 %v2948, %v3030
        %v3032 = vpop.f32.mrf.mxu0
        %v3033 = vadd.f32 %v2950, %v3032
        %3034 = vdwg.mxu0
        %s3035 = scalar_lea.vmem %s5, 704
        %v3036 = vld [vmem:[%s3035] sm:$0xff]
        %v3037 = vld [vmem:[%s3035 + $0x8] sm:$0xff]
        %v3038 = vld [vmem:[%s3035 + $0x10] sm:$0xff]
        %v3039 = vld [vmem:[%s3035 + $0x18] sm:$0xff]
        %v3040 = vld [vmem:[%s3035 + $0x20] sm:$0xff]
        %v3041 = vld [vmem:[%s3035 + $0x28] sm:$0xff]
        %v3042 = vld [vmem:[%s3035 + $0x30] sm:$0xff]
        %v3043 = vld [vmem:[%s3035 + $0x38] sm:$0xff]
        %v3044 = vld [vmem:[%s3035 + $0x40] sm:$0xff]
        %v3045 = vld [vmem:[%s3035 + $0x48] sm:$0xff]
        %v3046 = vld [vmem:[%s3035 + $0x50] sm:$0xff]
        %v3047 = vld [vmem:[%s3035 + $0x58] sm:$0xff]
        %v3048 = vld [vmem:[%s3035 + $0x60] sm:$0xff]
        %v3049 = vld [vmem:[%s3035 + $0x68] sm:$0xff]
        %v3050 = vld [vmem:[%s3035 + $0x70] sm:$0xff]
        %v3051 = vld [vmem:[%s3035 + $0x78] sm:$0xff]
        %v3052 = vld [vmem:[%s3035 + $0x80] sm:$0xff]
        %v3053 = vld [vmem:[%s3035 + $0x88] sm:$0xff]
        %v3054 = vld [vmem:[%s3035 + $0x90] sm:$0xff]
        %v3055 = vld [vmem:[%s3035 + $0x98] sm:$0xff]
        %v3056 = vld [vmem:[%s3035 + $0xa0] sm:$0xff]
        %v3057 = vld [vmem:[%s3035 + $0xa8] sm:$0xff]
        %v3058 = vld [vmem:[%s3035 + $0xb0] sm:$0xff]
        %v3059 = vld [vmem:[%s3035 + $0xb8] sm:$0xff]
        %v3060 = vld [vmem:[%s3035 + $0xc0] sm:$0xff]
        %v3061 = vld [vmem:[%s3035 + $0xc8] sm:$0xff]
        %v3062 = vld [vmem:[%s3035 + $0xd0] sm:$0xff]
        %v3063 = vld [vmem:[%s3035 + $0xd8] sm:$0xff]
        %v3064 = vld [vmem:[%s3035 + $0xe0] sm:$0xff]
        %v3065 = vld [vmem:[%s3035 + $0xe8] sm:$0xff]
        %v3066 = vld [vmem:[%s3035 + $0xf0] sm:$0xff]
        %v3067 = vld [vmem:[%s3035 + $0xf8] sm:$0xff]
        %v3068 = vld [vmem:[%s3035 + $0x100] sm:$0xff]
        %v3069 = vld [vmem:[%s3035 + $0x108] sm:$0xff]
        %v3070 = vld [vmem:[%s3035 + $0x110] sm:$0xff]
        %v3071 = vld [vmem:[%s3035 + $0x118] sm:$0xff]
        %v3072 = vld [vmem:[%s3035 + $0x120] sm:$0xff]
        %v3073 = vld [vmem:[%s3035 + $0x128] sm:$0xff]
        %v3074 = vld [vmem:[%s3035 + $0x130] sm:$0xff]
        %v3075 = vld [vmem:[%s3035 + $0x138] sm:$0xff]
        %v3076 = vld [vmem:[%s3035 + $0x140] sm:$0xff]
        %v3077 = vld [vmem:[%s3035 + $0x148] sm:$0xff]
        %v3078 = vld [vmem:[%s3035 + $0x150] sm:$0xff]
        %v3079 = vld [vmem:[%s3035 + $0x158] sm:$0xff]
        %3080 = vmatprep.subr.mxu0 %v3067
        %3081 = vmatpush1.msra.mxu0 %v3066
        %3082 = vmatprep.subr.mxu0 %v3065
        %3083 = vmatpush1.msra.mxu0 %v3064
        %3084 = vmatprep.subr.mxu0 %v3063
        %3085 = vmatpush1.msra.mxu0 %v3062
        %3086 = vmatprep.subr.mxu0 %v3061
        %3087 = vmatpush1.msra.mxu0 %v3060
        %3088 = vmatprep.subr.mxu0 %v3059
        %3089 = vmatpush1.msra.mxu0 %v3058
        %3090 = vmatprep.subr.mxu0 %v3057
        %3091 = vmatpush1.msra.mxu0 %v3056
        %3092 = vmatprep.subr.mxu0 %v3055
        %3093 = vmatpush1.msra.mxu0 %v3054
        %3094 = vmatprep.subr.mxu0 %v3053
        %3095 = vmatpush1.msra.mxu0 %v3052
        %3096 = vmatprep.subr.mxu0 %v3051
        %3097 = vmatpush1.msra.mxu0 %v3050
        %3098 = vmatprep.subr.mxu0 %v3049
        %3099 = vmatpush1.msra.mxu0 %v3048
        %3100 = vmatprep.subr.mxu0 %v3047
        %3101 = vmatpush1.msra.mxu0 %v3046
        %3102 = vmatprep.subr.mxu0 %v3045
        %3103 = vmatpush1.msra.mxu0 %v3044
        %3104 = vmatprep.subr.mxu0 %v3043
        %3105 = vmatpush1.msra.mxu0 %v3042
        %3106 = vmatprep.subr.mxu0 %v3041
        %3107 = vmatpush1.msra.mxu0 %v3040
        %3108 = vmatprep.subr.mxu0 %v3039
        %3109 = vmatpush1.msra.mxu0 %v3038
        %3110 = vmatprep.subr.mxu0 %v3037
        %3111 = vmatpush1.msra.mxu0 %v3036
        %3112 = vmatprep.subr.mxu0 0.0
        %3113 = vmatpush2.msra.mxu0 0.0
        %3114 = vmatprep.subr.mxu0 0.0
        %3115 = vmatpush2.msra.mxu0 0.0
        %3116 = vmatprep.subr.mxu0 0.0
        %3117 = vmatpush2.msra.mxu0 0.0
        %3118 = vmatprep.subr.mxu0 0.0
        %3119 = vmatpush2.msra.mxu0 0.0
        %3120 = vmatprep.subr.mxu0 0.0
        %3121 = vmatpush2.msra.mxu0 0.0
        %3122 = vmatprep.subr.mxu0 0.0
        %3123 = vmatpush2.msra.mxu0 0.0
        %3124 = vmatprep.subr.mxu0 0.0
        %3125 = vmatpush2.msra.mxu0 0.0
        %3126 = vmatprep.subr.mxu0 0.0
        %3127 = vmatpush2.msra.mxu0 0.0
        %3128 = vmatprep.subr.mxu0 0.0
        %3129 = vmatpush2.msra.mxu0 0.0
        %3130 = vmatprep.subr.mxu0 0.0
        %3131 = vmatpush2.msra.mxu0 0.0
        %3132 = vmatprep.subr.mxu0 %v3079
        %3133 = vmatpush2.msra.mxu0 %v3078
        %3134 = vmatprep.subr.mxu0 %v3077
        %3135 = vmatpush2.msra.mxu0 %v3076
        %3136 = vmatprep.subr.mxu0 %v3075
        %3137 = vmatpush2.msra.mxu0 %v3074
        %3138 = vmatprep.subr.mxu0 %v3073
        %3139 = vmatpush2.msra.mxu0 %v3072
        %3140 = vmatprep.subr.mxu0 %v3071
        %3141 = vmatpush2.msra.mxu0 %v3070
        %3142 = vmatprep.subr.mxu0 %v3069
        %3143 = vmatpush2.msra.mxu0 %v3068
        %3144 = vmatprep.mubr.f32.mxu0 %v2628
        %3145 = vmatmul.mubr.f32.gmra.mxu0 %v2617
        %v3146 = vpop.f32.mrf.mxu0
        %v3147 = vadd.f32 0.0, %v3146
        %v3148 = vpop.f32.mrf.mxu0
        %v3149 = vadd.f32 0.0, %v3148
        %3150 = vmatprep.mubr.f32.mxu0 %v2630
        %3151 = vmatmul.mubr.f32.gmra.mxu0 %v2622
        %v3152 = vpop.f32.mrf.mxu0
        %v3153 = vadd.f32 0.0, %v3152
        %v3154 = vpop.f32.mrf.mxu0
        %v3155 = vadd.f32 0.0, %v3154
        %3156 = vmatprep.mubr.f32.mxu0 %v2632
        %3157 = vmatmul.mubr.f32.gmra.mxu0 %v2621
        %v3158 = vpop.f32.mrf.mxu0
        %v3159 = vadd.f32 0.0, %v3158
        %v3160 = vpop.f32.mrf.mxu0
        %v3161 = vadd.f32 0.0, %v3160
        %3162 = vdwg.mxu0
        %v3163 = vadd.f32 %v3019, %v3147
        %v3164 = vadd.f32 %v3021, %v3149
        %v3165 = vadd.f32 %v3025, %v3153
        %v3166 = vadd.f32 %v3027, %v3155
        %v3167 = vadd.f32 %v3031, %v3159
        %v3168 = vadd.f32 %v3033, %v3161
        %v3169 = vadd.f32 %v3163, %v2727
        %v3170 = vadd.f32 %v3164, %v2731
        %v3171 = vadd.f32 %v3165, %v2727
        %v3172 = vadd.f32 %v3166, %v2731
        %v3173 = vadd.f32 %v3167, %v2727
        %v3174 = vadd.f32 %v3168, %v2731
        %v3175 = vmax.f32 %v3169, 0.0
        %v3176 = vmax.f32 %v3170, 0.0
        %v3177 = vmax.f32 %v3171, 0.0
        %v3178 = vmax.f32 %v3172, 0.0
        %v3179 = vmax.f32 %v3173, 0.0
        %v3180 = vmax.f32 %v3174, 0.0
        %v3181 = vmul.f32 %v3175, %v2750
        %v3182 = vmul.f32 %v3176, %v2754
        %v3183 = vmul.f32 %v3177, %v2750
        %v3184 = vmul.f32 %v3178, %v2754
        %v3185 = vmul.f32 %v3179, %v2750
        %v3186 = vmul.f32 %v3180, %v2754
        %v3187 = vadd.f32 %v3181, %v2767
        %v3188 = vadd.f32 %v3182, %v2771
        %v3189 = vadd.f32 %v3183, %v2767
        %v3190 = vadd.f32 %v3184, %v2771
        %v3191 = vadd.f32 %v3185, %v2767
        %v3192 = vadd.f32 %v3186, %v2771
        %v3193 = vmax.f32 %v2774, %v3187
        %v3194 = vmax.f32 %v2775, %v3188
        %v3195 = vmax.f32 %v2776, %v3189
        %v3196 = vmax.f32 %v2777, %v3190
        %v3197 = vmax.f32 %v2778, %v3191
        %v3198 = vmax.f32 %v2779, %v3192
        %v3205 = vcombine.low %v3193, %v3194
        %v3206 = vcombine.high %v3193, %v3194
        %v3208 = vunpack.c.l.s4 1983009808
        %v3209 = vunpack.c.0.s8 %v3208
        %v3210 = vlaneseq
        %v3211 = vshrl.u32 %v3210, 7
        %v3212 = vsub.s32 %v3209, %v3211
        %v3213 = vrot.slane %v3205, %v3212
        %v3215 = vunpack.c.l.s4 1983009808
        %v3216 = vunpack.c.0.s8 %v3215
        %v3217 = vlaneseq
        %v3218 = vshrl.u32 %v3217, 7
        %v3219 = vsub.s32 %v3216, %v3218
        %v3220 = vrot.slane %v3206, %v3219
        %v3221 = vcombine.high %v3213, %v3213
        %v3222 = vcombine.high %v3220, %v3220
        %v3223 = vcombine.low %v3195, %v3196
        %v3224 = vcombine.high %v3195, %v3196
        %v3226 = vunpack.c.l.s4 1983009808
        %v3227 = vunpack.c.0.s8 %v3226
        %v3228 = vlaneseq
        %v3229 = vshrl.u32 %v3228, 7
        %v3230 = vsub.s32 %v3227, %v3229
        %v3231 = vrot.slane %v3223, %v3230
        %v3233 = vunpack.c.l.s4 1983009808
        %v3234 = vunpack.c.0.s8 %v3233
        %v3235 = vlaneseq
        %v3236 = vshrl.u32 %v3235, 7
        %v3237 = vsub.s32 %v3234, %v3236
        %v3238 = vrot.slane %v3224, %v3237
        %v3239 = vcombine.high %v3231, %v3231
        %v3240 = vcombine.high %v3238, %v3238
        %v3241 = vcombine.low %v3197, %v3198
        %v3243 = vunpack.c.l.s4 1983009808
        %v3244 = vunpack.c.0.s8 %v3243
        %v3245 = vlaneseq
        %v3246 = vshrl.u32 %v3245, 7
        %v3247 = vsub.s32 %v3244, %v3246
        %v3248 = vrot.slane %v3241, %v3247
        %v3249 = vcombine.high %v3248, %v3248
        %v3251 = vunpack.c.l.s4 1983009808
        %v3252 = vunpack.c.0.s8 %v3251
        %v3253 = vlaneseq
        %v3254 = vshrl.u32 %v3253, 7
        %v3255 = vsub.s32 %v3252, %v3254
        %v3256 = vrot.slane %v3213, %v3255
        %v3257 = vcombine.high %v3256, %v3256
        %v3259 = vunpack.c.l.s4 1983009808
        %v3260 = vunpack.c.0.s8 %v3259
        %v3261 = vlaneseq
        %v3262 = vshrl.u32 %v3261, 7
        %v3263 = vsub.s32 %v3260, %v3262
        %v3264 = vrot.slane %v3221, %v3263
        %v3265 = vcombine.high %v3264, %v3264
        %v3267 = vunpack.c.l.s4 1983009808
        %v3268 = vunpack.c.0.s8 %v3267
        %v3269 = vlaneseq
        %v3270 = vshrl.u32 %v3269, 7
        %v3271 = vsub.s32 %v3268, %v3270
        %v3272 = vrot.slane %v3220, %v3271
        %v3273 = vcombine.high %v3272, %v3272
        %v3275 = vunpack.c.l.s4 1983009808
        %v3276 = vunpack.c.0.s8 %v3275
        %v3277 = vlaneseq
        %v3278 = vshrl.u32 %v3277, 7
        %v3279 = vsub.s32 %v3276, %v3278
        %v3280 = vrot.slane %v3222, %v3279
        %v3281 = vcombine.high %v3280, %v3280
        %v3283 = vunpack.c.l.s4 1983009808
        %v3284 = vunpack.c.0.s8 %v3283
        %v3285 = vlaneseq
        %v3286 = vshrl.u32 %v3285, 7
        %v3287 = vsub.s32 %v3284, %v3286
        %v3288 = vrot.slane %v3231, %v3287
        %v3289 = vcombine.high %v3288, %v3288
        %v3291 = vunpack.c.l.s4 1983009808
        %v3292 = vunpack.c.0.s8 %v3291
        %v3293 = vlaneseq
        %v3294 = vshrl.u32 %v3293, 7
        %v3295 = vsub.s32 %v3292, %v3294
        %v3296 = vrot.slane %v3239, %v3295
        %v3297 = vcombine.high %v3296, %v3296
        %v3299 = vunpack.c.l.s4 1983009808
        %v3300 = vunpack.c.0.s8 %v3299
        %v3301 = vlaneseq
        %v3302 = vshrl.u32 %v3301, 7
        %v3303 = vsub.s32 %v3300, %v3302
        %v3304 = vrot.slane %v3238, %v3303
        %v3305 = vcombine.high %v3304, %v3304
        %v3307 = vunpack.c.l.s4 1983009808
        %v3308 = vunpack.c.0.s8 %v3307
        %v3309 = vlaneseq
        %v3310 = vshrl.u32 %v3309, 7
        %v3311 = vsub.s32 %v3308, %v3310
        %v3312 = vrot.slane %v3240, %v3311
        %v3313 = vcombine.high %v3312, %v3312
        %v3315 = vunpack.c.l.s4 1983009808
        %v3316 = vunpack.c.0.s8 %v3315
        %v3317 = vlaneseq
        %v3318 = vshrl.u32 %v3317, 7
        %v3319 = vsub.s32 %v3316, %v3318
        %v3320 = vrot.slane %v3248, %v3319
        %v3321 = vcombine.high %v3320, %v3320
        %v3323 = vunpack.c.l.s4 1983009808
        %v3324 = vunpack.c.0.s8 %v3323
        %v3325 = vlaneseq
        %v3326 = vshrl.u32 %v3325, 7
        %v3327 = vsub.s32 %v3324, %v3326
        %v3328 = vrot.slane %v3249, %v3327
        %v3329 = vcombine.high %v3328, %v3328
        %v3350 = vsel %vm1871, %v3256, -inf
        %v3351 = vrot.slane %v3350, 4
        %v3352 = vmax.f32 %v3350, %v3351
        %v3353 = vrot.slane %v3352, 2
        %v3354 = vmax.f32 %v3352, %v3353
        %v3355 = vrot.slane %v3354, 1
        %v3356 = vmax.f32 %v3354, %v3355
        %vm3357 = vcmask 517120
        %v3358 = vsel %vm3357, %v3257, -inf
        %v3359 = vrot.slane %v3358, 4
        %v3360 = vmax.f32 %v3358, %v3359
        %v3361 = vrot.slane %v3360, 2
        %v3362 = vmax.f32 %v3360, %v3361
        %v3363 = vrot.slane %v3362, 1
        %v3364 = vmax.f32 %v3362, %v3363
        %v3365 = vsel %vm1871, %v3264, -inf
        %v3366 = vrot.slane %v3365, 4
        %v3367 = vmax.f32 %v3365, %v3366
        %v3368 = vrot.slane %v3367, 2
        %v3369 = vmax.f32 %v3367, %v3368
        %v3370 = vrot.slane %v3369, 1
        %v3371 = vmax.f32 %v3369, %v3370
        %v3372 = vsel %vm3357, %v3265, -inf
        %v3373 = vrot.slane %v3372, 4
        %v3374 = vmax.f32 %v3372, %v3373
        %v3375 = vrot.slane %v3374, 2
        %v3376 = vmax.f32 %v3374, %v3375
        %v3377 = vrot.slane %v3376, 1
        %v3378 = vmax.f32 %v3376, %v3377
        %v3379 = vsel %vm1871, %v3272, -inf
        %v3380 = vrot.slane %v3379, 4
        %v3381 = vmax.f32 %v3379, %v3380
        %v3382 = vrot.slane %v3381, 2
        %v3383 = vmax.f32 %v3381, %v3382
        %v3384 = vrot.slane %v3383, 1
        %v3385 = vmax.f32 %v3383, %v3384
        %v3386 = vsel %vm3357, %v3273, -inf
        %v3387 = vrot.slane %v3386, 4
        %v3388 = vmax.f32 %v3386, %v3387
        %v3389 = vrot.slane %v3388, 2
        %v3390 = vmax.f32 %v3388, %v3389
        %v3391 = vrot.slane %v3390, 1
        %v3392 = vmax.f32 %v3390, %v3391
        %v3393 = vsel %vm1871, %v3280, -inf
        %v3394 = vrot.slane %v3393, 4
        %v3395 = vmax.f32 %v3393, %v3394
        %v3396 = vrot.slane %v3395, 2
        %v3397 = vmax.f32 %v3395, %v3396
        %v3398 = vrot.slane %v3397, 1
        %v3399 = vmax.f32 %v3397, %v3398
        %v3400 = vsel %vm3357, %v3281, -inf
        %v3401 = vrot.slane %v3400, 4
        %v3402 = vmax.f32 %v3400, %v3401
        %v3403 = vrot.slane %v3402, 2
        %v3404 = vmax.f32 %v3402, %v3403
        %v3405 = vrot.slane %v3404, 1
        %v3406 = vmax.f32 %v3404, %v3405
        %v3407 = vsel %vm1871, %v3288, -inf
        %v3408 = vrot.slane %v3407, 4
        %v3409 = vmax.f32 %v3407, %v3408
        %v3410 = vrot.slane %v3409, 2
        %v3411 = vmax.f32 %v3409, %v3410
        %v3412 = vrot.slane %v3411, 1
        %v3413 = vmax.f32 %v3411, %v3412
        %v3414 = vsel %vm3357, %v3289, -inf
        %v3415 = vrot.slane %v3414, 4
        %v3416 = vmax.f32 %v3414, %v3415
        %v3417 = vrot.slane %v3416, 2
        %v3418 = vmax.f32 %v3416, %v3417
        %v3419 = vrot.slane %v3418, 1
        %v3420 = vmax.f32 %v3418, %v3419
        %v3421 = vsel %vm1871, %v3296, -inf
        %v3422 = vrot.slane %v3421, 4
        %v3423 = vmax.f32 %v3421, %v3422
        %v3424 = vrot.slane %v3423, 2
        %v3425 = vmax.f32 %v3423, %v3424
        %v3426 = vrot.slane %v3425, 1
        %v3427 = vmax.f32 %v3425, %v3426
        %v3428 = vsel %vm3357, %v3297, -inf
        %v3429 = vrot.slane %v3428, 4
        %v3430 = vmax.f32 %v3428, %v3429
        %v3431 = vrot.slane %v3430, 2
        %v3432 = vmax.f32 %v3430, %v3431
        %v3433 = vrot.slane %v3432, 1
        %v3434 = vmax.f32 %v3432, %v3433
        %v3435 = vsel %vm1871, %v3304, -inf
        %v3436 = vrot.slane %v3435, 4
        %v3437 = vmax.f32 %v3435, %v3436
        %v3438 = vrot.slane %v3437, 2
        %v3439 = vmax.f32 %v3437, %v3438
        %v3440 = vrot.slane %v3439, 1
        %v3441 = vmax.f32 %v3439, %v3440
        %v3442 = vsel %vm3357, %v3305, -inf
        %v3443 = vrot.slane %v3442, 4
        %v3444 = vmax.f32 %v3442, %v3443
        %v3445 = vrot.slane %v3444, 2
        %v3446 = vmax.f32 %v3444, %v3445
        %v3447 = vrot.slane %v3446, 1
        %v3448 = vmax.f32 %v3446, %v3447
        %v3449 = vsel %vm1871, %v3312, -inf
        %v3450 = vrot.slane %v3449, 4
        %v3451 = vmax.f32 %v3449, %v3450
        %v3452 = vrot.slane %v3451, 2
        %v3453 = vmax.f32 %v3451, %v3452
        %v3454 = vrot.slane %v3453, 1
        %v3455 = vmax.f32 %v3453, %v3454
        %v3456 = vsel %vm3357, %v3313, -inf
        %v3457 = vrot.slane %v3456, 4
        %v3458 = vmax.f32 %v3456, %v3457
        %v3459 = vrot.slane %v3458, 2
        %v3460 = vmax.f32 %v3458, %v3459
        %v3461 = vrot.slane %v3460, 1
        %v3462 = vmax.f32 %v3460, %v3461
        %v3463 = vsel %vm1871, %v3320, -inf
        %v3464 = vrot.slane %v3463, 4
        %v3465 = vmax.f32 %v3463, %v3464
        %v3466 = vrot.slane %v3465, 2
        %v3467 = vmax.f32 %v3465, %v3466
        %v3468 = vrot.slane %v3467, 1
        %v3469 = vmax.f32 %v3467, %v3468
        %v3470 = vsel %vm3357, %v3321, -inf
        %v3471 = vrot.slane %v3470, 4
        %v3472 = vmax.f32 %v3470, %v3471
        %v3473 = vrot.slane %v3472, 2
        %v3474 = vmax.f32 %v3472, %v3473
        %v3475 = vrot.slane %v3474, 1
        %v3476 = vmax.f32 %v3474, %v3475
        %v3477 = vsel %vm1871, %v3328, -inf
        %v3478 = vrot.slane %v3477, 4
        %v3479 = vmax.f32 %v3477, %v3478
        %v3480 = vrot.slane %v3479, 2
        %v3481 = vmax.f32 %v3479, %v3480
        %v3482 = vrot.slane %v3481, 1
        %v3483 = vmax.f32 %v3481, %v3482
        %v3484 = vsel %vm3357, %v3329, -inf
        %v3485 = vrot.slane %v3484, 4
        %v3486 = vmax.f32 %v3484, %v3485
        %v3487 = vrot.slane %v3486, 2
        %v3488 = vmax.f32 %v3486, %v3487
        %v3489 = vrot.slane %v3488, 1
        %v3490 = vmax.f32 %v3488, %v3489
        %v3511 = vsel %vm2193, %v3371, %v3356
        %v3512 = vsel %vm2195, %v3385, %v3511
        %v3513 = vsel %vm2197, %v3399, %v3512
        %v3514 = vsel %vm2199, %v3413, %v3513
        %v3515 = vsel %vm2201, %v3427, %v3514
        %v3516 = vsel %vm2203, %v3441, %v3515
        %v3517 = vsel %vm2193, %v3378, %v3364
        %v3518 = vsel %vm2195, %v3392, %v3517
        %v3519 = vsel %vm2197, %v3406, %v3518
        %v3520 = vsel %vm2199, %v3420, %v3519
        %v3521 = vsel %vm2201, %v3434, %v3520
        %v3522 = vsel %vm2203, %v3448, %v3521
        %v3523 = vsel %vm2211, %v3469, %v3455
        %v3524 = vsel %vm2193, %v3483, %v3523
        %v3525 = vsel %vm2211, %v3476, %v3462
        %v3526 = vsel %vm2193, %v3490, %v3525
        %3531 = vst [vmem:[#allocation3] sm:$0xfe] %v3516
        %vm3532 = vcmask 523265
        %3533 = vst.msk [vmem:[#allocation3 + $0x8] sm:$0xfe] %vm3532, %v3522
        %3534 = vst [vmem:[#allocation3 + $0x10] sm:$0x7] %v3524
        %vm3535 = vcmask 518144
        %3536 = vst.msk [vmem:[#allocation3 + $0x18] sm:$0x7] %vm3535, %v3526
        %vm3537 = vcmp.lt.s32.totalorder %v2249, 192
        %vm3538 = vmand %vm2250, %vm3537
        %3539 = vst.msk [vmem:[#allocation3] ss:$8 sm:$0x3] %vm3538, 0.0
        %3540 = vst.msk [vmem:[#allocation3] ss:$8 sm:$0x0] %vm3538, 0.0
        %s3541 = scalar_lea.vmem [#allocation3], 19
        %3542 = vst.msk [vmem:[%s3541] ss:$8 sm:$0x3] %vm3538, 0.0
        %3543 = vst.msk [vmem:[%s3541] ss:$8 sm:$0x0] %vm3538, 0.0
        %v3544 = vld [vmem:[%s9] ss:$4 sm:$0x3]
        %s3545 = scalar_lea.vmem %s9, 1
        %v3546 = vld [vmem:[%s3545] ss:$4 sm:$0x3]
        %s3547 = scalar_lea.vmem %s9, 2
        %v3548 = vld [vmem:[%s3547] ss:$4 sm:$0x3]
        %v3549 = vld [vmem:[#allocation3] sm:$0xff]
        %v3550 = vld [vmem:[#allocation3 + $0x8] sm:$0xff]
        %v3551 = vld [vmem:[#allocation3 + $0x10] sm:$0x3]
        %v3552 = vld [vmem:[#allocation3 + $0x18] sm:$0x3]
        %v3553 = vld [vmem:[%s7] sm:$0xff]
        %v3554 = vld [vmem:[%s7 + $0x8] sm:$0xff]
        %v3555 = vld [vmem:[%s7 + $0x10] sm:$0xff]
        %v3556 = vld [vmem:[%s7 + $0x18] sm:$0xff]
        %v3557 = vld [vmem:[%s7 + $0x20] sm:$0xff]
        %v3558 = vld [vmem:[%s7 + $0x28] sm:$0xff]
        %v3559 = vld [vmem:[%s7 + $0x30] sm:$0xff]
        %v3560 = vld [vmem:[%s7 + $0x38] sm:$0xff]
        %v3561 = vld [vmem:[%s7 + $0x40] sm:$0xff]
        %v3562 = vld [vmem:[%s7 + $0x48] sm:$0xff]
        %v3563 = vld [vmem:[%s7 + $0x50] sm:$0xff]
        %v3564 = vld [vmem:[%s7 + $0x58] sm:$0xff]
        %v3565 = vld [vmem:[%s7 + $0x60] sm:$0xff]
        %v3566 = vld [vmem:[%s7 + $0x68] sm:$0xff]
        %v3567 = vld [vmem:[%s7 + $0x70] sm:$0xff]
        %v3568 = vld [vmem:[%s7 + $0x78] sm:$0xff]
        %v3569 = vld [vmem:[%s7 + $0x80] sm:$0xff]
        %v3570 = vld [vmem:[%s7 + $0x88] sm:$0xff]
        %v3571 = vld [vmem:[%s7 + $0x90] sm:$0xff]
        %v3572 = vld [vmem:[%s7 + $0x98] sm:$0xff]
        %v3573 = vld [vmem:[%s7 + $0xa0] sm:$0xff]
        %v3574 = vld [vmem:[%s7 + $0xa8] sm:$0xff]
        %v3575 = vld [vmem:[%s7 + $0xb0] sm:$0xff]
        %v3576 = vld [vmem:[%s7 + $0xb8] sm:$0xff]
        %v3577 = vld [vmem:[%s7 + $0xc0] sm:$0xff]
        %v3578 = vld [vmem:[%s7 + $0xc8] sm:$0xff]
        %v3579 = vld [vmem:[%s7 + $0xd0] sm:$0xff]
        %v3580 = vld [vmem:[%s7 + $0xd8] sm:$0xff]
        %v3581 = vld [vmem:[%s7 + $0xe0] sm:$0xff]
        %v3582 = vld [vmem:[%s7 + $0xe8] sm:$0xff]
        %v3583 = vld [vmem:[%s7 + $0xf0] sm:$0xff]
        %v3584 = vld [vmem:[%s7 + $0xf8] sm:$0xff]
        %v3585 = vld [vmem:[%s7 + $0x100] sm:$0xff]
        %v3586 = vld [vmem:[%s7 + $0x108] sm:$0xff]
        %v3587 = vld [vmem:[%s7 + $0x110] sm:$0xff]
        %v3588 = vld [vmem:[%s7 + $0x118] sm:$0xff]
        %v3589 = vld [vmem:[%s7 + $0x120] sm:$0xff]
        %v3590 = vld [vmem:[%s7 + $0x128] sm:$0xff]
        %v3591 = vld [vmem:[%s7 + $0x130] sm:$0xff]
        %v3592 = vld [vmem:[%s7 + $0x138] sm:$0xff]
        %v3593 = vld [vmem:[%s7 + $0x140] sm:$0xff]
        %v3594 = vld [vmem:[%s7 + $0x148] sm:$0xff]
        %v3595 = vld [vmem:[%s7 + $0x150] sm:$0xff]
        %v3596 = vld [vmem:[%s7 + $0x158] sm:$0xff]
        %v3597 = vld [vmem:[%s7 + $0x160] sm:$0xff]
        %v3598 = vld [vmem:[%s7 + $0x168] sm:$0xff]
        %v3599 = vld [vmem:[%s7 + $0x170] sm:$0xff]
        %v3600 = vld [vmem:[%s7 + $0x178] sm:$0xff]
        %v3601 = vld [vmem:[#allocation3] sm:$0xfe]
        %v3602 = vld [vmem:[#allocation3 + $0x8] sm:$0xfe]
        %v3603 = vld [vmem:[#allocation3 + $0x10] sm:$0x7]
        %v3604 = vld [vmem:[#allocation3 + $0x18] sm:$0x7]
        %s3605 = scalar_lea.vmem %s7, 384
        %v3606 = vld [vmem:[%s3605] sm:$0xff]
        %v3607 = vld [vmem:[%s3605 + $0x8] sm:$0xff]
        %v3608 = vld [vmem:[%s3605 + $0x10] sm:$0xff]
        %v3609 = vld [vmem:[%s3605 + $0x18] sm:$0xff]
        %v3610 = vld [vmem:[%s3605 + $0x20] sm:$0xff]
        %v3611 = vld [vmem:[%s3605 + $0x28] sm:$0xff]
        %v3612 = vld [vmem:[%s3605 + $0x30] sm:$0xff]
        %v3613 = vld [vmem:[%s3605 + $0x38] sm:$0xff]
        %v3614 = vld [vmem:[%s3605 + $0x40] sm:$0xff]
        %v3615 = vld [vmem:[%s3605 + $0x48] sm:$0xff]
        %v3616 = vld [vmem:[%s3605 + $0x50] sm:$0xff]
        %v3617 = vld [vmem:[%s3605 + $0x58] sm:$0xff]
        %v3618 = vld [vmem:[%s3605 + $0x60] sm:$0xff]
        %v3619 = vld [vmem:[%s3605 + $0x68] sm:$0xff]
        %v3620 = vld [vmem:[%s3605 + $0x70] sm:$0xff]
        %v3621 = vld [vmem:[%s3605 + $0x78] sm:$0xff]
        %v3622 = vld [vmem:[%s3605 + $0x80] sm:$0xff]
        %v3623 = vld [vmem:[%s3605 + $0x88] sm:$0xff]
        %v3624 = vld [vmem:[%s3605 + $0x90] sm:$0xff]
        %v3625 = vld [vmem:[%s3605 + $0x98] sm:$0xff]
        %v3626 = vld [vmem:[%s3605 + $0xa0] sm:$0xff]
        %v3627 = vld [vmem:[%s3605 + $0xa8] sm:$0xff]
        %v3628 = vld [vmem:[%s3605 + $0xb0] sm:$0xff]
        %v3629 = vld [vmem:[%s3605 + $0xb8] sm:$0xff]
        %v3630 = vld [vmem:[%s3605 + $0xc0] sm:$0xff]
        %v3631 = vld [vmem:[%s3605 + $0xc8] sm:$0xff]
        %v3632 = vld [vmem:[%s3605 + $0xd0] sm:$0xff]
        %v3633 = vld [vmem:[%s3605 + $0xd8] sm:$0xff]
        %v3634 = vld [vmem:[%s3605 + $0xe0] sm:$0xff]
        %v3635 = vld [vmem:[%s3605 + $0xe8] sm:$0xff]
        %v3636 = vld [vmem:[%s3605 + $0xf0] sm:$0xff]
        %v3637 = vld [vmem:[%s3605 + $0xf8] sm:$0xff]
        %v3638 = vld [vmem:[%s3605 + $0x100] sm:$0xff]
        %v3639 = vld [vmem:[%s3605 + $0x108] sm:$0xff]
        %v3640 = vld [vmem:[%s3605 + $0x110] sm:$0xff]
        %v3641 = vld [vmem:[%s3605 + $0x118] sm:$0xff]
        %v3642 = vld [vmem:[%s3605 + $0x120] sm:$0xff]
        %v3643 = vld [vmem:[%s3605 + $0x128] sm:$0xff]
        %v3644 = vld [vmem:[%s3605 + $0x130] sm:$0xff]
        %v3645 = vld [vmem:[%s3605 + $0x138] sm:$0xff]
        %v3646 = vld [vmem:[%s3605 + $0x140] sm:$0xff]
        %v3647 = vld [vmem:[%s3605 + $0x148] sm:$0xff]
        %v3648 = vld [vmem:[%s3605 + $0x150] sm:$0xff]
        %v3649 = vld [vmem:[%s3605 + $0x158] sm:$0xff]
        %v3650 = vld [vmem:[%s3605 + $0x160] sm:$0xff]
        %v3651 = vld [vmem:[%s3605 + $0x168] sm:$0xff]
        %v3652 = vld [vmem:[%s3605 + $0x170] sm:$0xff]
        %v3653 = vld [vmem:[%s3605 + $0x178] sm:$0xff]
        %v3658 = vrot.slane %v3601, 1
        %v3659 = vrot.slane %v3603, 1
        %v3660 = vsel %vm2368, %v3658, %v3659
        %v3661 = vrot.slane %v3602, 1
        %v3662 = vrot.slane %v3604, 1
        %v3663 = vsel %vm2368, %v3661, %v3662
        %vm3666 = vcmask 523264
        %v3667 = vsel %vm3666, %v3663, 0
        %v3669 = vsel %vm3666, %v3662, 0
        %3671 = vmatprep.subr.mxu0 %v3637
        %3672 = vmatpush1.msra.mxu0 %v3636
        %3673 = vmatprep.subr.mxu0 %v3635
        %3674 = vmatpush1.msra.mxu0 %v3634
        %3675 = vmatprep.subr.mxu0 %v3633
        %3676 = vmatpush1.msra.mxu0 %v3632
        %3677 = vmatprep.subr.mxu0 %v3631
        %3678 = vmatpush1.msra.mxu0 %v3630
        %3679 = vmatprep.subr.mxu0 %v3629
        %3680 = vmatpush1.msra.mxu0 %v3628
        %3681 = vmatprep.subr.mxu0 %v3627
        %3682 = vmatpush1.msra.mxu0 %v3626
        %3683 = vmatprep.subr.mxu0 %v3625
        %3684 = vmatpush1.msra.mxu0 %v3624
        %3685 = vmatprep.subr.mxu0 %v3623
        %3686 = vmatpush1.msra.mxu0 %v3622
        %3687 = vmatprep.subr.mxu0 %v3621
        %3688 = vmatpush1.msra.mxu0 %v3620
        %3689 = vmatprep.subr.mxu0 %v3619
        %3690 = vmatpush1.msra.mxu0 %v3618
        %3691 = vmatprep.subr.mxu0 %v3617
        %3692 = vmatpush1.msra.mxu0 %v3616
        %3693 = vmatprep.subr.mxu0 %v3615
        %3694 = vmatpush1.msra.mxu0 %v3614
        %3695 = vmatprep.subr.mxu0 %v3613
        %3696 = vmatpush1.msra.mxu0 %v3612
        %3697 = vmatprep.subr.mxu0 %v3611
        %3698 = vmatpush1.msra.mxu0 %v3610
        %3699 = vmatprep.subr.mxu0 %v3609
        %3700 = vmatpush1.msra.mxu0 %v3608
        %3701 = vmatprep.subr.mxu0 %v3607
        %3702 = vmatpush1.msra.mxu0 %v3606
        %3703 = vmatprep.subr.mxu0 0.0
        %3704 = vmatpush2.msra.mxu0 0.0
        %3705 = vmatprep.subr.mxu0 0.0
        %3706 = vmatpush2.msra.mxu0 0.0
        %3707 = vmatprep.subr.mxu0 0.0
        %3708 = vmatpush2.msra.mxu0 0.0
        %3709 = vmatprep.subr.mxu0 0.0
        %3710 = vmatpush2.msra.mxu0 0.0
        %3711 = vmatprep.subr.mxu0 0.0
        %3712 = vmatpush2.msra.mxu0 0.0
        %3713 = vmatprep.subr.mxu0 0.0
        %3714 = vmatpush2.msra.mxu0 0.0
        %3715 = vmatprep.subr.mxu0 0.0
        %3716 = vmatpush2.msra.mxu0 0.0
        %3717 = vmatprep.subr.mxu0 0.0
        %3718 = vmatpush2.msra.mxu0 0.0
        %3719 = vmatprep.subr.mxu0 %v3653
        %3720 = vmatpush2.msra.mxu0 %v3652
        %3721 = vmatprep.subr.mxu0 %v3651
        %3722 = vmatpush2.msra.mxu0 %v3650
        %3723 = vmatprep.subr.mxu0 %v3649
        %3724 = vmatpush2.msra.mxu0 %v3648
        %3725 = vmatprep.subr.mxu0 %v3647
        %3726 = vmatpush2.msra.mxu0 %v3646
        %3727 = vmatprep.subr.mxu0 %v3645
        %3728 = vmatpush2.msra.mxu0 %v3644
        %3729 = vmatprep.subr.mxu0 %v3643
        %3730 = vmatpush2.msra.mxu0 %v3642
        %3731 = vmatprep.subr.mxu0 %v3641
        %3732 = vmatpush2.msra.mxu0 %v3640
        %3733 = vmatprep.subr.mxu0 %v3639
        %3734 = vmatpush2.msra.mxu0 %v3638
        %3735 = vmatprep.mubr.f32.mxu0 %v3667
        %3736 = vmatmul.mubr.f32.gmra.mxu0 %v3660
        %v3737 = vpop.f32.mrf.mxu0
        %v3738 = vadd.f32 0.0, %v3737
        %v3739 = vpop.f32.mrf.mxu0
        %v3740 = vadd.f32 0.0, %v3739
        %3741 = vmatprep.mubr.f32.mxu0 %v3669
        %3742 = vmatmul.mubr.f32.gmra.mxu0 %v3659
        %v3743 = vpop.f32.mrf.mxu0
        %v3744 = vadd.f32 0.0, %v3743
        %v3745 = vpop.f32.mrf.mxu0
        %v3746 = vadd.f32 0.0, %v3745
        %3747 = vdwg.mxu0
        %v3749 = vsel %vm3666, %v3550, 0
        %v3752 = vsel %vm3666, %v3552, 0
        %3754 = vmatprep.subr.mxu0 %v3584
        %3755 = vmatpush1.msra.mxu0 %v3583
        %3756 = vmatprep.subr.mxu0 %v3582
        %3757 = vmatpush1.msra.mxu0 %v3581
        %3758 = vmatprep.subr.mxu0 %v3580
        %3759 = vmatpush1.msra.mxu0 %v3579
        %3760 = vmatprep.subr.mxu0 %v3578
        %3761 = vmatpush1.msra.mxu0 %v3577
        %3762 = vmatprep.subr.mxu0 %v3576
        %3763 = vmatpush1.msra.mxu0 %v3575
        %3764 = vmatprep.subr.mxu0 %v3574
        %3765 = vmatpush1.msra.mxu0 %v3573
        %3766 = vmatprep.subr.mxu0 %v3572
        %3767 = vmatpush1.msra.mxu0 %v3571
        %3768 = vmatprep.subr.mxu0 %v3570
        %3769 = vmatpush1.msra.mxu0 %v3569
        %3770 = vmatprep.subr.mxu0 %v3568
        %3771 = vmatpush1.msra.mxu0 %v3567
        %3772 = vmatprep.subr.mxu0 %v3566
        %3773 = vmatpush1.msra.mxu0 %v3565
        %3774 = vmatprep.subr.mxu0 %v3564
        %3775 = vmatpush1.msra.mxu0 %v3563
        %3776 = vmatprep.subr.mxu0 %v3562
        %3777 = vmatpush1.msra.mxu0 %v3561
        %3778 = vmatprep.subr.mxu0 %v3560
        %3779 = vmatpush1.msra.mxu0 %v3559
        %3780 = vmatprep.subr.mxu0 %v3558
        %3781 = vmatpush1.msra.mxu0 %v3557
        %3782 = vmatprep.subr.mxu0 %v3556
        %3783 = vmatpush1.msra.mxu0 %v3555
        %3784 = vmatprep.subr.mxu0 %v3554
        %3785 = vmatpush1.msra.mxu0 %v3553
        %3786 = vmatprep.subr.mxu0 0.0
        %3787 = vmatpush2.msra.mxu0 0.0
        %3788 = vmatprep.subr.mxu0 0.0
        %3789 = vmatpush2.msra.mxu0 0.0
        %3790 = vmatprep.subr.mxu0 0.0
        %3791 = vmatpush2.msra.mxu0 0.0
        %3792 = vmatprep.subr.mxu0 0.0
        %3793 = vmatpush2.msra.mxu0 0.0
        %3794 = vmatprep.subr.mxu0 0.0
        %3795 = vmatpush2.msra.mxu0 0.0
        %3796 = vmatprep.subr.mxu0 0.0
        %3797 = vmatpush2.msra.mxu0 0.0
        %3798 = vmatprep.subr.mxu0 0.0
        %3799 = vmatpush2.msra.mxu0 0.0
        %3800 = vmatprep.subr.mxu0 0.0
        %3801 = vmatpush2.msra.mxu0 0.0
        %3802 = vmatprep.subr.mxu0 %v3600
        %3803 = vmatpush2.msra.mxu0 %v3599
        %3804 = vmatprep.subr.mxu0 %v3598
        %3805 = vmatpush2.msra.mxu0 %v3597
        %3806 = vmatprep.subr.mxu0 %v3596
        %3807 = vmatpush2.msra.mxu0 %v3595
        %3808 = vmatprep.subr.mxu0 %v3594
        %3809 = vmatpush2.msra.mxu0 %v3593
        %3810 = vmatprep.subr.mxu0 %v3592
        %3811 = vmatpush2.msra.mxu0 %v3591
        %3812 = vmatprep.subr.mxu0 %v3590
        %3813 = vmatpush2.msra.mxu0 %v3589
        %3814 = vmatprep.subr.mxu0 %v3588
        %3815 = vmatpush2.msra.mxu0 %v3587
        %3816 = vmatprep.subr.mxu0 %v3586
        %3817 = vmatpush2.msra.mxu0 %v3585
        %3818 = vmatprep.mubr.f32.mxu0 %v3749
        %3819 = vmatmul.mubr.f32.gmra.mxu0 %v3549
        %v3820 = vpop.f32.mrf.mxu0
        %v3821 = vadd.f32 %v3738, %v3820
        %v3822 = vpop.f32.mrf.mxu0
        %v3823 = vadd.f32 %v3740, %v3822
        %3824 = vmatprep.mubr.f32.mxu0 %v3752
        %3825 = vmatmul.mubr.f32.gmra.mxu0 %v3551
        %v3826 = vpop.f32.mrf.mxu0
        %v3827 = vadd.f32 %v3744, %v3826
        %v3828 = vpop.f32.mrf.mxu0
        %v3829 = vadd.f32 %v3746, %v3828
        %3830 = vdwg.mxu0
        %v3831 = vld [vmem:[#allocation3] sm:$0xfc]
        %v3832 = vld [vmem:[#allocation3 + $0x8] sm:$0xfc]
        %v3833 = vld [vmem:[#allocation3 + $0x10] sm:$0xf]
        %v3834 = vld [vmem:[#allocation3 + $0x18] sm:$0xf]
        %s3835 = scalar_lea.vmem %s7, 768
        %v3836 = vld [vmem:[%s3835] sm:$0xff]
        %v3837 = vld [vmem:[%s3835 + $0x8] sm:$0xff]
        %v3838 = vld [vmem:[%s3835 + $0x10] sm:$0xff]
        %v3839 = vld [vmem:[%s3835 + $0x18] sm:$0xff]
        %v3840 = vld [vmem:[%s3835 + $0x20] sm:$0xff]
        %v3841 = vld [vmem:[%s3835 + $0x28] sm:$0xff]
        %v3842 = vld [vmem:[%s3835 + $0x30] sm:$0xff]
        %v3843 = vld [vmem:[%s3835 + $0x38] sm:$0xff]
        %v3844 = vld [vmem:[%s3835 + $0x40] sm:$0xff]
        %v3845 = vld [vmem:[%s3835 + $0x48] sm:$0xff]
        %v3846 = vld [vmem:[%s3835 + $0x50] sm:$0xff]
        %v3847 = vld [vmem:[%s3835 + $0x58] sm:$0xff]
        %v3848 = vld [vmem:[%s3835 + $0x60] sm:$0xff]
        %v3849 = vld [vmem:[%s3835 + $0x68] sm:$0xff]
        %v3850 = vld [vmem:[%s3835 + $0x70] sm:$0xff]
        %v3851 = vld [vmem:[%s3835 + $0x78] sm:$0xff]
        %v3852 = vld [vmem:[%s3835 + $0x80] sm:$0xff]
        %v3853 = vld [vmem:[%s3835 + $0x88] sm:$0xff]
        %v3854 = vld [vmem:[%s3835 + $0x90] sm:$0xff]
        %v3855 = vld [vmem:[%s3835 + $0x98] sm:$0xff]
        %v3856 = vld [vmem:[%s3835 + $0xa0] sm:$0xff]
        %v3857 = vld [vmem:[%s3835 + $0xa8] sm:$0xff]
        %v3858 = vld [vmem:[%s3835 + $0xb0] sm:$0xff]
        %v3859 = vld [vmem:[%s3835 + $0xb8] sm:$0xff]
        %v3860 = vld [vmem:[%s3835 + $0xc0] sm:$0xff]
        %v3861 = vld [vmem:[%s3835 + $0xc8] sm:$0xff]
        %v3862 = vld [vmem:[%s3835 + $0xd0] sm:$0xff]
        %v3863 = vld [vmem:[%s3835 + $0xd8] sm:$0xff]
        %v3864 = vld [vmem:[%s3835 + $0xe0] sm:$0xff]
        %v3865 = vld [vmem:[%s3835 + $0xe8] sm:$0xff]
        %v3866 = vld [vmem:[%s3835 + $0xf0] sm:$0xff]
        %v3867 = vld [vmem:[%s3835 + $0xf8] sm:$0xff]
        %v3868 = vld [vmem:[%s3835 + $0x100] sm:$0xff]
        %v3869 = vld [vmem:[%s3835 + $0x108] sm:$0xff]
        %v3870 = vld [vmem:[%s3835 + $0x110] sm:$0xff]
        %v3871 = vld [vmem:[%s3835 + $0x118] sm:$0xff]
        %v3872 = vld [vmem:[%s3835 + $0x120] sm:$0xff]
        %v3873 = vld [vmem:[%s3835 + $0x128] sm:$0xff]
        %v3874 = vld [vmem:[%s3835 + $0x130] sm:$0xff]
        %v3875 = vld [vmem:[%s3835 + $0x138] sm:$0xff]
        %v3876 = vld [vmem:[%s3835 + $0x140] sm:$0xff]
        %v3877 = vld [vmem:[%s3835 + $0x148] sm:$0xff]
        %v3878 = vld [vmem:[%s3835 + $0x150] sm:$0xff]
        %v3879 = vld [vmem:[%s3835 + $0x158] sm:$0xff]
        %v3880 = vld [vmem:[%s3835 + $0x160] sm:$0xff]
        %v3881 = vld [vmem:[%s3835 + $0x168] sm:$0xff]
        %v3882 = vld [vmem:[%s3835 + $0x170] sm:$0xff]
        %v3883 = vld [vmem:[%s3835 + $0x178] sm:$0xff]
        %v3888 = vrot.slane %v3831, 2
        %v3889 = vrot.slane %v3833, 2
        %v3890 = vsel %vm655, %v3888, %v3889
        %v3891 = vrot.slane %v3832, 2
        %v3892 = vrot.slane %v3834, 2
        %v3893 = vsel %vm655, %v3891, %v3892
        %v3896 = vsel %vm3666, %v3893, 0
        %v3898 = vsel %vm3666, %v3892, 0
        %3900 = vmatprep.subr.mxu0 %v3867
        %3901 = vmatpush1.msra.mxu0 %v3866
        %3902 = vmatprep.subr.mxu0 %v3865
        %3903 = vmatpush1.msra.mxu0 %v3864
        %3904 = vmatprep.subr.mxu0 %v3863
        %3905 = vmatpush1.msra.mxu0 %v3862
        %3906 = vmatprep.subr.mxu0 %v3861
        %3907 = vmatpush1.msra.mxu0 %v3860
        %3908 = vmatprep.subr.mxu0 %v3859
        %3909 = vmatpush1.msra.mxu0 %v3858
        %3910 = vmatprep.subr.mxu0 %v3857
        %3911 = vmatpush1.msra.mxu0 %v3856
        %3912 = vmatprep.subr.mxu0 %v3855
        %3913 = vmatpush1.msra.mxu0 %v3854
        %3914 = vmatprep.subr.mxu0 %v3853
        %3915 = vmatpush1.msra.mxu0 %v3852
        %3916 = vmatprep.subr.mxu0 %v3851
        %3917 = vmatpush1.msra.mxu0 %v3850
        %3918 = vmatprep.subr.mxu0 %v3849
        %3919 = vmatpush1.msra.mxu0 %v3848
        %3920 = vmatprep.subr.mxu0 %v3847
        %3921 = vmatpush1.msra.mxu0 %v3846
        %3922 = vmatprep.subr.mxu0 %v3845
        %3923 = vmatpush1.msra.mxu0 %v3844
        %3924 = vmatprep.subr.mxu0 %v3843
        %3925 = vmatpush1.msra.mxu0 %v3842
        %3926 = vmatprep.subr.mxu0 %v3841
        %3927 = vmatpush1.msra.mxu0 %v3840
        %3928 = vmatprep.subr.mxu0 %v3839
        %3929 = vmatpush1.msra.mxu0 %v3838
        %3930 = vmatprep.subr.mxu0 %v3837
        %3931 = vmatpush1.msra.mxu0 %v3836
        %3932 = vmatprep.subr.mxu0 0.0
        %3933 = vmatpush2.msra.mxu0 0.0
        %3934 = vmatprep.subr.mxu0 0.0
        %3935 = vmatpush2.msra.mxu0 0.0
        %3936 = vmatprep.subr.mxu0 0.0
        %3937 = vmatpush2.msra.mxu0 0.0
        %3938 = vmatprep.subr.mxu0 0.0
        %3939 = vmatpush2.msra.mxu0 0.0
        %3940 = vmatprep.subr.mxu0 0.0
        %3941 = vmatpush2.msra.mxu0 0.0
        %3942 = vmatprep.subr.mxu0 0.0
        %3943 = vmatpush2.msra.mxu0 0.0
        %3944 = vmatprep.subr.mxu0 0.0
        %3945 = vmatpush2.msra.mxu0 0.0
        %3946 = vmatprep.subr.mxu0 0.0
        %3947 = vmatpush2.msra.mxu0 0.0
        %3948 = vmatprep.subr.mxu0 %v3883
        %3949 = vmatpush2.msra.mxu0 %v3882
        %3950 = vmatprep.subr.mxu0 %v3881
        %3951 = vmatpush2.msra.mxu0 %v3880
        %3952 = vmatprep.subr.mxu0 %v3879
        %3953 = vmatpush2.msra.mxu0 %v3878
        %3954 = vmatprep.subr.mxu0 %v3877
        %3955 = vmatpush2.msra.mxu0 %v3876
        %3956 = vmatprep.subr.mxu0 %v3875
        %3957 = vmatpush2.msra.mxu0 %v3874
        %3958 = vmatprep.subr.mxu0 %v3873
        %3959 = vmatpush2.msra.mxu0 %v3872
        %3960 = vmatprep.subr.mxu0 %v3871
        %3961 = vmatpush2.msra.mxu0 %v3870
        %3962 = vmatprep.subr.mxu0 %v3869
        %3963 = vmatpush2.msra.mxu0 %v3868
        %3964 = vmatprep.mubr.f32.mxu0 %v3896
        %3965 = vmatmul.mubr.f32.gmra.mxu0 %v3890
        %v3966 = vpop.f32.mrf.mxu0
        %v3967 = vadd.f32 0.0, %v3966
        %v3968 = vpop.f32.mrf.mxu0
        %v3969 = vadd.f32 0.0, %v3968
        %3970 = vmatprep.mubr.f32.mxu0 %v3898
        %3971 = vmatmul.mubr.f32.gmra.mxu0 %v3889
        %v3972 = vpop.f32.mrf.mxu0
        %v3973 = vadd.f32 0.0, %v3972
        %v3974 = vpop.f32.mrf.mxu0
        %v3975 = vadd.f32 0.0, %v3974
        %3976 = vdwg.mxu0
        %v3977 = vadd.f32 %v3821, %v3967
        %v3978 = vadd.f32 %v3823, %v3969
        %v3979 = vadd.f32 %v3827, %v3973
        %v3980 = vadd.f32 %v3829, %v3975
        %v3982 = vlaneseq
        %v3983 = vshrl.u32 %v3982, 7
        %v3984 = vsub.s32 0, %v3983
        %v3985 = vrot.slane %v3544, %v3984
        %v3986 = vlaneseq
        %v3987 = vshrl.u32 %v3986, 7
        %v3988 = vsub.s32 1, %v3987
        %v3989 = vrot.slane %v3544, %v3988
        %v3992 = vadd.f32 %v3977, %v3985
        %v3993 = vadd.f32 %v3978, %v3989
        %v3994 = vadd.f32 %v3979, %v3985
        %v3995 = vadd.f32 %v3980, %v3989
        %v3996 = vmax.f32 %v3992, 0.0
        %v3997 = vmax.f32 %v3993, 0.0
        %v3998 = vmax.f32 %v3994, 0.0
        %v3999 = vmax.f32 %v3995, 0.0
        %v4001 = vlaneseq
        %v4002 = vshrl.u32 %v4001, 7
        %v4003 = vsub.s32 0, %v4002
        %v4004 = vrot.slane %v3546, %v4003
        %v4005 = vlaneseq
        %v4006 = vshrl.u32 %v4005, 7
        %v4007 = vsub.s32 1, %v4006
        %v4008 = vrot.slane %v3546, %v4007
        %v4011 = vmul.f32 %v3996, %v4004
        %v4012 = vmul.f32 %v3997, %v4008
        %v4013 = vmul.f32 %v3998, %v4004
        %v4014 = vmul.f32 %v3999, %v4008
        %v4016 = vlaneseq
        %v4017 = vshrl.u32 %v4016, 7
        %v4018 = vsub.s32 0, %v4017
        %v4019 = vrot.slane %v3548, %v4018
        %v4020 = vlaneseq
        %v4021 = vshrl.u32 %v4020, 7
        %v4022 = vsub.s32 1, %v4021
        %v4023 = vrot.slane %v3548, %v4022
        %v4026 = vadd.f32 %v4011, %v4019
        %v4027 = vadd.f32 %v4012, %v4023
        %v4028 = vadd.f32 %v4013, %v4019
        %v4029 = vadd.f32 %v4014, %v4023
        %v4030 = vld [vmem:[%s8] sm:$0xff]
        %v4031 = vld [vmem:[%s8 + $0x8] sm:$0xff]
        %v4032 = vld [vmem:[%s8 + $0x10] sm:$0xff]
        %v4033 = vld [vmem:[%s8 + $0x18] sm:$0xff]
        %v4034 = vld [vmem:[%s8 + $0x20] sm:$0xff]
        %v4035 = vld [vmem:[%s8 + $0x28] sm:$0xff]
        %v4036 = vld [vmem:[%s8 + $0x30] sm:$0xff]
        %v4037 = vld [vmem:[%s8 + $0x38] sm:$0xff]
        %v4038 = vld [vmem:[%s8 + $0x40] sm:$0xff]
        %v4039 = vld [vmem:[%s8 + $0x48] sm:$0xff]
        %v4040 = vld [vmem:[%s8 + $0x50] sm:$0xff]
        %v4041 = vld [vmem:[%s8 + $0x58] sm:$0xff]
        %v4042 = vld [vmem:[%s8 + $0x60] sm:$0xff]
        %v4043 = vld [vmem:[%s8 + $0x68] sm:$0xff]
        %v4044 = vld [vmem:[%s8 + $0x70] sm:$0xff]
        %v4045 = vld [vmem:[%s8 + $0x78] sm:$0xff]
        %v4046 = vld [vmem:[%s8 + $0x80] sm:$0xff]
        %v4047 = vld [vmem:[%s8 + $0x88] sm:$0xff]
        %v4048 = vld [vmem:[%s8 + $0x90] sm:$0xff]
        %v4049 = vld [vmem:[%s8 + $0x98] sm:$0xff]
        %v4050 = vld [vmem:[%s8 + $0xa0] sm:$0xff]
        %v4051 = vld [vmem:[%s8 + $0xa8] sm:$0xff]
        %v4052 = vld [vmem:[%s8 + $0xb0] sm:$0xff]
        %v4053 = vld [vmem:[%s8 + $0xb8] sm:$0xff]
        %v4054 = vld [vmem:[%s8 + $0xc0] sm:$0xff]
        %v4055 = vld [vmem:[%s8 + $0xc8] sm:$0xff]
        %v4056 = vld [vmem:[%s8 + $0xd0] sm:$0xff]
        %v4057 = vld [vmem:[%s8 + $0xd8] sm:$0xff]
        %v4058 = vld [vmem:[%s8 + $0xe0] sm:$0xff]
        %v4059 = vld [vmem:[%s8 + $0xe8] sm:$0xff]
        %v4060 = vld [vmem:[%s8 + $0xf0] sm:$0xff]
        %v4061 = vld [vmem:[%s8 + $0xf8] sm:$0xff]
        %v4062 = vld [vmem:[%s8 + $0x100] sm:$0xff]
        %v4063 = vld [vmem:[%s8 + $0x108] sm:$0xff]
        %v4064 = vld [vmem:[%s8 + $0x110] sm:$0xff]
        %v4065 = vld [vmem:[%s8 + $0x118] sm:$0xff]
        %v4066 = vld [vmem:[%s8 + $0x120] sm:$0xff]
        %v4067 = vld [vmem:[%s8 + $0x128] sm:$0xff]
        %v4068 = vld [vmem:[%s8 + $0x130] sm:$0xff]
        %v4069 = vld [vmem:[%s8 + $0x138] sm:$0xff]
        %v4070 = vld [vmem:[%s8 + $0x140] sm:$0xff]
        %v4071 = vld [vmem:[%s8 + $0x148] sm:$0xff]
        %v4072 = vld [vmem:[%s8 + $0x150] sm:$0xff]
        %v4073 = vld [vmem:[%s8 + $0x158] sm:$0xff]
        %v4074 = vld [vmem:[%s8 + $0x160] sm:$0xff]
        %v4075 = vld [vmem:[%s8 + $0x168] sm:$0xff]
        %v4076 = vld [vmem:[%s8 + $0x170] sm:$0xff]
        %v4077 = vld [vmem:[%s8 + $0x178] sm:$0xff]
        %s4078 = scalar_lea.vmem %s8, 384
        %v4079 = vld [vmem:[%s4078] sm:$0xff]
        %v4080 = vld [vmem:[%s4078 + $0x8] sm:$0xff]
        %v4081 = vld [vmem:[%s4078 + $0x10] sm:$0xff]
        %v4082 = vld [vmem:[%s4078 + $0x18] sm:$0xff]
        %v4083 = vld [vmem:[%s4078 + $0x20] sm:$0xff]
        %v4084 = vld [vmem:[%s4078 + $0x28] sm:$0xff]
        %v4085 = vld [vmem:[%s4078 + $0x30] sm:$0xff]
        %v4086 = vld [vmem:[%s4078 + $0x38] sm:$0xff]
        %v4087 = vld [vmem:[%s4078 + $0x40] sm:$0xff]
        %v4088 = vld [vmem:[%s4078 + $0x48] sm:$0xff]
        %v4089 = vld [vmem:[%s4078 + $0x50] sm:$0xff]
        %v4090 = vld [vmem:[%s4078 + $0x58] sm:$0xff]
        %v4091 = vld [vmem:[%s4078 + $0x60] sm:$0xff]
        %v4092 = vld [vmem:[%s4078 + $0x68] sm:$0xff]
        %v4093 = vld [vmem:[%s4078 + $0x70] sm:$0xff]
        %v4094 = vld [vmem:[%s4078 + $0x78] sm:$0xff]
        %v4095 = vld [vmem:[%s4078 + $0x80] sm:$0xff]
        %v4096 = vld [vmem:[%s4078 + $0x88] sm:$0xff]
        %v4097 = vld [vmem:[%s4078 + $0x90] sm:$0xff]
        %v4098 = vld [vmem:[%s4078 + $0x98] sm:$0xff]
        %v4099 = vld [vmem:[%s4078 + $0xa0] sm:$0xff]
        %v4100 = vld [vmem:[%s4078 + $0xa8] sm:$0xff]
        %v4101 = vld [vmem:[%s4078 + $0xb0] sm:$0xff]
        %v4102 = vld [vmem:[%s4078 + $0xb8] sm:$0xff]
        %v4103 = vld [vmem:[%s4078 + $0xc0] sm:$0xff]
        %v4104 = vld [vmem:[%s4078 + $0xc8] sm:$0xff]
        %v4105 = vld [vmem:[%s4078 + $0xd0] sm:$0xff]
        %v4106 = vld [vmem:[%s4078 + $0xd8] sm:$0xff]
        %v4107 = vld [vmem:[%s4078 + $0xe0] sm:$0xff]
        %v4108 = vld [vmem:[%s4078 + $0xe8] sm:$0xff]
        %v4109 = vld [vmem:[%s4078 + $0xf0] sm:$0xff]
        %v4110 = vld [vmem:[%s4078 + $0xf8] sm:$0xff]
        %v4111 = vld [vmem:[%s4078 + $0x100] sm:$0xff]
        %v4112 = vld [vmem:[%s4078 + $0x108] sm:$0xff]
        %v4113 = vld [vmem:[%s4078 + $0x110] sm:$0xff]
        %v4114 = vld [vmem:[%s4078 + $0x118] sm:$0xff]
        %v4115 = vld [vmem:[%s4078 + $0x120] sm:$0xff]
        %v4116 = vld [vmem:[%s4078 + $0x128] sm:$0xff]
        %v4117 = vld [vmem:[%s4078 + $0x130] sm:$0xff]
        %v4118 = vld [vmem:[%s4078 + $0x138] sm:$0xff]
        %v4119 = vld [vmem:[%s4078 + $0x140] sm:$0xff]
        %v4120 = vld [vmem:[%s4078 + $0x148] sm:$0xff]
        %v4121 = vld [vmem:[%s4078 + $0x150] sm:$0xff]
        %v4122 = vld [vmem:[%s4078 + $0x158] sm:$0xff]
        %v4123 = vld [vmem:[%s4078 + $0x160] sm:$0xff]
        %v4124 = vld [vmem:[%s4078 + $0x168] sm:$0xff]
        %v4125 = vld [vmem:[%s4078 + $0x170] sm:$0xff]
        %v4126 = vld [vmem:[%s4078 + $0x178] sm:$0xff]
        %4127 = vmatprep.subr.mxu0 %v4110
        %4128 = vmatpush1.msra.mxu0 %v4109
        %4129 = vmatprep.subr.mxu0 %v4108
        %4130 = vmatpush1.msra.mxu0 %v4107
        %4131 = vmatprep.subr.mxu0 %v4106
        %4132 = vmatpush1.msra.mxu0 %v4105
        %4133 = vmatprep.subr.mxu0 %v4104
        %4134 = vmatpush1.msra.mxu0 %v4103
        %4135 = vmatprep.subr.mxu0 %v4102
        %4136 = vmatpush1.msra.mxu0 %v4101
        %4137 = vmatprep.subr.mxu0 %v4100
        %4138 = vmatpush1.msra.mxu0 %v4099
        %4139 = vmatprep.subr.mxu0 %v4098
        %4140 = vmatpush1.msra.mxu0 %v4097
        %4141 = vmatprep.subr.mxu0 %v4096
        %4142 = vmatpush1.msra.mxu0 %v4095
        %4143 = vmatprep.subr.mxu0 %v4094
        %4144 = vmatpush1.msra.mxu0 %v4093
        %4145 = vmatprep.subr.mxu0 %v4092
        %4146 = vmatpush1.msra.mxu0 %v4091
        %4147 = vmatprep.subr.mxu0 %v4090
        %4148 = vmatpush1.msra.mxu0 %v4089
        %4149 = vmatprep.subr.mxu0 %v4088
        %4150 = vmatpush1.msra.mxu0 %v4087
        %4151 = vmatprep.subr.mxu0 %v4086
        %4152 = vmatpush1.msra.mxu0 %v4085
        %4153 = vmatprep.subr.mxu0 %v4084
        %4154 = vmatpush1.msra.mxu0 %v4083
        %4155 = vmatprep.subr.mxu0 %v4082
        %4156 = vmatpush1.msra.mxu0 %v4081
        %4157 = vmatprep.subr.mxu0 %v4080
        %4158 = vmatpush1.msra.mxu0 %v4079
        %4159 = vmatprep.subr.mxu0 0.0
        %4160 = vmatpush2.msra.mxu0 0.0
        %4161 = vmatprep.subr.mxu0 0.0
        %4162 = vmatpush2.msra.mxu0 0.0
        %4163 = vmatprep.subr.mxu0 0.0
        %4164 = vmatpush2.msra.mxu0 0.0
        %4165 = vmatprep.subr.mxu0 0.0
        %4166 = vmatpush2.msra.mxu0 0.0
        %4167 = vmatprep.subr.mxu0 0.0
        %4168 = vmatpush2.msra.mxu0 0.0
        %4169 = vmatprep.subr.mxu0 0.0
        %4170 = vmatpush2.msra.mxu0 0.0
        %4171 = vmatprep.subr.mxu0 0.0
        %4172 = vmatpush2.msra.mxu0 0.0
        %4173 = vmatprep.subr.mxu0 0.0
        %4174 = vmatpush2.msra.mxu0 0.0
        %4175 = vmatprep.subr.mxu0 %v4126
        %4176 = vmatpush2.msra.mxu0 %v4125
        %4177 = vmatprep.subr.mxu0 %v4124
        %4178 = vmatpush2.msra.mxu0 %v4123
        %4179 = vmatprep.subr.mxu0 %v4122
        %4180 = vmatpush2.msra.mxu0 %v4121
        %4181 = vmatprep.subr.mxu0 %v4120
        %4182 = vmatpush2.msra.mxu0 %v4119
        %4183 = vmatprep.subr.mxu0 %v4118
        %4184 = vmatpush2.msra.mxu0 %v4117
        %4185 = vmatprep.subr.mxu0 %v4116
        %4186 = vmatpush2.msra.mxu0 %v4115
        %4187 = vmatprep.subr.mxu0 %v4114
        %4188 = vmatpush2.msra.mxu0 %v4113
        %4189 = vmatprep.subr.mxu0 %v4112
        %4190 = vmatpush2.msra.mxu0 %v4111
        %4191 = vmatprep.mubr.f32.mxu0 %v3667
        %4192 = vmatmul.mubr.f32.gmra.mxu0 %v3660
        %v4193 = vpop.f32.mrf.mxu0
        %v4194 = vadd.f32 0.0, %v4193
        %v4195 = vpop.f32.mrf.mxu0
        %v4196 = vadd.f32 0.0, %v4195
        %4197 = vmatprep.mubr.f32.mxu0 %v3669
        %4198 = vmatmul.mubr.f32.gmra.mxu0 %v3659
        %v4199 = vpop.f32.mrf.mxu0
        %v4200 = vadd.f32 0.0, %v4199
        %v4201 = vpop.f32.mrf.mxu0
        %v4202 = vadd.f32 0.0, %v4201
        %4203 = vdwg.mxu0
        %4204 = vmatprep.subr.mxu0 %v4061
        %4205 = vmatpush1.msra.mxu0 %v4060
        %4206 = vmatprep.subr.mxu0 %v4059
        %4207 = vmatpush1.msra.mxu0 %v4058
        %4208 = vmatprep.subr.mxu0 %v4057
        %4209 = vmatpush1.msra.mxu0 %v4056
        %4210 = vmatprep.subr.mxu0 %v4055
        %4211 = vmatpush1.msra.mxu0 %v4054
        %4212 = vmatprep.subr.mxu0 %v4053
        %4213 = vmatpush1.msra.mxu0 %v4052
        %4214 = vmatprep.subr.mxu0 %v4051
        %4215 = vmatpush1.msra.mxu0 %v4050
        %4216 = vmatprep.subr.mxu0 %v4049
        %4217 = vmatpush1.msra.mxu0 %v4048
        %4218 = vmatprep.subr.mxu0 %v4047
        %4219 = vmatpush1.msra.mxu0 %v4046
        %4220 = vmatprep.subr.mxu0 %v4045
        %4221 = vmatpush1.msra.mxu0 %v4044
        %4222 = vmatprep.subr.mxu0 %v4043
        %4223 = vmatpush1.msra.mxu0 %v4042
        %4224 = vmatprep.subr.mxu0 %v4041
        %4225 = vmatpush1.msra.mxu0 %v4040
        %4226 = vmatprep.subr.mxu0 %v4039
        %4227 = vmatpush1.msra.mxu0 %v4038
        %4228 = vmatprep.subr.mxu0 %v4037
        %4229 = vmatpush1.msra.mxu0 %v4036
        %4230 = vmatprep.subr.mxu0 %v4035
        %4231 = vmatpush1.msra.mxu0 %v4034
        %4232 = vmatprep.subr.mxu0 %v4033
        %4233 = vmatpush1.msra.mxu0 %v4032
        %4234 = vmatprep.subr.mxu0 %v4031
        %4235 = vmatpush1.msra.mxu0 %v4030
        %4236 = vmatprep.subr.mxu0 0.0
        %4237 = vmatpush2.msra.mxu0 0.0
        %4238 = vmatprep.subr.mxu0 0.0
        %4239 = vmatpush2.msra.mxu0 0.0
        %4240 = vmatprep.subr.mxu0 0.0
        %4241 = vmatpush2.msra.mxu0 0.0
        %4242 = vmatprep.subr.mxu0 0.0
        %4243 = vmatpush2.msra.mxu0 0.0
        %4244 = vmatprep.subr.mxu0 0.0
        %4245 = vmatpush2.msra.mxu0 0.0
        %4246 = vmatprep.subr.mxu0 0.0
        %4247 = vmatpush2.msra.mxu0 0.0
        %4248 = vmatprep.subr.mxu0 0.0
        %4249 = vmatpush2.msra.mxu0 0.0
        %4250 = vmatprep.subr.mxu0 0.0
        %4251 = vmatpush2.msra.mxu0 0.0
        %4252 = vmatprep.subr.mxu0 %v4077
        %4253 = vmatpush2.msra.mxu0 %v4076
        %4254 = vmatprep.subr.mxu0 %v4075
        %4255 = vmatpush2.msra.mxu0 %v4074
        %4256 = vmatprep.subr.mxu0 %v4073
        %4257 = vmatpush2.msra.mxu0 %v4072
        %4258 = vmatprep.subr.mxu0 %v4071
        %4259 = vmatpush2.msra.mxu0 %v4070
        %4260 = vmatprep.subr.mxu0 %v4069
        %4261 = vmatpush2.msra.mxu0 %v4068
        %4262 = vmatprep.subr.mxu0 %v4067
        %4263 = vmatpush2.msra.mxu0 %v4066
        %4264 = vmatprep.subr.mxu0 %v4065
        %4265 = vmatpush2.msra.mxu0 %v4064
        %4266 = vmatprep.subr.mxu0 %v4063
        %4267 = vmatpush2.msra.mxu0 %v4062
        %4268 = vmatprep.mubr.f32.mxu0 %v3749
        %4269 = vmatmul.mubr.f32.gmra.mxu0 %v3549
        %v4270 = vpop.f32.mrf.mxu0
        %v4271 = vadd.f32 %v4194, %v4270
        %v4272 = vpop.f32.mrf.mxu0
        %v4273 = vadd.f32 %v4196, %v4272
        %4274 = vmatprep.mubr.f32.mxu0 %v3752
        %4275 = vmatmul.mubr.f32.gmra.mxu0 %v3551
        %v4276 = vpop.f32.mrf.mxu0
        %v4277 = vadd.f32 %v4200, %v4276
        %v4278 = vpop.f32.mrf.mxu0
        %v4279 = vadd.f32 %v4202, %v4278
        %4280 = vdwg.mxu0
        %s4281 = scalar_lea.vmem %s8, 768
        %v4282 = vld [vmem:[%s4281] sm:$0xff]
        %v4283 = vld [vmem:[%s4281 + $0x8] sm:$0xff]
        %v4284 = vld [vmem:[%s4281 + $0x10] sm:$0xff]
        %v4285 = vld [vmem:[%s4281 + $0x18] sm:$0xff]
        %v4286 = vld [vmem:[%s4281 + $0x20] sm:$0xff]
        %v4287 = vld [vmem:[%s4281 + $0x28] sm:$0xff]
        %v4288 = vld [vmem:[%s4281 + $0x30] sm:$0xff]
        %v4289 = vld [vmem:[%s4281 + $0x38] sm:$0xff]
        %v4290 = vld [vmem:[%s4281 + $0x40] sm:$0xff]
        %v4291 = vld [vmem:[%s4281 + $0x48] sm:$0xff]
        %v4292 = vld [vmem:[%s4281 + $0x50] sm:$0xff]
        %v4293 = vld [vmem:[%s4281 + $0x58] sm:$0xff]
        %v4294 = vld [vmem:[%s4281 + $0x60] sm:$0xff]
        %v4295 = vld [vmem:[%s4281 + $0x68] sm:$0xff]
        %v4296 = vld [vmem:[%s4281 + $0x70] sm:$0xff]
        %v4297 = vld [vmem:[%s4281 + $0x78] sm:$0xff]
        %v4298 = vld [vmem:[%s4281 + $0x80] sm:$0xff]
        %v4299 = vld [vmem:[%s4281 + $0x88] sm:$0xff]
        %v4300 = vld [vmem:[%s4281 + $0x90] sm:$0xff]
        %v4301 = vld [vmem:[%s4281 + $0x98] sm:$0xff]
        %v4302 = vld [vmem:[%s4281 + $0xa0] sm:$0xff]
        %v4303 = vld [vmem:[%s4281 + $0xa8] sm:$0xff]
        %v4304 = vld [vmem:[%s4281 + $0xb0] sm:$0xff]
        %v4305 = vld [vmem:[%s4281 + $0xb8] sm:$0xff]
        %v4306 = vld [vmem:[%s4281 + $0xc0] sm:$0xff]
        %v4307 = vld [vmem:[%s4281 + $0xc8] sm:$0xff]
        %v4308 = vld [vmem:[%s4281 + $0xd0] sm:$0xff]
        %v4309 = vld [vmem:[%s4281 + $0xd8] sm:$0xff]
        %v4310 = vld [vmem:[%s4281 + $0xe0] sm:$0xff]
        %v4311 = vld [vmem:[%s4281 + $0xe8] sm:$0xff]
        %v4312 = vld [vmem:[%s4281 + $0xf0] sm:$0xff]
        %v4313 = vld [vmem:[%s4281 + $0xf8] sm:$0xff]
        %v4314 = vld [vmem:[%s4281 + $0x100] sm:$0xff]
        %v4315 = vld [vmem:[%s4281 + $0x108] sm:$0xff]
        %v4316 = vld [vmem:[%s4281 + $0x110] sm:$0xff]
        %v4317 = vld [vmem:[%s4281 + $0x118] sm:$0xff]
        %v4318 = vld [vmem:[%s4281 + $0x120] sm:$0xff]
        %v4319 = vld [vmem:[%s4281 + $0x128] sm:$0xff]
        %v4320 = vld [vmem:[%s4281 + $0x130] sm:$0xff]
        %v4321 = vld [vmem:[%s4281 + $0x138] sm:$0xff]
        %v4322 = vld [vmem:[%s4281 + $0x140] sm:$0xff]
        %v4323 = vld [vmem:[%s4281 + $0x148] sm:$0xff]
        %v4324 = vld [vmem:[%s4281 + $0x150] sm:$0xff]
        %v4325 = vld [vmem:[%s4281 + $0x158] sm:$0xff]
        %v4326 = vld [vmem:[%s4281 + $0x160] sm:$0xff]
        %v4327 = vld [vmem:[%s4281 + $0x168] sm:$0xff]
        %v4328 = vld [vmem:[%s4281 + $0x170] sm:$0xff]
        %v4329 = vld [vmem:[%s4281 + $0x178] sm:$0xff]
        %4330 = vmatprep.subr.mxu0 %v4313
        %4331 = vmatpush1.msra.mxu0 %v4312
        %4332 = vmatprep.subr.mxu0 %v4311
        %4333 = vmatpush1.msra.mxu0 %v4310
        %4334 = vmatprep.subr.mxu0 %v4309
        %4335 = vmatpush1.msra.mxu0 %v4308
        %4336 = vmatprep.subr.mxu0 %v4307
        %4337 = vmatpush1.msra.mxu0 %v4306
        %4338 = vmatprep.subr.mxu0 %v4305
        %4339 = vmatpush1.msra.mxu0 %v4304
        %4340 = vmatprep.subr.mxu0 %v4303
        %4341 = vmatpush1.msra.mxu0 %v4302
        %4342 = vmatprep.subr.mxu0 %v4301
        %4343 = vmatpush1.msra.mxu0 %v4300
        %4344 = vmatprep.subr.mxu0 %v4299
        %4345 = vmatpush1.msra.mxu0 %v4298
        %4346 = vmatprep.subr.mxu0 %v4297
        %4347 = vmatpush1.msra.mxu0 %v4296
        %4348 = vmatprep.subr.mxu0 %v4295
        %4349 = vmatpush1.msra.mxu0 %v4294
        %4350 = vmatprep.subr.mxu0 %v4293
        %4351 = vmatpush1.msra.mxu0 %v4292
        %4352 = vmatprep.subr.mxu0 %v4291
        %4353 = vmatpush1.msra.mxu0 %v4290
        %4354 = vmatprep.subr.mxu0 %v4289
        %4355 = vmatpush1.msra.mxu0 %v4288
        %4356 = vmatprep.subr.mxu0 %v4287
        %4357 = vmatpush1.msra.mxu0 %v4286
        %4358 = vmatprep.subr.mxu0 %v4285
        %4359 = vmatpush1.msra.mxu0 %v4284
        %4360 = vmatprep.subr.mxu0 %v4283
        %4361 = vmatpush1.msra.mxu0 %v4282
        %4362 = vmatprep.subr.mxu0 0.0
        %4363 = vmatpush2.msra.mxu0 0.0
        %4364 = vmatprep.subr.mxu0 0.0
        %4365 = vmatpush2.msra.mxu0 0.0
        %4366 = vmatprep.subr.mxu0 0.0
        %4367 = vmatpush2.msra.mxu0 0.0
        %4368 = vmatprep.subr.mxu0 0.0
        %4369 = vmatpush2.msra.mxu0 0.0
        %4370 = vmatprep.subr.mxu0 0.0
        %4371 = vmatpush2.msra.mxu0 0.0
        %4372 = vmatprep.subr.mxu0 0.0
        %4373 = vmatpush2.msra.mxu0 0.0
        %4374 = vmatprep.subr.mxu0 0.0
        %4375 = vmatpush2.msra.mxu0 0.0
        %4376 = vmatprep.subr.mxu0 0.0
        %4377 = vmatpush2.msra.mxu0 0.0
        %4378 = vmatprep.subr.mxu0 %v4329
        %4379 = vmatpush2.msra.mxu0 %v4328
        %4380 = vmatprep.subr.mxu0 %v4327
        %4381 = vmatpush2.msra.mxu0 %v4326
        %4382 = vmatprep.subr.mxu0 %v4325
        %4383 = vmatpush2.msra.mxu0 %v4324
        %4384 = vmatprep.subr.mxu0 %v4323
        %4385 = vmatpush2.msra.mxu0 %v4322
        %4386 = vmatprep.subr.mxu0 %v4321
        %4387 = vmatpush2.msra.mxu0 %v4320
        %4388 = vmatprep.subr.mxu0 %v4319
        %4389 = vmatpush2.msra.mxu0 %v4318
        %4390 = vmatprep.subr.mxu0 %v4317
        %4391 = vmatpush2.msra.mxu0 %v4316
        %4392 = vmatprep.subr.mxu0 %v4315
        %4393 = vmatpush2.msra.mxu0 %v4314
        %4394 = vmatprep.mubr.f32.mxu0 %v3896
        %4395 = vmatmul.mubr.f32.gmra.mxu0 %v3890
        %v4396 = vpop.f32.mrf.mxu0
        %v4397 = vadd.f32 0.0, %v4396
        %v4398 = vpop.f32.mrf.mxu0
        %v4399 = vadd.f32 0.0, %v4398
        %4400 = vmatprep.mubr.f32.mxu0 %v3898
        %4401 = vmatmul.mubr.f32.gmra.mxu0 %v3889
        %v4402 = vpop.f32.mrf.mxu0
        %v4403 = vadd.f32 0.0, %v4402
        %v4404 = vpop.f32.mrf.mxu0
        %v4405 = vadd.f32 0.0, %v4404
        %4406 = vdwg.mxu0
        %v4407 = vadd.f32 %v4271, %v4397
        %v4408 = vadd.f32 %v4273, %v4399
        %v4409 = vadd.f32 %v4277, %v4403
        %v4410 = vadd.f32 %v4279, %v4405
        %v4411 = vadd.f32 %v4407, %v3985
        %v4412 = vadd.f32 %v4408, %v3989
        %v4413 = vadd.f32 %v4409, %v3985
        %v4414 = vadd.f32 %v4410, %v3989
        %v4415 = vmax.f32 %v4411, 0.0
        %v4416 = vmax.f32 %v4412, 0.0
        %v4417 = vmax.f32 %v4413, 0.0
        %v4418 = vmax.f32 %v4414, 0.0
        %v4419 = vmul.f32 %v4415, %v4004
        %v4420 = vmul.f32 %v4416, %v4008
        %v4421 = vmul.f32 %v4417, %v4004
        %v4422 = vmul.f32 %v4418, %v4008
        %v4423 = vadd.f32 %v4419, %v4019
        %v4424 = vadd.f32 %v4420, %v4023
        %v4425 = vadd.f32 %v4421, %v4019
        %v4426 = vadd.f32 %v4422, %v4023
        %v4427 = vmax.f32 %v4026, %v4423
        %v4428 = vmax.f32 %v4027, %v4424
        %v4429 = vmax.f32 %v4028, %v4425
        %v4430 = vmax.f32 %v4029, %v4426
        %v4435 = vcombine.low %v4427, %v4428
        %v4436 = vcombine.high %v4427, %v4428
        %v4438 = vunpack.c.l.s4 1983009808
        %v4439 = vunpack.c.0.s8 %v4438
        %v4440 = vlaneseq
        %v4441 = vshrl.u32 %v4440, 7
        %v4442 = vsub.s32 %v4439, %v4441
        %v4443 = vrot.slane %v4435, %v4442
        %v4445 = vunpack.c.l.s4 1983009808
        %v4446 = vunpack.c.0.s8 %v4445
        %v4447 = vlaneseq
        %v4448 = vshrl.u32 %v4447, 7
        %v4449 = vsub.s32 %v4446, %v4448
        %v4450 = vrot.slane %v4436, %v4449
        %v4451 = vcombine.high %v4443, %v4443
        %v4452 = vcombine.high %v4450, %v4450
        %v4453 = vcombine.low %v4429, %v4430
        %v4455 = vunpack.c.l.s4 1983009808
        %v4456 = vunpack.c.0.s8 %v4455
        %v4457 = vlaneseq
        %v4458 = vshrl.u32 %v4457, 7
        %v4459 = vsub.s32 %v4456, %v4458
        %v4460 = vrot.slane %v4453, %v4459
        %v4462 = vunpack.c.l.s4 1983009808
        %v4463 = vunpack.c.0.s8 %v4462
        %v4464 = vlaneseq
        %v4465 = vshrl.u32 %v4464, 7
        %v4466 = vsub.s32 %v4463, %v4465
        %v4467 = vrot.slane %v4443, %v4466
        %v4468 = vcombine.high %v4467, %v4467
        %v4470 = vunpack.c.l.s4 1983009808
        %v4471 = vunpack.c.0.s8 %v4470
        %v4472 = vlaneseq
        %v4473 = vshrl.u32 %v4472, 7
        %v4474 = vsub.s32 %v4471, %v4473
        %v4475 = vrot.slane %v4451, %v4474
        %v4476 = vcombine.high %v4475, %v4475
        %v4478 = vunpack.c.l.s4 1983009808
        %v4479 = vunpack.c.0.s8 %v4478
        %v4480 = vlaneseq
        %v4481 = vshrl.u32 %v4480, 7
        %v4482 = vsub.s32 %v4479, %v4481
        %v4483 = vrot.slane %v4450, %v4482
        %v4484 = vcombine.high %v4483, %v4483
        %v4486 = vunpack.c.l.s4 1983009808
        %v4487 = vunpack.c.0.s8 %v4486
        %v4488 = vlaneseq
        %v4489 = vshrl.u32 %v4488, 7
        %v4490 = vsub.s32 %v4487, %v4489
        %v4491 = vrot.slane %v4452, %v4490
        %v4492 = vcombine.high %v4491, %v4491
        %v4494 = vunpack.c.l.s4 1983009808
        %v4495 = vunpack.c.0.s8 %v4494
        %v4496 = vlaneseq
        %v4497 = vshrl.u32 %v4496, 7
        %v4498 = vsub.s32 %v4495, %v4497
        %v4499 = vrot.slane %v4460, %v4498
        %v4500 = vcombine.high %v4499, %v4499
        %v4511 = vsel %vm1871, %v4467, -inf
        %v4512 = vrot.slane %v4511, 4
        %v4513 = vmax.f32 %v4511, %v4512
        %v4514 = vrot.slane %v4513, 2
        %v4515 = vmax.f32 %v4513, %v4514
        %v4516 = vrot.slane %v4515, 1
        %v4517 = vmax.f32 %v4515, %v4516
        %vm4518 = vcmask 254976
        %v4519 = vsel %vm4518, %v4468, -inf
        %v4520 = vrot.slane %v4519, 4
        %v4521 = vmax.f32 %v4519, %v4520
        %v4522 = vrot.slane %v4521, 2
        %v4523 = vmax.f32 %v4521, %v4522
        %v4524 = vrot.slane %v4523, 1
        %v4525 = vmax.f32 %v4523, %v4524
        %v4526 = vsel %vm1871, %v4475, -inf
        %v4527 = vrot.slane %v4526, 4
        %v4528 = vmax.f32 %v4526, %v4527
        %v4529 = vrot.slane %v4528, 2
        %v4530 = vmax.f32 %v4528, %v4529
        %v4531 = vrot.slane %v4530, 1
        %v4532 = vmax.f32 %v4530, %v4531
        %v4533 = vsel %vm4518, %v4476, -inf
        %v4534 = vrot.slane %v4533, 4
        %v4535 = vmax.f32 %v4533, %v4534
        %v4536 = vrot.slane %v4535, 2
        %v4537 = vmax.f32 %v4535, %v4536
        %v4538 = vrot.slane %v4537, 1
        %v4539 = vmax.f32 %v4537, %v4538
        %v4540 = vsel %vm1871, %v4483, -inf
        %v4541 = vrot.slane %v4540, 4
        %v4542 = vmax.f32 %v4540, %v4541
        %v4543 = vrot.slane %v4542, 2
        %v4544 = vmax.f32 %v4542, %v4543
        %v4545 = vrot.slane %v4544, 1
        %v4546 = vmax.f32 %v4544, %v4545
        %v4547 = vsel %vm4518, %v4484, -inf
        %v4548 = vrot.slane %v4547, 4
        %v4549 = vmax.f32 %v4547, %v4548
        %v4550 = vrot.slane %v4549, 2
        %v4551 = vmax.f32 %v4549, %v4550
        %v4552 = vrot.slane %v4551, 1
        %v4553 = vmax.f32 %v4551, %v4552
        %v4554 = vsel %vm1871, %v4491, -inf
        %v4555 = vrot.slane %v4554, 4
        %v4556 = vmax.f32 %v4554, %v4555
        %v4557 = vrot.slane %v4556, 2
        %v4558 = vmax.f32 %v4556, %v4557
        %v4559 = vrot.slane %v4558, 1
        %v4560 = vmax.f32 %v4558, %v4559
        %v4561 = vsel %vm4518, %v4492, -inf
        %v4562 = vrot.slane %v4561, 4
        %v4563 = vmax.f32 %v4561, %v4562
        %v4564 = vrot.slane %v4563, 2
        %v4565 = vmax.f32 %v4563, %v4564
        %v4566 = vrot.slane %v4565, 1
        %v4567 = vmax.f32 %v4565, %v4566
        %v4568 = vsel %vm1871, %v4499, -inf
        %v4569 = vrot.slane %v4568, 4
        %v4570 = vmax.f32 %v4568, %v4569
        %v4571 = vrot.slane %v4570, 2
        %v4572 = vmax.f32 %v4570, %v4571
        %v4573 = vrot.slane %v4572, 1
        %v4574 = vmax.f32 %v4572, %v4573
        %v4575 = vsel %vm4518, %v4500, -inf
        %v4576 = vrot.slane %v4575, 4
        %v4577 = vmax.f32 %v4575, %v4576
        %v4578 = vrot.slane %v4577, 2
        %v4579 = vmax.f32 %v4577, %v4578
        %v4580 = vrot.slane %v4579, 1
        %v4581 = vmax.f32 %v4579, %v4580
        %v4592 = vsel %vm2211, %v4532, %v4517
        %v4593 = vsel %vm2193, %v4546, %v4592
        %v4594 = vsel %vm2195, %v4560, %v4593
        %v4595 = vsel %vm2197, %v4574, %v4594
        %v4596 = vsel %vm2211, %v4539, %v4525
        %v4597 = vsel %vm2193, %v4553, %v4596
        %v4598 = vsel %vm2195, %v4567, %v4597
        %v4599 = vsel %vm2197, %v4581, %v4598
        %4602 = vst [vmem:[%s558] sm:$0x1f] %v4595
        %vm4603 = vcmask 258048
        %4604 = vst.msk [vmem:[%s558 + $0x8] sm:$0x1f] %vm4603, %v4599
        %v4605 = vld [vmem:[%s10] sm:$0xff]
        %v4606 = vld [vmem:[%s10 + $0x8] sm:$0xff]
        %v4607 = vld [vmem:[%s10 + $0x10] sm:$0xff]
        %v4608 = vld [vmem:[%s10 + $0x18] sm:$0xff]
        %v4609 = vld [vmem:[%s10 + $0x20] sm:$0xff]
        %v4610 = vld [vmem:[%s10 + $0x28] sm:$0xff]
        %v4611 = vld [vmem:[%s10 + $0x30] sm:$0xff]
        %v4612 = vld [vmem:[%s10 + $0x38] sm:$0xff]
        %v4613 = vld [vmem:[%s10 + $0x40] sm:$0xff]
        %v4614 = vld [vmem:[%s10 + $0x48] sm:$0xff]
        %v4615 = vld [vmem:[%s10 + $0x50] sm:$0xff]
        %v4616 = vld [vmem:[%s10 + $0x58] sm:$0xff]
        %v4617 = vld [vmem:[%s10 + $0x60] sm:$0xff]
        %v4618 = vld [vmem:[%s10 + $0x68] sm:$0xff]
        %v4619 = vld [vmem:[%s10 + $0x70] sm:$0xff]
        %v4620 = vld [vmem:[%s10 + $0x78] sm:$0xff]
        %v4621 = vld [vmem:[%s10 + $0x80] sm:$0xff]
        %v4622 = vld [vmem:[%s10 + $0x88] sm:$0xff]
        %v4623 = vld [vmem:[%s10 + $0x90] sm:$0xff]
        %v4624 = vld [vmem:[%s10 + $0x98] sm:$0xff]
        %s4625 = scalar_lea.vmem %s10, 160
        %v4626 = vld [vmem:[%s4625] sm:$0xff]
        %v4627 = vld [vmem:[%s4625 + $0x8] sm:$0xff]
        %v4628 = vld [vmem:[%s4625 + $0x10] sm:$0xff]
        %v4629 = vld [vmem:[%s4625 + $0x18] sm:$0xff]
        %v4630 = vld [vmem:[%s4625 + $0x20] sm:$0xff]
        %v4631 = vld [vmem:[%s4625 + $0x28] sm:$0xff]
        %v4632 = vld [vmem:[%s4625 + $0x30] sm:$0xff]
        %v4633 = vld [vmem:[%s4625 + $0x38] sm:$0xff]
        %v4634 = vld [vmem:[%s4625 + $0x40] sm:$0xff]
        %v4635 = vld [vmem:[%s4625 + $0x48] sm:$0xff]
        %v4636 = vld [vmem:[%s4625 + $0x50] sm:$0xff]
        %v4637 = vld [vmem:[%s4625 + $0x58] sm:$0xff]
        %v4638 = vld [vmem:[%s4625 + $0x60] sm:$0xff]
        %v4639 = vld [vmem:[%s4625 + $0x68] sm:$0xff]
        %v4640 = vld [vmem:[%s4625 + $0x70] sm:$0xff]
        %v4641 = vld [vmem:[%s4625 + $0x78] sm:$0xff]
        %v4642 = vld [vmem:[%s4625 + $0x80] sm:$0xff]
        %v4643 = vld [vmem:[%s4625 + $0x88] sm:$0xff]
        %v4644 = vld [vmem:[%s4625 + $0x90] sm:$0xff]
        %v4645 = vld [vmem:[%s4625 + $0x98] sm:$0xff]
        %vm4646 = vcmask 261120
        %v4647 = vsel %vm4646, %v4539, 0
        %4649 = vmatprep.subr.mxu0 0.0
        %4650 = vmatpush1.msra.mxu0 %v4641
        %4651 = vmatprep.subr.mxu0 0.0
        %4652 = vmatpush1.msra.mxu0 %v4640
        %4653 = vmatprep.subr.mxu0 0.0
        %4654 = vmatpush1.msra.mxu0 %v4639
        %4655 = vmatprep.subr.mxu0 0.0
        %4656 = vmatpush1.msra.mxu0 %v4638
        %4657 = vmatprep.subr.mxu0 0.0
        %4658 = vmatpush1.msra.mxu0 %v4637
        %4659 = vmatprep.subr.mxu0 0.0
        %4660 = vmatpush1.msra.mxu0 %v4636
        %4661 = vmatprep.subr.mxu0 0.0
        %4662 = vmatpush1.msra.mxu0 %v4635
        %4663 = vmatprep.subr.mxu0 0.0
        %4664 = vmatpush1.msra.mxu0 %v4634
        %4665 = vmatprep.subr.mxu0 0.0
        %4666 = vmatpush1.msra.mxu0 %v4633
        %4667 = vmatprep.subr.mxu0 0.0
        %4668 = vmatpush1.msra.mxu0 %v4632
        %4669 = vmatprep.subr.mxu0 0.0
        %4670 = vmatpush1.msra.mxu0 %v4631
        %4671 = vmatprep.subr.mxu0 0.0
        %4672 = vmatpush1.msra.mxu0 %v4630
        %4673 = vmatprep.subr.mxu0 0.0
        %4674 = vmatpush1.msra.mxu0 %v4629
        %4675 = vmatprep.subr.mxu0 0.0
        %4676 = vmatpush1.msra.mxu0 %v4628
        %4677 = vmatprep.subr.mxu0 0.0
        %4678 = vmatpush1.msra.mxu0 %v4627
        %4679 = vmatprep.subr.mxu0 0.0
        %4680 = vmatpush1.msra.mxu0 %v4626
        %4681 = vmatprep.subr.mxu0 0.0
        %4682 = vmatpush2.msra.mxu0 0.0
        %4683 = vmatprep.subr.mxu0 0.0
        %4684 = vmatpush2.msra.mxu0 0.0
        %4685 = vmatprep.subr.mxu0 0.0
        %4686 = vmatpush2.msra.mxu0 0.0
        %4687 = vmatprep.subr.mxu0 0.0
        %4688 = vmatpush2.msra.mxu0 0.0
        %4689 = vmatprep.subr.mxu0 0.0
        %4690 = vmatpush2.msra.mxu0 0.0
        %4691 = vmatprep.subr.mxu0 0.0
        %4692 = vmatpush2.msra.mxu0 0.0
        %4693 = vmatprep.subr.mxu0 0.0
        %4694 = vmatpush2.msra.mxu0 0.0
        %4695 = vmatprep.subr.mxu0 0.0
        %4696 = vmatpush2.msra.mxu0 0.0
        %4697 = vmatprep.subr.mxu0 0.0
        %4698 = vmatpush2.msra.mxu0 0.0
        %4699 = vmatprep.subr.mxu0 0.0
        %4700 = vmatpush2.msra.mxu0 0.0
        %4701 = vmatprep.subr.mxu0 0.0
        %4702 = vmatpush2.msra.mxu0 0.0
        %4703 = vmatprep.subr.mxu0 0.0
        %4704 = vmatpush2.msra.mxu0 0.0
        %4705 = vmatprep.subr.mxu0 0.0
        %4706 = vmatpush2.msra.mxu0 %v4645
        %4707 = vmatprep.subr.mxu0 0.0
        %4708 = vmatpush2.msra.mxu0 %v4644
        %4709 = vmatprep.subr.mxu0 0.0
        %4710 = vmatpush2.msra.mxu0 %v4643
        %4711 = vmatprep.subr.mxu0 0.0
        %4712 = vmatpush2.msra.mxu0 %v4642
        %4713 = vmatprep.mubr.f32.mxu0 %v4647
        %4714 = vmatmul.mubr.f32.gmra.mxu0 %v4532
        %v4715 = vpop.f32.mrf.mxu0
        %v4716 = vadd.f32 0.0, %v4715
        %v4717 = vpop.f32.mrf.mxu0
        %4718 = vdwg.mxu0
        %v4719 = vsel %vm4646, %v4525, 0
        %4721 = vmatprep.subr.mxu0 0.0
        %4722 = vmatpush1.msra.mxu0 %v4620
        %4723 = vmatprep.subr.mxu0 0.0
        %4724 = vmatpush1.msra.mxu0 %v4619
        %4725 = vmatprep.subr.mxu0 0.0
        %4726 = vmatpush1.msra.mxu0 %v4618
        %4727 = vmatprep.subr.mxu0 0.0
        %4728 = vmatpush1.msra.mxu0 %v4617
        %4729 = vmatprep.subr.mxu0 0.0
        %4730 = vmatpush1.msra.mxu0 %v4616
        %4731 = vmatprep.subr.mxu0 0.0
        %4732 = vmatpush1.msra.mxu0 %v4615
        %4733 = vmatprep.subr.mxu0 0.0
        %4734 = vmatpush1.msra.mxu0 %v4614
        %4735 = vmatprep.subr.mxu0 0.0
        %4736 = vmatpush1.msra.mxu0 %v4613
        %4737 = vmatprep.subr.mxu0 0.0
        %4738 = vmatpush1.msra.mxu0 %v4612
        %4739 = vmatprep.subr.mxu0 0.0
        %4740 = vmatpush1.msra.mxu0 %v4611
        %4741 = vmatprep.subr.mxu0 0.0
        %4742 = vmatpush1.msra.mxu0 %v4610
        %4743 = vmatprep.subr.mxu0 0.0
        %4744 = vmatpush1.msra.mxu0 %v4609
        %4745 = vmatprep.subr.mxu0 0.0
        %4746 = vmatpush1.msra.mxu0 %v4608
        %4747 = vmatprep.subr.mxu0 0.0
        %4748 = vmatpush1.msra.mxu0 %v4607
        %4749 = vmatprep.subr.mxu0 0.0
        %4750 = vmatpush1.msra.mxu0 %v4606
        %4751 = vmatprep.subr.mxu0 0.0
        %4752 = vmatpush1.msra.mxu0 %v4605
        %4753 = vmatprep.subr.mxu0 0.0
        %4754 = vmatpush2.msra.mxu0 0.0
        %4755 = vmatprep.subr.mxu0 0.0
        %4756 = vmatpush2.msra.mxu0 0.0
        %4757 = vmatprep.subr.mxu0 0.0
        %4758 = vmatpush2.msra.mxu0 0.0
        %4759 = vmatprep.subr.mxu0 0.0
        %4760 = vmatpush2.msra.mxu0 0.0
        %4761 = vmatprep.subr.mxu0 0.0
        %4762 = vmatpush2.msra.mxu0 0.0
        %4763 = vmatprep.subr.mxu0 0.0
        %4764 = vmatpush2.msra.mxu0 0.0
        %4765 = vmatprep.subr.mxu0 0.0
        %4766 = vmatpush2.msra.mxu0 0.0
        %4767 = vmatprep.subr.mxu0 0.0
        %4768 = vmatpush2.msra.mxu0 0.0
        %4769 = vmatprep.subr.mxu0 0.0
        %4770 = vmatpush2.msra.mxu0 0.0
        %4771 = vmatprep.subr.mxu0 0.0
        %4772 = vmatpush2.msra.mxu0 0.0
        %4773 = vmatprep.subr.mxu0 0.0
        %4774 = vmatpush2.msra.mxu0 0.0
        %4775 = vmatprep.subr.mxu0 0.0
        %4776 = vmatpush2.msra.mxu0 0.0
        %4777 = vmatprep.subr.mxu0 0.0
        %4778 = vmatpush2.msra.mxu0 %v4624
        %4779 = vmatprep.subr.mxu0 0.0
        %4780 = vmatpush2.msra.mxu0 %v4623
        %4781 = vmatprep.subr.mxu0 0.0
        %4782 = vmatpush2.msra.mxu0 %v4622
        %4783 = vmatprep.subr.mxu0 0.0
        %4784 = vmatpush2.msra.mxu0 %v4621
        %4785 = vmatprep.mubr.f32.mxu0 %v4719
        %4786 = vmatmul.mubr.f32.gmra.mxu0 %v4517
        %v4787 = vpop.f32.mrf.mxu0
        %v4788 = vadd.f32 %v4716, %v4787
        %v4789 = vpop.f32.mrf.mxu0
        %4790 = vdwg.mxu0
        %s4791 = scalar_lea.vmem %s10, 320
        %v4792 = vld [vmem:[%s4791] sm:$0xff]
        %v4793 = vld [vmem:[%s4791 + $0x8] sm:$0xff]
        %v4794 = vld [vmem:[%s4791 + $0x10] sm:$0xff]
        %v4795 = vld [vmem:[%s4791 + $0x18] sm:$0xff]
        %v4796 = vld [vmem:[%s4791 + $0x20] sm:$0xff]
        %v4797 = vld [vmem:[%s4791 + $0x28] sm:$0xff]
        %v4798 = vld [vmem:[%s4791 + $0x30] sm:$0xff]
        %v4799 = vld [vmem:[%s4791 + $0x38] sm:$0xff]
        %v4800 = vld [vmem:[%s4791 + $0x40] sm:$0xff]
        %v4801 = vld [vmem:[%s4791 + $0x48] sm:$0xff]
        %v4802 = vld [vmem:[%s4791 + $0x50] sm:$0xff]
        %v4803 = vld [vmem:[%s4791 + $0x58] sm:$0xff]
        %v4804 = vld [vmem:[%s4791 + $0x60] sm:$0xff]
        %v4805 = vld [vmem:[%s4791 + $0x68] sm:$0xff]
        %v4806 = vld [vmem:[%s4791 + $0x70] sm:$0xff]
        %v4807 = vld [vmem:[%s4791 + $0x78] sm:$0xff]
        %v4808 = vld [vmem:[%s4791 + $0x80] sm:$0xff]
        %v4809 = vld [vmem:[%s4791 + $0x88] sm:$0xff]
        %v4810 = vld [vmem:[%s4791 + $0x90] sm:$0xff]
        %v4811 = vld [vmem:[%s4791 + $0x98] sm:$0xff]
        %v4812 = vsel %vm4646, %v4553, 0
        %4814 = vmatprep.subr.mxu0 0.0
        %4815 = vmatpush1.msra.mxu0 %v4807
        %4816 = vmatprep.subr.mxu0 0.0
        %4817 = vmatpush1.msra.mxu0 %v4806
        %4818 = vmatprep.subr.mxu0 0.0
        %4819 = vmatpush1.msra.mxu0 %v4805
        %4820 = vmatprep.subr.mxu0 0.0
        %4821 = vmatpush1.msra.mxu0 %v4804
        %4822 = vmatprep.subr.mxu0 0.0
        %4823 = vmatpush1.msra.mxu0 %v4803
        %4824 = vmatprep.subr.mxu0 0.0
        %4825 = vmatpush1.msra.mxu0 %v4802
        %4826 = vmatprep.subr.mxu0 0.0
        %4827 = vmatpush1.msra.mxu0 %v4801
        %4828 = vmatprep.subr.mxu0 0.0
        %4829 = vmatpush1.msra.mxu0 %v4800
        %4830 = vmatprep.subr.mxu0 0.0
        %4831 = vmatpush1.msra.mxu0 %v4799
        %4832 = vmatprep.subr.mxu0 0.0
        %4833 = vmatpush1.msra.mxu0 %v4798
        %4834 = vmatprep.subr.mxu0 0.0
        %4835 = vmatpush1.msra.mxu0 %v4797
        %4836 = vmatprep.subr.mxu0 0.0
        %4837 = vmatpush1.msra.mxu0 %v4796
        %4838 = vmatprep.subr.mxu0 0.0
        %4839 = vmatpush1.msra.mxu0 %v4795
        %4840 = vmatprep.subr.mxu0 0.0
        %4841 = vmatpush1.msra.mxu0 %v4794
        %4842 = vmatprep.subr.mxu0 0.0
        %4843 = vmatpush1.msra.mxu0 %v4793
        %4844 = vmatprep.subr.mxu0 0.0
        %4845 = vmatpush1.msra.mxu0 %v4792
        %4846 = vmatprep.subr.mxu0 0.0
        %4847 = vmatpush2.msra.mxu0 0.0
        %4848 = vmatprep.subr.mxu0 0.0
        %4849 = vmatpush2.msra.mxu0 0.0
        %4850 = vmatprep.subr.mxu0 0.0
        %4851 = vmatpush2.msra.mxu0 0.0
        %4852 = vmatprep.subr.mxu0 0.0
        %4853 = vmatpush2.msra.mxu0 0.0
        %4854 = vmatprep.subr.mxu0 0.0
        %4855 = vmatpush2.msra.mxu0 0.0
        %4856 = vmatprep.subr.mxu0 0.0
        %4857 = vmatpush2.msra.mxu0 0.0
        %4858 = vmatprep.subr.mxu0 0.0
        %4859 = vmatpush2.msra.mxu0 0.0
        %4860 = vmatprep.subr.mxu0 0.0
        %4861 = vmatpush2.msra.mxu0 0.0
        %4862 = vmatprep.subr.mxu0 0.0
        %4863 = vmatpush2.msra.mxu0 0.0
        %4864 = vmatprep.subr.mxu0 0.0
        %4865 = vmatpush2.msra.mxu0 0.0
        %4866 = vmatprep.subr.mxu0 0.0
        %4867 = vmatpush2.msra.mxu0 0.0
        %4868 = vmatprep.subr.mxu0 0.0
        %4869 = vmatpush2.msra.mxu0 0.0
        %4870 = vmatprep.subr.mxu0 0.0
        %4871 = vmatpush2.msra.mxu0 %v4811
        %4872 = vmatprep.subr.mxu0 0.0
        %4873 = vmatpush2.msra.mxu0 %v4810
        %4874 = vmatprep.subr.mxu0 0.0
        %4875 = vmatpush2.msra.mxu0 %v4809
        %4876 = vmatprep.subr.mxu0 0.0
        %4877 = vmatpush2.msra.mxu0 %v4808
        %4878 = vmatprep.mubr.f32.mxu0 %v4812
        %4879 = vmatmul.mubr.f32.gmra.mxu0 %v4546
        %v4880 = vpop.f32.mrf.mxu0
        %v4881 = vadd.f32 0.0, %v4880
        %v4882 = vpop.f32.mrf.mxu0
        %4883 = vdwg.mxu0
        %v4884 = vadd.f32 %v4788, %v4881
        %s4885 = scalar_lea.vmem %s10, 480
        %v4886 = vld [vmem:[%s4885] sm:$0xff]
        %v4887 = vld [vmem:[%s4885 + $0x8] sm:$0xff]
        %v4888 = vld [vmem:[%s4885 + $0x10] sm:$0xff]
        %v4889 = vld [vmem:[%s4885 + $0x18] sm:$0xff]
        %v4890 = vld [vmem:[%s4885 + $0x20] sm:$0xff]
        %v4891 = vld [vmem:[%s4885 + $0x28] sm:$0xff]
        %v4892 = vld [vmem:[%s4885 + $0x30] sm:$0xff]
        %v4893 = vld [vmem:[%s4885 + $0x38] sm:$0xff]
        %v4894 = vld [vmem:[%s4885 + $0x40] sm:$0xff]
        %v4895 = vld [vmem:[%s4885 + $0x48] sm:$0xff]
        %v4896 = vld [vmem:[%s4885 + $0x50] sm:$0xff]
        %v4897 = vld [vmem:[%s4885 + $0x58] sm:$0xff]
        %v4898 = vld [vmem:[%s4885 + $0x60] sm:$0xff]
        %v4899 = vld [vmem:[%s4885 + $0x68] sm:$0xff]
        %v4900 = vld [vmem:[%s4885 + $0x70] sm:$0xff]
        %v4901 = vld [vmem:[%s4885 + $0x78] sm:$0xff]
        %v4902 = vld [vmem:[%s4885 + $0x80] sm:$0xff]
        %v4903 = vld [vmem:[%s4885 + $0x88] sm:$0xff]
        %v4904 = vld [vmem:[%s4885 + $0x90] sm:$0xff]
        %v4905 = vld [vmem:[%s4885 + $0x98] sm:$0xff]
        %v4906 = vsel %vm4646, %v4567, 0
        %4908 = vmatprep.subr.mxu0 0.0
        %4909 = vmatpush1.msra.mxu0 %v4901
        %4910 = vmatprep.subr.mxu0 0.0
        %4911 = vmatpush1.msra.mxu0 %v4900
        %4912 = vmatprep.subr.mxu0 0.0
        %4913 = vmatpush1.msra.mxu0 %v4899
        %4914 = vmatprep.subr.mxu0 0.0
        %4915 = vmatpush1.msra.mxu0 %v4898
        %4916 = vmatprep.subr.mxu0 0.0
        %4917 = vmatpush1.msra.mxu0 %v4897
        %4918 = vmatprep.subr.mxu0 0.0
        %4919 = vmatpush1.msra.mxu0 %v4896
        %4920 = vmatprep.subr.mxu0 0.0
        %4921 = vmatpush1.msra.mxu0 %v4895
        %4922 = vmatprep.subr.mxu0 0.0
        %4923 = vmatpush1.msra.mxu0 %v4894
        %4924 = vmatprep.subr.mxu0 0.0
        %4925 = vmatpush1.msra.mxu0 %v4893
        %4926 = vmatprep.subr.mxu0 0.0
        %4927 = vmatpush1.msra.mxu0 %v4892
        %4928 = vmatprep.subr.mxu0 0.0
        %4929 = vmatpush1.msra.mxu0 %v4891
        %4930 = vmatprep.subr.mxu0 0.0
        %4931 = vmatpush1.msra.mxu0 %v4890
        %4932 = vmatprep.subr.mxu0 0.0
        %4933 = vmatpush1.msra.mxu0 %v4889
        %4934 = vmatprep.subr.mxu0 0.0
        %4935 = vmatpush1.msra.mxu0 %v4888
        %4936 = vmatprep.subr.mxu0 0.0
        %4937 = vmatpush1.msra.mxu0 %v4887
        %4938 = vmatprep.subr.mxu0 0.0
        %4939 = vmatpush1.msra.mxu0 %v4886
        %4940 = vmatprep.subr.mxu0 0.0
        %4941 = vmatpush2.msra.mxu0 0.0
        %4942 = vmatprep.subr.mxu0 0.0
        %4943 = vmatpush2.msra.mxu0 0.0
        %4944 = vmatprep.subr.mxu0 0.0
        %4945 = vmatpush2.msra.mxu0 0.0
        %4946 = vmatprep.subr.mxu0 0.0
        %4947 = vmatpush2.msra.mxu0 0.0
        %4948 = vmatprep.subr.mxu0 0.0
        %4949 = vmatpush2.msra.mxu0 0.0
        %4950 = vmatprep.subr.mxu0 0.0
        %4951 = vmatpush2.msra.mxu0 0.0
        %4952 = vmatprep.subr.mxu0 0.0
        %4953 = vmatpush2.msra.mxu0 0.0
        %4954 = vmatprep.subr.mxu0 0.0
        %4955 = vmatpush2.msra.mxu0 0.0
        %4956 = vmatprep.subr.mxu0 0.0
        %4957 = vmatpush2.msra.mxu0 0.0
        %4958 = vmatprep.subr.mxu0 0.0
        %4959 = vmatpush2.msra.mxu0 0.0
        %4960 = vmatprep.subr.mxu0 0.0
        %4961 = vmatpush2.msra.mxu0 0.0
        %4962 = vmatprep.subr.mxu0 0.0
        %4963 = vmatpush2.msra.mxu0 0.0
        %4964 = vmatprep.subr.mxu0 0.0
        %4965 = vmatpush2.msra.mxu0 %v4905
        %4966 = vmatprep.subr.mxu0 0.0
        %4967 = vmatpush2.msra.mxu0 %v4904
        %4968 = vmatprep.subr.mxu0 0.0
        %4969 = vmatpush2.msra.mxu0 %v4903
        %4970 = vmatprep.subr.mxu0 0.0
        %4971 = vmatpush2.msra.mxu0 %v4902
        %4972 = vmatprep.mubr.f32.mxu0 %v4906
        %4973 = vmatmul.mubr.f32.gmra.mxu0 %v4560
        %v4974 = vpop.f32.mrf.mxu0
        %v4975 = vadd.f32 0.0, %v4974
        %v4976 = vpop.f32.mrf.mxu0
        %4977 = vdwg.mxu0
        %v4978 = vadd.f32 %v4884, %v4975
        %s4979 = scalar_lea.vmem %s10, 640
        %v4980 = vld [vmem:[%s4979] sm:$0xff]
        %v4981 = vld [vmem:[%s4979 + $0x8] sm:$0xff]
        %v4982 = vld [vmem:[%s4979 + $0x10] sm:$0xff]
        %v4983 = vld [vmem:[%s4979 + $0x18] sm:$0xff]
        %v4984 = vld [vmem:[%s4979 + $0x20] sm:$0xff]
        %v4985 = vld [vmem:[%s4979 + $0x28] sm:$0xff]
        %v4986 = vld [vmem:[%s4979 + $0x30] sm:$0xff]
        %v4987 = vld [vmem:[%s4979 + $0x38] sm:$0xff]
        %v4988 = vld [vmem:[%s4979 + $0x40] sm:$0xff]
        %v4989 = vld [vmem:[%s4979 + $0x48] sm:$0xff]
        %v4990 = vld [vmem:[%s4979 + $0x50] sm:$0xff]
        %v4991 = vld [vmem:[%s4979 + $0x58] sm:$0xff]
        %v4992 = vld [vmem:[%s4979 + $0x60] sm:$0xff]
        %v4993 = vld [vmem:[%s4979 + $0x68] sm:$0xff]
        %v4994 = vld [vmem:[%s4979 + $0x70] sm:$0xff]
        %v4995 = vld [vmem:[%s4979 + $0x78] sm:$0xff]
        %v4996 = vld [vmem:[%s4979 + $0x80] sm:$0xff]
        %v4997 = vld [vmem:[%s4979 + $0x88] sm:$0xff]
        %v4998 = vld [vmem:[%s4979 + $0x90] sm:$0xff]
        %v4999 = vld [vmem:[%s4979 + $0x98] sm:$0xff]
        %v5000 = vsel %vm4646, %v4581, 0
        %5002 = vmatprep.subr.mxu0 0.0
        %5003 = vmatpush1.msra.mxu0 %v4995
        %5004 = vmatprep.subr.mxu0 0.0
        %5005 = vmatpush1.msra.mxu0 %v4994
        %5006 = vmatprep.subr.mxu0 0.0
        %5007 = vmatpush1.msra.mxu0 %v4993
        %5008 = vmatprep.subr.mxu0 0.0
        %5009 = vmatpush1.msra.mxu0 %v4992
        %5010 = vmatprep.subr.mxu0 0.0
        %5011 = vmatpush1.msra.mxu0 %v4991
        %5012 = vmatprep.subr.mxu0 0.0
        %5013 = vmatpush1.msra.mxu0 %v4990
        %5014 = vmatprep.subr.mxu0 0.0
        %5015 = vmatpush1.msra.mxu0 %v4989
        %5016 = vmatprep.subr.mxu0 0.0
        %5017 = vmatpush1.msra.mxu0 %v4988
        %5018 = vmatprep.subr.mxu0 0.0
        %5019 = vmatpush1.msra.mxu0 %v4987
        %5020 = vmatprep.subr.mxu0 0.0
        %5021 = vmatpush1.msra.mxu0 %v4986
        %5022 = vmatprep.subr.mxu0 0.0
        %5023 = vmatpush1.msra.mxu0 %v4985
        %5024 = vmatprep.subr.mxu0 0.0
        %5025 = vmatpush1.msra.mxu0 %v4984
        %5026 = vmatprep.subr.mxu0 0.0
        %5027 = vmatpush1.msra.mxu0 %v4983
        %5028 = vmatprep.subr.mxu0 0.0
        %5029 = vmatpush1.msra.mxu0 %v4982
        %5030 = vmatprep.subr.mxu0 0.0
        %5031 = vmatpush1.msra.mxu0 %v4981
        %5032 = vmatprep.subr.mxu0 0.0
        %5033 = vmatpush1.msra.mxu0 %v4980
        %5034 = vmatprep.subr.mxu0 0.0
        %5035 = vmatpush2.msra.mxu0 0.0
        %5036 = vmatprep.subr.mxu0 0.0
        %5037 = vmatpush2.msra.mxu0 0.0
        %5038 = vmatprep.subr.mxu0 0.0
        %5039 = vmatpush2.msra.mxu0 0.0
        %5040 = vmatprep.subr.mxu0 0.0
        %5041 = vmatpush2.msra.mxu0 0.0
        %5042 = vmatprep.subr.mxu0 0.0
        %5043 = vmatpush2.msra.mxu0 0.0
        %5044 = vmatprep.subr.mxu0 0.0
        %5045 = vmatpush2.msra.mxu0 0.0
        %5046 = vmatprep.subr.mxu0 0.0
        %5047 = vmatpush2.msra.mxu0 0.0
        %5048 = vmatprep.subr.mxu0 0.0
        %5049 = vmatpush2.msra.mxu0 0.0
        %5050 = vmatprep.subr.mxu0 0.0
        %5051 = vmatpush2.msra.mxu0 0.0
        %5052 = vmatprep.subr.mxu0 0.0
        %5053 = vmatpush2.msra.mxu0 0.0
        %5054 = vmatprep.subr.mxu0 0.0
        %5055 = vmatpush2.msra.mxu0 0.0
        %5056 = vmatprep.subr.mxu0 0.0
        %5057 = vmatpush2.msra.mxu0 0.0
        %5058 = vmatprep.subr.mxu0 0.0
        %5059 = vmatpush2.msra.mxu0 %v4999
        %5060 = vmatprep.subr.mxu0 0.0
        %5061 = vmatpush2.msra.mxu0 %v4998
        %5062 = vmatprep.subr.mxu0 0.0
        %5063 = vmatpush2.msra.mxu0 %v4997
        %5064 = vmatprep.subr.mxu0 0.0
        %5065 = vmatpush2.msra.mxu0 %v4996
        %5066 = vmatprep.mubr.f32.mxu0 %v5000
        %5067 = vmatmul.mubr.f32.gmra.mxu0 %v4574
        %v5068 = vpop.f32.mrf.mxu0
        %v5069 = vadd.f32 0.0, %v5068
        %v5070 = vpop.f32.mrf.mxu0
        %5071 = vdwg.mxu0
        %v5072 = vadd.f32 %v4978, %v5069
        %v5073 = vld [vmem:[%s11] sm:$0x1]
        %v5074 = vadd.f32 %v5072, %v5073
        %v5075 = vxor.u32 %v5074, 2147483648
        %v5076 = vmul.f32 %v5075, 1.442695
        %v5077 = vpow.pop %v5076
        %v5078 = vadd.f32 %v5077, 1.0
        %v5079 = vrcp.pop %v5078
        %v5080 = vmul.f32 1.0, %v5079
        %v5081 = vld [vmem:[%s12] sm:$0xff]
        %v5082 = vld [vmem:[%s12 + $0x8] sm:$0xff]
        %v5083 = vld [vmem:[%s12 + $0x10] sm:$0xff]
        %v5084 = vld [vmem:[%s12 + $0x18] sm:$0xff]
        %v5085 = vld [vmem:[%s12 + $0x20] sm:$0xff]
        %v5086 = vld [vmem:[%s12 + $0x28] sm:$0xff]
        %v5087 = vld [vmem:[%s12 + $0x30] sm:$0xff]
        %v5088 = vld [vmem:[%s12 + $0x38] sm:$0xff]
        %v5089 = vld [vmem:[%s12 + $0x40] sm:$0xff]
        %v5090 = vld [vmem:[%s12 + $0x48] sm:$0xff]
        %v5091 = vld [vmem:[%s12 + $0x50] sm:$0xff]
        %v5092 = vld [vmem:[%s12 + $0x58] sm:$0xff]
        %v5093 = vld [vmem:[%s12 + $0x60] sm:$0xff]
        %v5094 = vld [vmem:[%s12 + $0x68] sm:$0xff]
        %v5095 = vld [vmem:[%s12 + $0x70] sm:$0xff]
        %v5096 = vld [vmem:[%s12 + $0x78] sm:$0xff]
        %v5097 = vld [vmem:[%s13] sm:$0x1]
        %5098 = vmatprep.subr.mxu0 0.0
        %5099 = vmatpush1.msra.mxu0 %v5096
        %5100 = vmatprep.subr.mxu0 0.0
        %5101 = vmatpush1.msra.mxu0 %v5095
        %5102 = vmatprep.subr.mxu0 0.0
        %5103 = vmatpush1.msra.mxu0 %v5094
        %5104 = vmatprep.subr.mxu0 0.0
        %5105 = vmatpush1.msra.mxu0 %v5093
        %5106 = vmatprep.subr.mxu0 0.0
        %5107 = vmatpush1.msra.mxu0 %v5092
        %5108 = vmatprep.subr.mxu0 0.0
        %5109 = vmatpush1.msra.mxu0 %v5091
        %5110 = vmatprep.subr.mxu0 0.0
        %5111 = vmatpush1.msra.mxu0 %v5090
        %5112 = vmatprep.subr.mxu0 0.0
        %5113 = vmatpush1.msra.mxu0 %v5089
        %5114 = vmatprep.subr.mxu0 0.0
        %5115 = vmatpush1.msra.mxu0 %v5088
        %5116 = vmatprep.subr.mxu0 0.0
        %5117 = vmatpush1.msra.mxu0 %v5087
        %5118 = vmatprep.subr.mxu0 0.0
        %5119 = vmatpush1.msra.mxu0 %v5086
        %5120 = vmatprep.subr.mxu0 0.0
        %5121 = vmatpush1.msra.mxu0 %v5085
        %5122 = vmatprep.subr.mxu0 0.0
        %5123 = vmatpush1.msra.mxu0 %v5084
        %5124 = vmatprep.subr.mxu0 0.0
        %5125 = vmatpush1.msra.mxu0 %v5083
        %5126 = vmatprep.subr.mxu0 0.0
        %5127 = vmatpush1.msra.mxu0 %v5082
        %5128 = vmatprep.subr.mxu0 0.0
        %5129 = vmatpush1.msra.mxu0 %v5081
        %5130 = vmatprep.subr.mxu0 0.0
        %5131 = vmatpush2.msra.mxu0 0.0
        %5132 = vmatprep.subr.mxu0 0.0
        %5133 = vmatpush2.msra.mxu0 0.0
        %5134 = vmatprep.subr.mxu0 0.0
        %5135 = vmatpush2.msra.mxu0 0.0
        %5136 = vmatprep.subr.mxu0 0.0
        %5137 = vmatpush2.msra.mxu0 0.0
        %5138 = vmatprep.subr.mxu0 0.0
        %5139 = vmatpush2.msra.mxu0 0.0
        %5140 = vmatprep.subr.mxu0 0.0
        %5141 = vmatpush2.msra.mxu0 0.0
        %5142 = vmatprep.subr.mxu0 0.0
        %5143 = vmatpush2.msra.mxu0 0.0
        %5144 = vmatprep.subr.mxu0 0.0
        %5145 = vmatpush2.msra.mxu0 0.0
        %5146 = vmatprep.subr.mxu0 0.0
        %5147 = vmatpush2.msra.mxu0 0.0
        %5148 = vmatprep.subr.mxu0 0.0
        %5149 = vmatpush2.msra.mxu0 0.0
        %5150 = vmatprep.subr.mxu0 0.0
        %5151 = vmatpush2.msra.mxu0 0.0
        %5152 = vmatprep.subr.mxu0 0.0
        %5153 = vmatpush2.msra.mxu0 0.0
        %5154 = vmatprep.subr.mxu0 0.0
        %5155 = vmatpush2.msra.mxu0 0.0
        %5156 = vmatprep.subr.mxu0 0.0
        %5157 = vmatpush2.msra.mxu0 0.0
        %5158 = vmatprep.subr.mxu0 0.0
        %5159 = vmatpush2.msra.mxu0 0.0
        %5160 = vmatprep.subr.mxu0 0.0
        %5161 = vmatpush2.msra.mxu0 0.0
        %5162 = vmatprep.mubr.f32.mxu0 0.0
        %5163 = vmatmul.mubr.f32.gmra.mxu0 %v5080
        %v5164 = vpop.f32.mrf.mxu0
        %v5165 = vadd.f32 %v5097, %v5164
        %v5166 = vpop.f32.mrf.mxu0
        %5167 = vdwg.mxu0
        %v5168 = vxor.u32 %v5165, 2147483648
        %v5169 = vmul.f32 %v5168, 1.442695
        %v5170 = vpow.pop %v5169
        %v5171 = vadd.f32 %v5170, 1.0
        %v5172 = vrcp.pop %v5171
        %v5173 = vmul.f32 1.0, %v5172
        %v5174 = vld [vmem:[%s14] sm:$0xff]
        %v5175 = vld [vmem:[%s14 + $0x8] sm:$0xff]
        %v5176 = vld [vmem:[%s14 + $0x10] sm:$0xff]
        %v5177 = vld [vmem:[%s14 + $0x18] sm:$0xff]
        %v5178 = vld [vmem:[%s15] sm:$0x1]
        %v5180 = vsel %vm4646, %v5173, 0
        %5182 = vmatprep.subr.mxu0 0.0
        %5183 = vmatpush1.msra.mxu0 0.0
        %5184 = vmatprep.subr.mxu0 0.0
        %5185 = vmatpush1.msra.mxu0 0.0
        %5186 = vmatprep.subr.mxu0 0.0
        %5187 = vmatpush1.msra.mxu0 0.0
        %5188 = vmatprep.subr.mxu0 0.0
        %5189 = vmatpush1.msra.mxu0 0.0
        %5190 = vmatprep.subr.mxu0 0.0
        %5191 = vmatpush1.msra.mxu0 0.0
        %5192 = vmatprep.subr.mxu0 0.0
        %5193 = vmatpush1.msra.mxu0 0.0
        %5194 = vmatprep.subr.mxu0 0.0
        %5195 = vmatpush1.msra.mxu0 0.0
        %5196 = vmatprep.subr.mxu0 0.0
        %5197 = vmatpush1.msra.mxu0 0.0
        %5198 = vmatprep.subr.mxu0 0.0
        %5199 = vmatpush1.msra.mxu0 0.0
        %5200 = vmatprep.subr.mxu0 0.0
        %5201 = vmatpush1.msra.mxu0 0.0
        %5202 = vmatprep.subr.mxu0 0.0
        %5203 = vmatpush1.msra.mxu0 0.0
        %5204 = vmatprep.subr.mxu0 0.0
        %5205 = vmatpush1.msra.mxu0 0.0
        %5206 = vmatprep.subr.mxu0 0.0
        %5207 = vmatpush1.msra.mxu0 %v5177
        %5208 = vmatprep.subr.mxu0 0.0
        %5209 = vmatpush1.msra.mxu0 %v5176
        %5210 = vmatprep.subr.mxu0 0.0
        %5211 = vmatpush1.msra.mxu0 %v5175
        %5212 = vmatprep.subr.mxu0 0.0
        %5213 = vmatpush1.msra.mxu0 %v5174
        %5214 = vmatprep.subr.mxu0 0.0
        %5215 = vmatpush2.msra.mxu0 0.0
        %5216 = vmatprep.subr.mxu0 0.0
        %5217 = vmatpush2.msra.mxu0 0.0
        %5218 = vmatprep.subr.mxu0 0.0
        %5219 = vmatpush2.msra.mxu0 0.0
        %5220 = vmatprep.subr.mxu0 0.0
        %5221 = vmatpush2.msra.mxu0 0.0
        %5222 = vmatprep.subr.mxu0 0.0
        %5223 = vmatpush2.msra.mxu0 0.0
        %5224 = vmatprep.subr.mxu0 0.0
        %5225 = vmatpush2.msra.mxu0 0.0
        %5226 = vmatprep.subr.mxu0 0.0
        %5227 = vmatpush2.msra.mxu0 0.0
        %5228 = vmatprep.subr.mxu0 0.0
        %5229 = vmatpush2.msra.mxu0 0.0
        %5230 = vmatprep.subr.mxu0 0.0
        %5231 = vmatpush2.msra.mxu0 0.0
        %5232 = vmatprep.subr.mxu0 0.0
        %5233 = vmatpush2.msra.mxu0 0.0
        %5234 = vmatprep.subr.mxu0 0.0
        %5235 = vmatpush2.msra.mxu0 0.0
        %5236 = vmatprep.subr.mxu0 0.0
        %5237 = vmatpush2.msra.mxu0 0.0
        %5238 = vmatprep.subr.mxu0 0.0
        %5239 = vmatpush2.msra.mxu0 0.0
        %5240 = vmatprep.subr.mxu0 0.0
        %5241 = vmatpush2.msra.mxu0 0.0
        %5242 = vmatprep.subr.mxu0 0.0
        %5243 = vmatpush2.msra.mxu0 0.0
        %5244 = vmatprep.subr.mxu0 0.0
        %5245 = vmatpush2.msra.mxu0 0.0
        %5246 = vmatprep.mubr.f32.mxu0 0.0
        %5247 = vmatmul.mubr.f32.gmra.mxu0 %v5180
        %v5248 = vpop.f32.mrf.mxu0
        %v5249 = vadd.f32 %v5178, %v5248
        %v5250 = vpop.f32.mrf.mxu0
        %5251 = vdwg.mxu0
        %v5252 = vmax.f32 %v5249, 0.0
        %5253 = vst [vmem:[%s548] sm:$0x1] %v5252
        %p5254 = scmp.lt.s32.totalorder %s32, 1
        %s5255 = scalar_select %p5254, %s32, 1
        %s5256 = smul.addr %s5255, 2
        %s5257 = smul.addr %s5256, 8
        %s5258 = scalar_lea.vmem %s16, %s5257
        %s5259 = sand.u32 %s407, 1
        %s5260 = scalar_lea.sflag [#allocation5], %s5259
        %s5261 = sand.u32 %s407, 1
        %s5262 = scalar_lea.vmem [#allocation4], %s5261
        // Predicated region
        $region85: #{_lambda_.1} parent=83 // pred_check
          %p5263 = pneg %p391
        $region86: #{_lambda_.1} parent=83 // pred_check_branch
          %5265 = sbr.rel (%p5263) target = $region88
        $region87: #{_lambda_.1} parent=83 // pred_region
          _
        $region88: #{_lambda_.1} parent=83 // pred_fallthru
          _
        // Predicated region
        $region89: #{_lambda_.1} parent=83 // pred_check
          %p5266 = pneg %p417
        $region90: #{_lambda_.1} parent=83 // pred_check_branch
          %5268 = sbr.rel (%p5266) target = $region92
        $region91: #{_lambda_.1} parent=83 // pred_region
          %s5270 = ssub.s32 16, 16
          %5271 = vsyncadd %s5260, %s5270
          %s5272 = smul.addr %s32, 16
          %s5273 = scalar_lea.hbm %s17, %s5272
          %s5275 = sshll.u32 %s5262, 4
          %s5276 = int_to_ptr.vmem [resolvable:$true] %s5275
          %5278 = dma.vmem_to_hbm [thread:$0]  %s5276, 16, %s5273, %s5260
        $region92: #{_lambda_.1} parent=83 // pred_fallthru
          _
      $region84: #{_lambda_.1} parent=5 // pred_fallthru
        _
      %p5279 = scmp.le.s32.totalorder 2, %s27
      // Predicated region
      $region93: #{_lambda_.1} parent=5 // pred_check
        %p5280 = pneg %p5279
      $region94: #{_lambda_.1} parent=5 // pred_check_branch
        %5282 = sbr.rel (%p5280) target = $region96
      $region95: #{_lambda_.1} parent=5 // pred_region
        %s5283 = ssub.s32 %s27, 2
        // Predicated region
        $region97: #{_lambda_.1} parent=95 // pred_check
          %p5284 = pneg %p397
        $region98: #{_lambda_.1} parent=95 // pred_check_branch
          %5286 = sbr.rel (%p5284) target = $region100
        $region99: #{_lambda_.1} parent=95 // pred_region
          %p5287 = scmp.lt.s32.totalorder %s33, 1
          %s5288 = scalar_select %p5287, %s33, 1
          %s5289 = smul.addr %s5288, 2
          %s5290 = smul.addr %s5289, 8
          %s5291 = scalar_lea.vmem %s16, %s5290
        $region100: #{_lambda_.1} parent=95 // pred_fallthru
          _
        // Predicated region
        $region101: #{_lambda_.1} parent=95 // pred_check
          %p5292 = pneg %p423
        $region102: #{_lambda_.1} parent=95 // pred_check_branch
          %5294 = sbr.rel (%p5292) target = $region104
        $region103: #{_lambda_.1} parent=95 // pred_region
          %s5295 = sand.u32 %s408, 1
          %s5296 = scalar_lea.sflag [#allocation5], %s5295
          %s5297 = sand.u32 %s408, 1
          %s5298 = scalar_lea.vmem [#allocation4], %s5297
          %5299 = dma.done %s5296, 16
        $region104: #{_lambda_.1} parent=95 // pred_fallthru
          _
      $region96: #{_lambda_.1} parent=5 // pred_fallthru
        _
    $region6: #{_lambda_.1} parent=1 // loop_footer
      %s31 = sadd.s32 1, %s27
    $region7: #{_lambda_.1} parent=1 // loop_footer_branch
      %26 = sbr.rel target = $region3
    $region8: #{_lambda_.1} parent=1 // loop_exit
      _
    %5300 = vsyncpa [#allocation5], 1
    %s5301 = scalar_lea.sflag [#allocation5], 1
    %5302 = vsyncpa %s5301, 1

</llo_original>
